<compile_context>
chip_gen: v7x
topology: tpu7x:2x2x1
jax: 0.10.0
libtpu: 0.0.40
codegen_flags: <defaults>
</compile_context>

<pallas_src>
import jax
import jax.numpy as jnp
from jax.experimental import pallas as pl
from jax.experimental.pallas import tpu as pltpu

# Small shapes consistent with the module's forward pass.
B, S, T = 2, 8, 8        # batch, source length, target length
E, H, V = 32, 32, 64     # emb_size, hidden_size, vocab_tgt_size
KH = 2 * H               # encoder output size (2 * hidden_size)
VP = 128                 # lane-padded logits width (V padded to 128)
G4 = 4 * H               # fused gate/lane width (= 128)


def decoder_kernel(embed_ref, enc_ref, negb_ref, h0_ref,
                   we_ref, wh_ref, wkh_ref, bias_ref,
                   out_ref,
                   e_scr, s_scr, h_scr):
    enc = enc_ref[...]                                   # (B, S, 2H)
    neg_bias = negb_ref[...]                             # (B, S) additive mask

    # ---- Slab slices (lane-tile aligned; loaded once, reused every step).
    w_h_fused = wh_ref[:, 0:G4]                          # [whh_r|whh_z|whh_n|wq]
    wlog      = wh_ref[:, G4:G4 + VP]                    # (H, 128) padded logits W
    wpre_h    = wh_ref[:, G4 + VP:G4 + VP + H]           # (H, H)
    w_c_fused = wkh_ref[:, 0:G4]                         # [wihc_r|wihc_z|wihc_n|wpre_c]
    wkey      = wkh_ref[:, G4:G4 + H]                    # (KH, H)

    # ---- Hoisted broadcasts (kept out of the unrolled loop).
    bhh_b = jnp.broadcast_to(bias_ref[1:2, :], (B, G4))            # [0|0|bhh_n|0]
    venergy_b = jnp.broadcast_to(bias_ref[2:3, 0:H].reshape(1, 1, H), (B, S, H))

    # ---- Prologue: one fused embed matmul for all T steps, ih biases folded.
    #      Lane layout: [gy_r+b_r | gy_z+b_z | gy_n+bih_n | py+bpre].
    e_scr[...] = (jnp.dot(embed_ref[...], we_ref[...],
                          preferred_element_type=jnp.float32)
                  + bias_ref[0:1, :])

    # ---- attention.compute_proj_keys(enc_output)
    pk = jnp.dot(enc.reshape(B * S, KH), wkey,
                 preferred_element_type=jnp.float32).reshape(B, S, H)

    # ---- Serial recurrence (fully unrolled; static scratch slices).
    h = h0_ref[...]                                       # (B, H)
    for t in range(T):
        row = t * B

        # One fused recurrent matmul: [gh_r | gh_z | gh_n+bhh_n | pq].
        h_out = jnp.dot(h, w_h_fused, preferred_element_type=jnp.float32) + bhh_b
        pq = h_out[:, 3 * H:4 * H]                        # query proj (bhh slab is 0 there)

        # Bahdanau attention (additive mask; divide via EUP approx reciprocal).
        energy = jnp.tanh(pk + pq[:, None, :])                         # (B,S,H)
        scores = jnp.sum(energy * venergy_b, axis=-1) + neg_bias       # (B,S)
        m = jnp.max(scores, axis=-1, keepdims=True)
        p = jnp.exp(scores - m)
        alphas = p * pl.reciprocal(jnp.sum(p, axis=-1, keepdims=True), approx=True)
        context = jnp.einsum('bqs,bsk->bqk', alphas[:, None, :], enc,
                             preferred_element_type=jnp.float32)[:, 0, :]  # (B,2H)

        # One fused context matmul: [gc_r | gc_z | gc_n | pc].
        c_out = jnp.dot(context, w_c_fused, preferred_element_type=jnp.float32)
        s = e_scr[row:row + B, :] + c_out                 # all ih-side terms + biases
        s_scr[row:row + B, :] = s                         # lanes 96:128 = py+bpre+pc

        # GRU cell: one 64-lane sigmoid for r|z, then n-gate tanh.
        rz = jax.nn.sigmoid(s[:, 0:2 * H] + h_out[:, 0:2 * H])
        r, z = rz[:, 0:H], rz[:, H:2 * H]
        n = jnp.tanh(s[:, 2 * H:3 * H] + r * h_out[:, 2 * H:3 * H])
        h_new = (1.0 - z) * n + z * h
        h_scr[row:row + B, :] = h_new
        h = h_new

    # ---- Epilogue: hoisted pre_output(h) + logits matmuls, one dense store.
    pre_all = (s_scr[...][:, 3 * H:4 * H]
               + jnp.dot(h_scr[...], wpre_h, preferred_element_type=jnp.float32))
    out_ref[...] = jnp.dot(pre_all, wlog, preferred_element_type=jnp.float32)


def _full(shape):
    zeros = (0,) * len(shape)
    return pl.BlockSpec(shape, lambda i, z=zeros: z)


def decoder_forward(embed_y, enc_output, x_mask, h0, params):
    (wkey, wq, venergy, wih, whh, bih, bhh, wpre, bpre, wlog) = params

    # Time-major, flattened embeddings: row index = t*B + b.
    embed_flat = jnp.transpose(embed_y, (1, 0, 2)).reshape(T * B, E)

    # Split fused GRU weights per gate and by input section (embed vs context).
    wih_y, wih_c = wih[:E], wih[E:]
    wihy_r, wihy_z, wihy_n = wih_y[:, :H], wih_y[:, H:2 * H], wih_y[:, 2 * H:]
    wihc_r, wihc_z, wihc_n = wih_c[:, :H], wih_c[:, H:2 * H], wih_c[:, 2 * H:]
    whh_r, whh_z, whh_n = whh[:, :H], whh[:, H:2 * H], whh[:, 2 * H:]
    bih_r, bih_z, bih_n = bih[:, :H], bih[:, H:2 * H], bih[:, 2 * H:]
    bhh_r, bhh_z, bhh_n = bhh[:, :H], bhh[:, H:2 * H], bhh[:, 2 * H:]
    b_r = bih_r + bhh_r              # safe to fold: r gate
    b_z = bih_z + bhh_z              # safe to fold: z gate (n gate kept split)

    # pre_output_layer input sections: [embed_y, dec_output, context].
    wpre_y, wpre_h, wpre_c = wpre[:E], wpre[E:E + H], wpre[E + H:]

    # ---- Lane-packed weight slabs (one DMA per contraction dim).
    w_e = jnp.concatenate([wihy_r, wihy_z, wihy_n, wpre_y], axis=1)          # (E, 128)
    wlog_pad = jnp.zeros((H, VP), jnp.float32).at[:, :V].set(wlog)
    w_h = jnp.concatenate([jnp.concatenate([whh_r, whh_z, whh_n, wq], axis=1),
                           wlog_pad, wpre_h], axis=1)                        # (H, 288)
    w_kh = jnp.concatenate([jnp.concatenate([wihc_r, wihc_z, wihc_n, wpre_c], axis=1),
                            wkey], axis=1)                                   # (KH, 160)

    # ---- Bias / small-vector slab (one vreg).
    bias128 = jnp.concatenate([b_r, b_z, bih_n, bpre], axis=1)               # (1, 128)
    bhh128 = jnp.concatenate([jnp.zeros((1, 2 * H), jnp.float32), bhh_n,
                              jnp.zeros((1, H), jnp.float32)], axis=1)       # (1, 128)
    venergy_pad = jnp.zeros((1, G4), jnp.float32).at[:, :H].set(venergy)
    bias_slab = jnp.concatenate([bias128, bhh128, venergy_pad], axis=0)      # (3, 128)

    # Additive attention mask (replaces per-step masked_fill select).
    neg_bias = (1.0 - x_mask) * (-1e30)

    inputs = (embed_flat, enc_output, neg_bias, h0, w_e, w_h, w_kh, bias_slab)

    out = pl.pallas_call(
        decoder_kernel,
        out_shape=jax.ShapeDtypeStruct((T * B, VP), jnp.float32),
        grid_spec=pltpu.PrefetchScalarGridSpec(
            num_scalar_prefetch=0,
            grid=(1,),                               # single invocation; loop in-kernel
            in_specs=[_full(x.shape) for x in inputs],
            out_specs=pl.BlockSpec((T * B, VP), lambda i: (0, 0)),
            scratch_shapes=[
                pltpu.VMEM((T * B, G4), jnp.float32),   # e: [gy_r|gy_z|gy_n|py]+biases
                pltpu.VMEM((T * B, G4), jnp.float32),   # s: per-step e+c (pre partial @ 96:128)
                pltpu.VMEM((T * B, H), jnp.float32),    # h: per-step GRU hidden
            ],
        ),
        compiler_params=pltpu.CompilerParams(dimension_semantics=("arbitrary",)),
    )(*inputs)

    out = out.reshape(T, B, VP)[:, :, :V]            # drop lane padding
    return jnp.transpose(out, (1, 0, 2))             # back to PyTorch [B, T, V]


def decoder_reference(embed_y, enc_output, x_mask, h0, params):
    """Pure-JAX reference mirroring Decoder.forward (GRU, eval mode)."""
    (wkey, wq, venergy, wih, whh, bih, bhh, wpre, bpre, wlog) = params
    pk = jnp.einsum('bsk,kh->bsh', enc_output, wkey)
    h = h0
    outs = []
    for t in range(T):
        y_t = embed_y[:, t, :]
        pq = h @ wq
        energy = jnp.tanh(pk + pq[:, None, :])
        scores = jnp.sum(energy * venergy, axis=-1)
        scores = jnp.where(x_mask > 0, scores, -1e30)
        alphas = jax.nn.softmax(scores, axis=-1)
        context = jnp.sum(alphas[:, :, None] * enc_output, axis=1)
        x = jnp.concatenate([y_t, context], axis=-1)
        gx = x @ wih + bih
        gh = h @ whh + bhh
        r = jax.nn.sigmoid(gx[:, :H] + gh[:, :H])
        zg = jax.nn.sigmoid(gx[:, H:2 * H] + gh[:, H:2 * H])
        n = jnp.tanh(gx[:, 2 * H:] + r * gh[:, 2 * H:])
        h = (1.0 - zg) * n + zg * h
        pre = jnp.concatenate([y_t, h, context], axis=-1) @ wpre + bpre
        outs.append(pre @ wlog)
    return jnp.stack(outs, axis=1)


if __name__ == "__main__":
    key = jax.random.PRNGKey(0)
    ks = jax.random.split(key, 16)

    # Inputs
    embed_y = jax.random.normal(ks[0], (B, T, E), jnp.float32)
    enc_output = jax.random.normal(ks[1], (B, S, KH), jnp.float32)
    # mask: second sequence padded at the last 2 positions
    x_mask = jnp.ones((B, S), jnp.float32).at[1, S - 2:].set(0.0)
    h0 = jax.random.normal(ks[2], (B, H), jnp.float32)

    # Deterministic parameters (stored already transposed into matmul layout).
    scale = 0.1
    params = (
        scale * jax.random.normal(ks[3], (KH, H), jnp.float32),           # attn key W^T
        scale * jax.random.normal(ks[4], (H, H), jnp.float32),            # attn query W^T
        scale * jax.random.normal(ks[5], (1, H), jnp.float32),            # attn energy v
        scale * jax.random.normal(ks[6], (E + KH, 3 * H), jnp.float32),   # GRU W_ih^T
        scale * jax.random.normal(ks[7], (H, 3 * H), jnp.float32),        # GRU W_hh^T
        scale * jax.random.normal(ks[8], (1, 3 * H), jnp.float32),        # GRU b_ih
        scale * jax.random.normal(ks[9], (1, 3 * H), jnp.float32),        # GRU b_hh
        scale * jax.random.normal(ks[10], (E + 3 * H, H), jnp.float32),   # pre_output W^T
        scale * jax.random.normal(ks[11], (1, H), jnp.float32),           # pre_output b
        scale * jax.random.normal(ks[12], (H, V), jnp.float32),           # logits W^T
    )

    out = decoder_forward(embed_y, enc_output, x_mask, h0, params)
    out = jax.block_until_ready(out)
    assert out.shape == (B, T, V), out.shape

    ref = decoder_reference(embed_y, enc_output, x_mask, h0, params)
    assert jnp.allclose(out, ref, rtol=1e-2, atol=1e-2), float(jnp.max(jnp.abs(out - ref)))

    # TODO(synk): training-time context_dropout / nn.Dropout (random.random / Bernoulli
    # masks) are not modeled; kernel implements eval-mode semantics.
    print("KERNEL_OK")
</pallas_src>

<mosaic_0001>
module attributes {stable_mosaic.version = 11 : i64} {
  func.func @decoder_kernel(%arg0: i32, %arg1: memref<16x32xf32, #tpu.memory_space<vmem>>, %arg2: memref<2x8x64xf32, #tpu.memory_space<vmem>>, %arg3: memref<2x8xf32, #tpu.memory_space<vmem>>, %arg4: memref<2x32xf32, #tpu.memory_space<vmem>>, %arg5: memref<32x128xf32, #tpu.memory_space<vmem>>, %arg6: memref<32x288xf32, #tpu.memory_space<vmem>>, %arg7: memref<64x160xf32, #tpu.memory_space<vmem>>, %arg8: memref<3x128xf32, #tpu.memory_space<vmem>>, %arg9: memref<16x128xf32, #tpu.memory_space<vmem>>, %arg10: memref<16x128xf32, #tpu.memory_space<vmem>>, %arg11: memref<16x128xf32, #tpu.memory_space<vmem>>, %arg12: memref<16x32xf32, #tpu.memory_space<vmem>>) attributes {dimension_semantics = [#tpu.dimension_semantics<arbitrary>], iteration_bounds = array<i64: 1>, scalar_prefetch = 0 : i64, scratch_operands = 3 : i64, tpu.core_type = #tpu.core_type<tc>, window_params = [{pipeline_mode = #tpu.pipeline_mode<synchronous>, transform_indices = @transform_0, window_bounds = array<i64: 16, 32>}, {pipeline_mode = #tpu.pipeline_mode<synchronous>, transform_indices = @transform_1, window_bounds = array<i64: 2, 8, 64>}, {pipeline_mode = #tpu.pipeline_mode<synchronous>, transform_indices = @transform_2, window_bounds = array<i64: 2, 8>}, {pipeline_mode = #tpu.pipeline_mode<synchronous>, transform_indices = @transform_3, window_bounds = array<i64: 2, 32>}, {pipeline_mode = #tpu.pipeline_mode<synchronous>, transform_indices = @transform_4, window_bounds = array<i64: 32, 128>}, {pipeline_mode = #tpu.pipeline_mode<synchronous>, transform_indices = @transform_5, window_bounds = array<i64: 32, 288>}, {pipeline_mode = #tpu.pipeline_mode<synchronous>, transform_indices = @transform_6, window_bounds = array<i64: 64, 160>}, {pipeline_mode = #tpu.pipeline_mode<synchronous>, transform_indices = @transform_7, window_bounds = array<i64: 3, 128>}, {pipeline_mode = #tpu.pipeline_mode<synchronous>, transform_indices = @transform_8, window_bounds = array<i64: 16, 128>}]} {
    %c0 = arith.constant 0 : index
    %c0_0 = arith.constant 0 : index
    %c0_1 = arith.constant 0 : index
    %0 = vector.load %arg2[%c0, %c0_0, %c0_1] : memref<2x8x64xf32, #tpu.memory_space<vmem>>, vector<2x8x64xf32>
    %c0_2 = arith.constant 0 : index
    %c0_3 = arith.constant 0 : index
    %1 = vector.load %arg3[%c0_2, %c0_3] : memref<2x8xf32, #tpu.memory_space<vmem>>, vector<2x8xf32>
    %c0_4 = arith.constant 0 : index
    %c0_5 = arith.constant 0 : index
    %2 = vector.load %arg6[%c0_4, %c0_5] : memref<32x288xf32, #tpu.memory_space<vmem>>, vector<32x128xf32>
    %c0_6 = arith.constant 0 : index
    %c128 = arith.constant 128 : index
    %3 = vector.load %arg6[%c0_6, %c128] : memref<32x288xf32, #tpu.memory_space<vmem>>, vector<32x128xf32>
    %c0_7 = arith.constant 0 : index
    %c256 = arith.constant 256 : index
    %4 = vector.load %arg6[%c0_7, %c256] : memref<32x288xf32, #tpu.memory_space<vmem>>, vector<32x32xf32>
    %c0_8 = arith.constant 0 : index
    %c0_9 = arith.constant 0 : index
    %5 = vector.load %arg7[%c0_8, %c0_9] : memref<64x160xf32, #tpu.memory_space<vmem>>, vector<64x128xf32>
    %c0_10 = arith.constant 0 : index
    %c128_11 = arith.constant 128 : index
    %6 = vector.load %arg7[%c0_10, %c128_11] : memref<64x160xf32, #tpu.memory_space<vmem>>, vector<64x32xf32>
    %c1 = arith.constant 1 : index
    %c0_12 = arith.constant 0 : index
    %7 = vector.load %arg8[%c1, %c0_12] : memref<3x128xf32, #tpu.memory_space<vmem>>, vector<1x128xf32>
    %8 = vector.shape_cast %7 : vector<1x128xf32> to vector<1x128xf32>
    %9 = vector.broadcast %8 : vector<1x128xf32> to vector<2x128xf32>
    %c2 = arith.constant 2 : index
    %c0_13 = arith.constant 0 : index
    %10 = vector.load %arg8[%c2, %c0_13] : memref<3x128xf32, #tpu.memory_space<vmem>>, vector<1x32xf32>
    %11 = vector.shape_cast %10 : vector<1x32xf32> to vector<1x1x32xf32>
    %12 = vector.shape_cast %11 : vector<1x1x32xf32> to vector<1x1x32xf32>
    %13 = vector.broadcast %12 : vector<1x1x32xf32> to vector<2x8x32xf32>
    %c0_14 = arith.constant 0 : index
    %c0_15 = arith.constant 0 : index
    %14 = vector.load %arg1[%c0_14, %c0_15] : memref<16x32xf32, #tpu.memory_space<vmem>>, vector<16x32xf32>
    %c0_16 = arith.constant 0 : index
    %c0_17 = arith.constant 0 : index
    %15 = vector.load %arg5[%c0_16, %c0_17] : memref<32x128xf32, #tpu.memory_space<vmem>>, vector<32x128xf32>
    %cst = arith.constant dense<0.000000e+00> : vector<16x128xf32>
    %16 = tpu.matmul %14, %15, %cst {dimension_numbers = #tpu.dot_dimension_numbers<[1], [0], [0], [1], [0, 0, 1, 1], [], []>} : vector<16x32xf32>, vector<32x128xf32>, vector<16x128xf32> -> vector<16x128xf32>
    %c0_18 = arith.constant 0 : index
    %c0_19 = arith.constant 0 : index
    %17 = vector.load %arg8[%c0_18, %c0_19] : memref<3x128xf32, #tpu.memory_space<vmem>>, vector<1x128xf32>
    %18 = vector.broadcast %17 : vector<1x128xf32> to vector<16x128xf32>
    %19 = arith.addf %16, %18 : vector<16x128xf32>
    %c0_20 = arith.constant 0 : index
    %c0_21 = arith.constant 0 : index
    %20 = vector.load %arg10[%c0_20, %c0_21] : memref<16x128xf32, #tpu.memory_space<vmem>>, vector<16x128xf32>
    tpu.vector_store %arg10[%c0_20, %c0_21], %19 {strides = array<i32>} : memref<16x128xf32, #tpu.memory_space<vmem>>, vector<16x128xf32>,
    %21 = vector.shape_cast %0 : vector<2x8x64xf32> to vector<16x64xf32>
    %cst_22 = arith.constant dense<0.000000e+00> : vector<16x32xf32>
    %22 = tpu.matmul %21, %6, %cst_22 {dimension_numbers = #tpu.dot_dimension_numbers<[1], [0], [0], [1], [0, 0, 1, 1], [], []>} : vector<16x64xf32>, vector<64x32xf32>, vector<16x32xf32> -> vector<16x32xf32>
    %23 = vector.shape_cast %22 : vector<16x32xf32> to vector<2x8x32xf32>
    %c0_23 = arith.constant 0 : index
    %c0_24 = arith.constant 0 : index
    %24 = vector.load %arg4[%c0_23, %c0_24] : memref<2x32xf32, #tpu.memory_space<vmem>>, vector<2x32xf32>
    %cst_25 = arith.constant dense<0.000000e+00> : vector<2x128xf32>
    %25 = tpu.matmul %24, %2, %cst_25 {dimension_numbers = #tpu.dot_dimension_numbers<[1], [0], [0], [1], [0, 0, 1, 1], [], []>} : vector<2x32xf32>, vector<32x128xf32>, vector<2x128xf32> -> vector<2x128xf32>
    %26 = arith.addf %25, %9 : vector<2x128xf32>
    %27 = vector.extract_strided_slice %26 {offsets = [0, 96], sizes = [2, 32], strides = [1, 1]} : vector<2x128xf32> to vector<2x32xf32>
    %28 = vector.shape_cast %27 : vector<2x32xf32> to vector<2x1x32xf32>
    %29 = vector.broadcast %28 : vector<2x1x32xf32> to vector<2x8x32xf32>
    %30 = arith.addf %23, %29 : vector<2x8x32xf32>
    %31 = math.tanh %30 : vector<2x8x32xf32>
    %32 = arith.mulf %31, %13 : vector<2x8x32xf32>
    %cst_26 = arith.constant dense<0.000000e+00> : vector<2x8xf32>
    %33 = vector.multi_reduction <add>, %32, %cst_26 [2] : vector<2x8x32xf32> to vector<2x8xf32>
    %34 = arith.addf %33, %1 : vector<2x8xf32>
    %cst_27 = arith.constant dense<0xFF800000> : vector<2xf32>
    %35 = vector.multi_reduction <maximumf>, %34, %cst_27 [1] : vector<2x8xf32> to vector<2xf32>
    %36 = vector.shape_cast %35 : vector<2xf32> to vector<2x1xf32>
    %37 = vector.broadcast %36 : vector<2x1xf32> to vector<2x8xf32>
    %38 = arith.subf %34, %37 : vector<2x8xf32>
    %39 = math.exp %38 : vector<2x8xf32>
    %cst_28 = arith.constant dense<0.000000e+00> : vector<2xf32>
    %40 = vector.multi_reduction <add>, %39, %cst_28 [1] : vector<2x8xf32> to vector<2xf32>
    %41 = vector.shape_cast %40 : vector<2xf32> to vector<2x1xf32>
    %42 = tpu.reciprocal %41 {approx = true} : vector<2x1xf32> -> vector<2x1xf32>
    %43 = vector.broadcast %42 : vector<2x1xf32> to vector<2x8xf32>
    %44 = arith.mulf %39, %43 : vector<2x8xf32>
    %45 = vector.shape_cast %44 : vector<2x8xf32> to vector<2x1x8xf32>
    "tpu.trace_start"() <{level = 10 : i32, message = "bqs,bsk->bqk"}> : () -> ()
    %cst_29 = arith.constant dense<0.000000e+00> : vector<2x1x64xf32>
    %46 = tpu.matmul %45, %0, %cst_29 {dimension_numbers = #tpu.dot_dimension_numbers<[2], [1], [1], [2], [0, 0, 0, 1, 1, 2], [0], [0]>} : vector<2x1x8xf32>, vector<2x8x64xf32>, vector<2x1x64xf32> -> vector<2x1x64xf32>
    "tpu.trace_stop"() : () -> ()
    %47 = vector.shape_cast %46 : vector<2x1x64xf32> to vector<2x64xf32>
    %cst_30 = arith.constant dense<0.000000e+00> : vector<2x128xf32>
    %48 = tpu.matmul %47, %5, %cst_30 {dimension_numbers = #tpu.dot_dimension_numbers<[1], [0], [0], [1], [0, 0, 1, 1], [], []>} : vector<2x64xf32>, vector<64x128xf32>, vector<2x128xf32> -> vector<2x128xf32>
    %c0_31 = arith.constant 0 : index
    %c0_32 = arith.constant 0 : index
    %49 = vector.load %arg10[%c0_31, %c0_32] : memref<16x128xf32, #tpu.memory_space<vmem>>, vector<2x128xf32>
    %50 = arith.addf %49, %48 : vector<2x128xf32>
    %c0_33 = arith.constant 0 : index
    %c0_34 = arith.constant 0 : index
    %51 = vector.load %arg11[%c0_33, %c0_34] : memref<16x128xf32, #tpu.memory_space<vmem>>, vector<2x128xf32>
    tpu.vector_store %arg11[%c0_33, %c0_34], %50 {strides = array<i32>} : memref<16x128xf32, #tpu.memory_space<vmem>>, vector<2x128xf32>,
    %52 = vector.extract_strided_slice %50 {offsets = [0, 0], sizes = [2, 64], strides = [1, 1]} : vector<2x128xf32> to vector<2x64xf32>
    %53 = vector.extract_strided_slice %26 {offsets = [0, 0], sizes = [2, 64], strides = [1, 1]} : vector<2x128xf32> to vector<2x64xf32>
    %54 = arith.addf %52, %53 : vector<2x64xf32>
    %55 = arith.negf %54 : vector<2x64xf32>
    %56 = math.exp %55 : vector<2x64xf32>
    %cst_35 = arith.constant 1.000000e+00 : f32
    %57 = vector.broadcast %cst_35 : f32 to vector<2x64xf32>
    %58 = arith.addf %57, %56 : vector<2x64xf32>
    %59 = arith.divf %57, %58 : vector<2x64xf32>
    %60 = vector.extract_strided_slice %59 {offsets = [0, 0], sizes = [2, 32], strides = [1, 1]} : vector<2x64xf32> to vector<2x32xf32>
    %61 = vector.extract_strided_slice %59 {offsets = [0, 32], sizes = [2, 32], strides = [1, 1]} : vector<2x64xf32> to vector<2x32xf32>
    %62 = vector.extract_strided_slice %50 {offsets = [0, 64], sizes = [2, 32], strides = [1, 1]} : vector<2x128xf32> to vector<2x32xf32>
    %63 = vector.extract_strided_slice %26 {offsets = [0, 64], sizes = [2, 32], strides = [1, 1]} : vector<2x128xf32> to vector<2x32xf32>
    %64 = arith.mulf %60, %63 : vector<2x32xf32>
    %65 = arith.addf %62, %64 : vector<2x32xf32>
    %66 = math.tanh %65 : vector<2x32xf32>
    %cst_36 = arith.constant 1.000000e+00 : f32
    %67 = vector.broadcast %cst_36 : f32 to vector<2x32xf32>
    %68 = arith.subf %67, %61 : vector<2x32xf32>
    %69 = arith.mulf %68, %66 : vector<2x32xf32>
    %70 = arith.mulf %61, %24 : vector<2x32xf32>
    %71 = arith.addf %69, %70 : vector<2x32xf32>
    %c0_37 = arith.constant 0 : index
    %c0_38 = arith.constant 0 : index
    %72 = vector.load %arg12[%c0_37, %c0_38] : memref<16x32xf32, #tpu.memory_space<vmem>>, vector<2x32xf32>
    tpu.vector_store %arg12[%c0_37, %c0_38], %71 {strides = array<i32>} : memref<16x32xf32, #tpu.memory_space<vmem>>, vector<2x32xf32>,
    %cst_39 = arith.constant dense<0.000000e+00> : vector<2x128xf32>
    %73 = tpu.matmul %71, %2, %cst_39 {dimension_numbers = #tpu.dot_dimension_numbers<[1], [0], [0], [1], [0, 0, 1, 1], [], []>} : vector<2x32xf32>, vector<32x128xf32>, vector<2x128xf32> -> vector<2x128xf32>
    %74 = arith.addf %73, %9 : vector<2x128xf32>
    %75 = vector.extract_strided_slice %74 {offsets = [0, 96], sizes = [2, 32], strides = [1, 1]} : vector<2x128xf32> to vector<2x32xf32>
    %76 = vector.shape_cast %75 : vector<2x32xf32> to vector<2x1x32xf32>
    %77 = vector.broadcast %76 : vector<2x1x32xf32> to vector<2x8x32xf32>
    %78 = arith.addf %23, %77 : vector<2x8x32xf32>
    %79 = math.tanh %78 : vector<2x8x32xf32>
    %80 = arith.mulf %79, %13 : vector<2x8x32xf32>
    %cst_40 = arith.constant dense<0.000000e+00> : vector<2x8xf32>
    %81 = vector.multi_reduction <add>, %80, %cst_40 [2] : vector<2x8x32xf32> to vector<2x8xf32>
    %82 = arith.addf %81, %1 : vector<2x8xf32>
    %cst_41 = arith.constant dense<0xFF800000> : vector<2xf32>
    %83 = vector.multi_reduction <maximumf>, %82, %cst_41 [1] : vector<2x8xf32> to vector<2xf32>
    %84 = vector.shape_cast %83 : vector<2xf32> to vector<2x1xf32>
    %85 = vector.broadcast %84 : vector<2x1xf32> to vector<2x8xf32>
    %86 = arith.subf %82, %85 : vector<2x8xf32>
    %87 = math.exp %86 : vector<2x8xf32>
    %cst_42 = arith.constant dense<0.000000e+00> : vector<2xf32>
    %88 = vector.multi_reduction <add>, %87, %cst_42 [1] : vector<2x8xf32> to vector<2xf32>
    %89 = vector.shape_cast %88 : vector<2xf32> to vector<2x1xf32>
    %90 = tpu.reciprocal %89 {approx = true} : vector<2x1xf32> -> vector<2x1xf32>
    %91 = vector.broadcast %90 : vector<2x1xf32> to vector<2x8xf32>
    %92 = arith.mulf %87, %91 : vector<2x8xf32>
    %93 = vector.shape_cast %92 : vector<2x8xf32> to vector<2x1x8xf32>
    "tpu.trace_start"() <{level = 10 : i32, message = "bqs,bsk->bqk"}> : () -> ()
    %cst_43 = arith.constant dense<0.000000e+00> : vector<2x1x64xf32>
    %94 = tpu.matmul %93, %0, %cst_43 {dimension_numbers = #tpu.dot_dimension_numbers<[2], [1], [1], [2], [0, 0, 0, 1, 1, 2], [0], [0]>} : vector<2x1x8xf32>, vector<2x8x64xf32>, vector<2x1x64xf32> -> vector<2x1x64xf32>
    "tpu.trace_stop"() : () -> ()
    %95 = vector.shape_cast %94 : vector<2x1x64xf32> to vector<2x64xf32>
    %cst_44 = arith.constant dense<0.000000e+00> : vector<2x128xf32>
    %96 = tpu.matmul %95, %5, %cst_44 {dimension_numbers = #tpu.dot_dimension_numbers<[1], [0], [0], [1], [0, 0, 1, 1], [], []>} : vector<2x64xf32>, vector<64x128xf32>, vector<2x128xf32> -> vector<2x128xf32>
    %c2_45 = arith.constant 2 : index
    %c0_46 = arith.constant 0 : index
    %97 = vector.load %arg10[%c2_45, %c0_46] : memref<16x128xf32, #tpu.memory_space<vmem>>, vector<2x128xf32>
    %98 = arith.addf %97, %96 : vector<2x128xf32>
    %c2_47 = arith.constant 2 : index
    %c0_48 = arith.constant 0 : index
    %99 = vector.load %arg11[%c2_47, %c0_48] : memref<16x128xf32, #tpu.memory_space<vmem>>, vector<2x128xf32>
    tpu.vector_store %arg11[%c2_47, %c0_48], %98 {strides = array<i32>} : memref<16x128xf32, #tpu.memory_space<vmem>>, vector<2x128xf32>,
    %100 = vector.extract_strided_slice %98 {offsets = [0, 0], sizes = [2, 64], strides = [1, 1]} : vector<2x128xf32> to vector<2x64xf32>
    %101 = vector.extract_strided_slice %74 {offsets = [0, 0], sizes = [2, 64], strides = [1, 1]} : vector<2x128xf32> to vector<2x64xf32>
    %102 = arith.addf %100, %101 : vector<2x64xf32>
    %103 = arith.negf %102 : vector<2x64xf32>
    %104 = math.exp %103 : vector<2x64xf32>
    %cst_49 = arith.constant 1.000000e+00 : f32
    %105 = vector.broadcast %cst_49 : f32 to vector<2x64xf32>
    %106 = arith.addf %105, %104 : vector<2x64xf32>
    %107 = arith.divf %105, %106 : vector<2x64xf32>
    %108 = vector.extract_strided_slice %107 {offsets = [0, 0], sizes = [2, 32], strides = [1, 1]} : vector<2x64xf32> to vector<2x32xf32>
    %109 = vector.extract_strided_slice %107 {offsets = [0, 32], sizes = [2, 32], strides = [1, 1]} : vector<2x64xf32> to vector<2x32xf32>
    %110 = vector.extract_strided_slice %98 {offsets = [0, 64], sizes = [2, 32], strides = [1, 1]} : vector<2x128xf32> to vector<2x32xf32>
    %111 = vector.extract_strided_slice %74 {offsets = [0, 64], sizes = [2, 32], strides = [1, 1]} : vector<2x128xf32> to vector<2x32xf32>
    %112 = arith.mulf %108, %111 : vector<2x32xf32>
    %113 = arith.addf %110, %112 : vector<2x32xf32>
    %114 = math.tanh %113 : vector<2x32xf32>
    %cst_50 = arith.constant 1.000000e+00 : f32
    %115 = vector.broadcast %cst_50 : f32 to vector<2x32xf32>
    %116 = arith.subf %115, %109 : vector<2x32xf32>
    %117 = arith.mulf %116, %114 : vector<2x32xf32>
    %118 = arith.mulf %109, %71 : vector<2x32xf32>
    %119 = arith.addf %117, %118 : vector<2x32xf32>
    %c2_51 = arith.constant 2 : index
    %c0_52 = arith.constant 0 : index
    %120 = vector.load %arg12[%c2_51, %c0_52] : memref<16x32xf32, #tpu.memory_space<vmem>>, vector<2x32xf32>
    tpu.vector_store %arg12[%c2_51, %c0_52], %119 {strides = array<i32>} : memref<16x32xf32, #tpu.memory_space<vmem>>, vector<2x32xf32>,
    %cst_53 = arith.constant dense<0.000000e+00> : vector<2x128xf32>
    %121 = tpu.matmul %119, %2, %cst_53 {dimension_numbers = #tpu.dot_dimension_numbers<[1], [0], [0], [1], [0, 0, 1, 1], [], []>} : vector<2x32xf32>, vector<32x128xf32>, vector<2x128xf32> -> vector<2x128xf32>
    %122 = arith.addf %121, %9 : vector<2x128xf32>
    %123 = vector.extract_strided_slice %122 {offsets = [0, 96], sizes = [2, 32], strides = [1, 1]} : vector<2x128xf32> to vector<2x32xf32>
    %124 = vector.shape_cast %123 : vector<2x32xf32> to vector<2x1x32xf32>
    %125 = vector.broadcast %124 : vector<2x1x32xf32> to vector<2x8x32xf32>
    %126 = arith.addf %23, %125 : vector<2x8x32xf32>
    %127 = math.tanh %126 : vector<2x8x32xf32>
    %128 = arith.mulf %127, %13 : vector<2x8x32xf32>
    %cst_54 = arith.constant dense<0.000000e+00> : vector<2x8xf32>
    %129 = vector.multi_reduction <add>, %128, %cst_54 [2] : vector<2x8x32xf32> to vector<2x8xf32>
    %130 = arith.addf %129, %1 : vector<2x8xf32>
    %cst_55 = arith.constant dense<0xFF800000> : vector<2xf32>
    %131 = vector.multi_reduction <maximumf>, %130, %cst_55 [1] : vector<2x8xf32> to vector<2xf32>
    %132 = vector.shape_cast %131 : vector<2xf32> to vector<2x1xf32>
    %133 = vector.broadcast %132 : vector<2x1xf32> to vector<2x8xf32>
    %134 = arith.subf %130, %133 : vector<2x8xf32>
    %135 = math.exp %134 : vector<2x8xf32>
    %cst_56 = arith.constant dense<0.000000e+00> : vector<2xf32>
    %136 = vector.multi_reduction <add>, %135, %cst_56 [1] : vector<2x8xf32> to vector<2xf32>
    %137 = vector.shape_cast %136 : vector<2xf32> to vector<2x1xf32>
    %138 = tpu.reciprocal %137 {approx = true} : vector<2x1xf32> -> vector<2x1xf32>
    %139 = vector.broadcast %138 : vector<2x1xf32> to vector<2x8xf32>
    %140 = arith.mulf %135, %139 : vector<2x8xf32>
    %141 = vector.shape_cast %140 : vector<2x8xf32> to vector<2x1x8xf32>
    "tpu.trace_start"() <{level = 10 : i32, message = "bqs,bsk->bqk"}> : () -> ()
    %cst_57 = arith.constant dense<0.000000e+00> : vector<2x1x64xf32>
    %142 = tpu.matmul %141, %0, %cst_57 {dimension_numbers = #tpu.dot_dimension_numbers<[2], [1], [1], [2], [0, 0, 0, 1, 1, 2], [0], [0]>} : vector<2x1x8xf32>, vector<2x8x64xf32>, vector<2x1x64xf32> -> vector<2x1x64xf32>
    "tpu.trace_stop"() : () -> ()
    %143 = vector.shape_cast %142 : vector<2x1x64xf32> to vector<2x64xf32>
    %cst_58 = arith.constant dense<0.000000e+00> : vector<2x128xf32>
    %144 = tpu.matmul %143, %5, %cst_58 {dimension_numbers = #tpu.dot_dimension_numbers<[1], [0], [0], [1], [0, 0, 1, 1], [], []>} : vector<2x64xf32>, vector<64x128xf32>, vector<2x128xf32> -> vector<2x128xf32>
    %c4 = arith.constant 4 : index
    %c0_59 = arith.constant 0 : index
    %145 = vector.load %arg10[%c4, %c0_59] : memref<16x128xf32, #tpu.memory_space<vmem>>, vector<2x128xf32>
    %146 = arith.addf %145, %144 : vector<2x128xf32>
    %c4_60 = arith.constant 4 : index
    %c0_61 = arith.constant 0 : index
    %147 = vector.load %arg11[%c4_60, %c0_61] : memref<16x128xf32, #tpu.memory_space<vmem>>, vector<2x128xf32>
    tpu.vector_store %arg11[%c4_60, %c0_61], %146 {strides = array<i32>} : memref<16x128xf32, #tpu.memory_space<vmem>>, vector<2x128xf32>,
    %148 = vector.extract_strided_slice %146 {offsets = [0, 0], sizes = [2, 64], strides = [1, 1]} : vector<2x128xf32> to vector<2x64xf32>
    %149 = vector.extract_strided_slice %122 {offsets = [0, 0], sizes = [2, 64], strides = [1, 1]} : vector<2x128xf32> to vector<2x64xf32>
    %150 = arith.addf %148, %149 : vector<2x64xf32>
    %151 = arith.negf %150 : vector<2x64xf32>
    %152 = math.exp %151 : vector<2x64xf32>
    %cst_62 = arith.constant 1.000000e+00 : f32
    %153 = vector.broadcast %cst_62 : f32 to vector<2x64xf32>
    %154 = arith.addf %153, %152 : vector<2x64xf32>
    %155 = arith.divf %153, %154 : vector<2x64xf32>
    %156 = vector.extract_strided_slice %155 {offsets = [0, 0], sizes = [2, 32], strides = [1, 1]} : vector<2x64xf32> to vector<2x32xf32>
    %157 = vector.extract_strided_slice %155 {offsets = [0, 32], sizes = [2, 32], strides = [1, 1]} : vector<2x64xf32> to vector<2x32xf32>
    %158 = vector.extract_strided_slice %146 {offsets = [0, 64], sizes = [2, 32], strides = [1, 1]} : vector<2x128xf32> to vector<2x32xf32>
    %159 = vector.extract_strided_slice %122 {offsets = [0, 64], sizes = [2, 32], strides = [1, 1]} : vector<2x128xf32> to vector<2x32xf32>
    %160 = arith.mulf %156, %159 : vector<2x32xf32>
    %161 = arith.addf %158, %160 : vector<2x32xf32>
    %162 = math.tanh %161 : vector<2x32xf32>
    %cst_63 = arith.constant 1.000000e+00 : f32
    %163 = vector.broadcast %cst_63 : f32 to vector<2x32xf32>
    %164 = arith.subf %163, %157 : vector<2x32xf32>
    %165 = arith.mulf %164, %162 : vector<2x32xf32>
    %166 = arith.mulf %157, %119 : vector<2x32xf32>
    %167 = arith.addf %165, %166 : vector<2x32xf32>
    %c4_64 = arith.constant 4 : index
    %c0_65 = arith.constant 0 : index
    %168 = vector.load %arg12[%c4_64, %c0_65] : memref<16x32xf32, #tpu.memory_space<vmem>>, vector<2x32xf32>
    tpu.vector_store %arg12[%c4_64, %c0_65], %167 {strides = array<i32>} : memref<16x32xf32, #tpu.memory_space<vmem>>, vector<2x32xf32>,
    %cst_66 = arith.constant dense<0.000000e+00> : vector<2x128xf32>
    %169 = tpu.matmul %167, %2, %cst_66 {dimension_numbers = #tpu.dot_dimension_numbers<[1], [0], [0], [1], [0, 0, 1, 1], [], []>} : vector<2x32xf32>, vector<32x128xf32>, vector<2x128xf32> -> vector<2x128xf32>
    %170 = arith.addf %169, %9 : vector<2x128xf32>
    %171 = vector.extract_strided_slice %170 {offsets = [0, 96], sizes = [2, 32], strides = [1, 1]} : vector<2x128xf32> to vector<2x32xf32>
    %172 = vector.shape_cast %171 : vector<2x32xf32> to vector<2x1x32xf32>
    %173 = vector.broadcast %172 : vector<2x1x32xf32> to vector<2x8x32xf32>
    %174 = arith.addf %23, %173 : vector<2x8x32xf32>
    %175 = math.tanh %174 : vector<2x8x32xf32>
    %176 = arith.mulf %175, %13 : vector<2x8x32xf32>
    %cst_67 = arith.constant dense<0.000000e+00> : vector<2x8xf32>
    %177 = vector.multi_reduction <add>, %176, %cst_67 [2] : vector<2x8x32xf32> to vector<2x8xf32>
    %178 = arith.addf %177, %1 : vector<2x8xf32>
    %cst_68 = arith.constant dense<0xFF800000> : vector<2xf32>
    %179 = vector.multi_reduction <maximumf>, %178, %cst_68 [1] : vector<2x8xf32> to vector<2xf32>
    %180 = vector.shape_cast %179 : vector<2xf32> to vector<2x1xf32>
    %181 = vector.broadcast %180 : vector<2x1xf32> to vector<2x8xf32>
    %182 = arith.subf %178, %181 : vector<2x8xf32>
    %183 = math.exp %182 : vector<2x8xf32>
    %cst_69 = arith.constant dense<0.000000e+00> : vector<2xf32>
    %184 = vector.multi_reduction <add>, %183, %cst_69 [1] : vector<2x8xf32> to vector<2xf32>
    %185 = vector.shape_cast %184 : vector<2xf32> to vector<2x1xf32>
    %186 = tpu.reciprocal %185 {approx = true} : vector<2x1xf32> -> vector<2x1xf32>
    %187 = vector.broadcast %186 : vector<2x1xf32> to vector<2x8xf32>
    %188 = arith.mulf %183, %187 : vector<2x8xf32>
    %189 = vector.shape_cast %188 : vector<2x8xf32> to vector<2x1x8xf32>
    "tpu.trace_start"() <{level = 10 : i32, message = "bqs,bsk->bqk"}> : () -> ()
    %cst_70 = arith.constant dense<0.000000e+00> : vector<2x1x64xf32>
    %190 = tpu.matmul %189, %0, %cst_70 {dimension_numbers = #tpu.dot_dimension_numbers<[2], [1], [1], [2], [0, 0, 0, 1, 1, 2], [0], [0]>} : vector<2x1x8xf32>, vector<2x8x64xf32>, vector<2x1x64xf32> -> vector<2x1x64xf32>
    "tpu.trace_stop"() : () -> ()
    %191 = vector.shape_cast %190 : vector<2x1x64xf32> to vector<2x64xf32>
    %cst_71 = arith.constant dense<0.000000e+00> : vector<2x128xf32>
    %192 = tpu.matmul %191, %5, %cst_71 {dimension_numbers = #tpu.dot_dimension_numbers<[1], [0], [0], [1], [0, 0, 1, 1], [], []>} : vector<2x64xf32>, vector<64x128xf32>, vector<2x128xf32> -> vector<2x128xf32>
    %c6 = arith.constant 6 : index
    %c0_72 = arith.constant 0 : index
    %193 = vector.load %arg10[%c6, %c0_72] : memref<16x128xf32, #tpu.memory_space<vmem>>, vector<2x128xf32>
    %194 = arith.addf %193, %192 : vector<2x128xf32>
    %c6_73 = arith.constant 6 : index
    %c0_74 = arith.constant 0 : index
    %195 = vector.load %arg11[%c6_73, %c0_74] : memref<16x128xf32, #tpu.memory_space<vmem>>, vector<2x128xf32>
    tpu.vector_store %arg11[%c6_73, %c0_74], %194 {strides = array<i32>} : memref<16x128xf32, #tpu.memory_space<vmem>>, vector<2x128xf32>,
    %196 = vector.extract_strided_slice %194 {offsets = [0, 0], sizes = [2, 64], strides = [1, 1]} : vector<2x128xf32> to vector<2x64xf32>
    %197 = vector.extract_strided_slice %170 {offsets = [0, 0], sizes = [2, 64], strides = [1, 1]} : vector<2x128xf32> to vector<2x64xf32>
    %198 = arith.addf %196, %197 : vector<2x64xf32>
    %199 = arith.negf %198 : vector<2x64xf32>
    %200 = math.exp %199 : vector<2x64xf32>
    %cst_75 = arith.constant 1.000000e+00 : f32
    %201 = vector.broadcast %cst_75 : f32 to vector<2x64xf32>
    %202 = arith.addf %201, %200 : vector<2x64xf32>
    %203 = arith.divf %201, %202 : vector<2x64xf32>
    %204 = vector.extract_strided_slice %203 {offsets = [0, 0], sizes = [2, 32], strides = [1, 1]} : vector<2x64xf32> to vector<2x32xf32>
    %205 = vector.extract_strided_slice %203 {offsets = [0, 32], sizes = [2, 32], strides = [1, 1]} : vector<2x64xf32> to vector<2x32xf32>
    %206 = vector.extract_strided_slice %194 {offsets = [0, 64], sizes = [2, 32], strides = [1, 1]} : vector<2x128xf32> to vector<2x32xf32>
    %207 = vector.extract_strided_slice %170 {offsets = [0, 64], sizes = [2, 32], strides = [1, 1]} : vector<2x128xf32> to vector<2x32xf32>
    %208 = arith.mulf %204, %207 : vector<2x32xf32>
    %209 = arith.addf %206, %208 : vector<2x32xf32>
    %210 = math.tanh %209 : vector<2x32xf32>
    %cst_76 = arith.constant 1.000000e+00 : f32
    %211 = vector.broadcast %cst_76 : f32 to vector<2x32xf32>
    %212 = arith.subf %211, %205 : vector<2x32xf32>
    %213 = arith.mulf %212, %210 : vector<2x32xf32>
    %214 = arith.mulf %205, %167 : vector<2x32xf32>
    %215 = arith.addf %213, %214 : vector<2x32xf32>
    %c6_77 = arith.constant 6 : index
    %c0_78 = arith.constant 0 : index
    %216 = vector.load %arg12[%c6_77, %c0_78] : memref<16x32xf32, #tpu.memory_space<vmem>>, vector<2x32xf32>
    tpu.vector_store %arg12[%c6_77, %c0_78], %215 {strides = array<i32>} : memref<16x32xf32, #tpu.memory_space<vmem>>, vector<2x32xf32>,
    %cst_79 = arith.constant dense<0.000000e+00> : vector<2x128xf32>
    %217 = tpu.matmul %215, %2, %cst_79 {dimension_numbers = #tpu.dot_dimension_numbers<[1], [0], [0], [1], [0, 0, 1, 1], [], []>} : vector<2x32xf32>, vector<32x128xf32>, vector<2x128xf32> -> vector<2x128xf32>
    %218 = arith.addf %217, %9 : vector<2x128xf32>
    %219 = vector.extract_strided_slice %218 {offsets = [0, 96], sizes = [2, 32], strides = [1, 1]} : vector<2x128xf32> to vector<2x32xf32>
    %220 = vector.shape_cast %219 : vector<2x32xf32> to vector<2x1x32xf32>
    %221 = vector.broadcast %220 : vector<2x1x32xf32> to vector<2x8x32xf32>
    %222 = arith.addf %23, %221 : vector<2x8x32xf32>
    %223 = math.tanh %222 : vector<2x8x32xf32>
    %224 = arith.mulf %223, %13 : vector<2x8x32xf32>
    %cst_80 = arith.constant dense<0.000000e+00> : vector<2x8xf32>
    %225 = vector.multi_reduction <add>, %224, %cst_80 [2] : vector<2x8x32xf32> to vector<2x8xf32>
    %226 = arith.addf %225, %1 : vector<2x8xf32>
    %cst_81 = arith.constant dense<0xFF800000> : vector<2xf32>
    %227 = vector.multi_reduction <maximumf>, %226, %cst_81 [1] : vector<2x8xf32> to vector<2xf32>
    %228 = vector.shape_cast %227 : vector<2xf32> to vector<2x1xf32>
    %229 = vector.broadcast %228 : vector<2x1xf32> to vector<2x8xf32>
    %230 = arith.subf %226, %229 : vector<2x8xf32>
    %231 = math.exp %230 : vector<2x8xf32>
    %cst_82 = arith.constant dense<0.000000e+00> : vector<2xf32>
    %232 = vector.multi_reduction <add>, %231, %cst_82 [1] : vector<2x8xf32> to vector<2xf32>
    %233 = vector.shape_cast %232 : vector<2xf32> to vector<2x1xf32>
    %234 = tpu.reciprocal %233 {approx = true} : vector<2x1xf32> -> vector<2x1xf32>
    %235 = vector.broadcast %234 : vector<2x1xf32> to vector<2x8xf32>
    %236 = arith.mulf %231, %235 : vector<2x8xf32>
    %237 = vector.shape_cast %236 : vector<2x8xf32> to vector<2x1x8xf32>
    "tpu.trace_start"() <{level = 10 : i32, message = "bqs,bsk->bqk"}> : () -> ()
    %cst_83 = arith.constant dense<0.000000e+00> : vector<2x1x64xf32>
    %238 = tpu.matmul %237, %0, %cst_83 {dimension_numbers = #tpu.dot_dimension_numbers<[2], [1], [1], [2], [0, 0, 0, 1, 1, 2], [0], [0]>} : vector<2x1x8xf32>, vector<2x8x64xf32>, vector<2x1x64xf32> -> vector<2x1x64xf32>
    "tpu.trace_stop"() : () -> ()
    %239 = vector.shape_cast %238 : vector<2x1x64xf32> to vector<2x64xf32>
    %cst_84 = arith.constant dense<0.000000e+00> : vector<2x128xf32>
    %240 = tpu.matmul %239, %5, %cst_84 {dimension_numbers = #tpu.dot_dimension_numbers<[1], [0], [0], [1], [0, 0, 1, 1], [], []>} : vector<2x64xf32>, vector<64x128xf32>, vector<2x128xf32> -> vector<2x128xf32>
    %c8 = arith.constant 8 : index
    %c0_85 = arith.constant 0 : index
    %241 = vector.load %arg10[%c8, %c0_85] : memref<16x128xf32, #tpu.memory_space<vmem>>, vector<2x128xf32>
    %242 = arith.addf %241, %240 : vector<2x128xf32>
    %c8_86 = arith.constant 8 : index
    %c0_87 = arith.constant 0 : index
    %243 = vector.load %arg11[%c8_86, %c0_87] : memref<16x128xf32, #tpu.memory_space<vmem>>, vector<2x128xf32>
    tpu.vector_store %arg11[%c8_86, %c0_87], %242 {strides = array<i32>} : memref<16x128xf32, #tpu.memory_space<vmem>>, vector<2x128xf32>,
    %244 = vector.extract_strided_slice %242 {offsets = [0, 0], sizes = [2, 64], strides = [1, 1]} : vector<2x128xf32> to vector<2x64xf32>
    %245 = vector.extract_strided_slice %218 {offsets = [0, 0], sizes = [2, 64], strides = [1, 1]} : vector<2x128xf32> to vector<2x64xf32>
    %246 = arith.addf %244, %245 : vector<2x64xf32>
    %247 = arith.negf %246 : vector<2x64xf32>
    %248 = math.exp %247 : vector<2x64xf32>
    %cst_88 = arith.constant 1.000000e+00 : f32
    %249 = vector.broadcast %cst_88 : f32 to vector<2x64xf32>
    %250 = arith.addf %249, %248 : vector<2x64xf32>
    %251 = arith.divf %249, %250 : vector<2x64xf32>
    %252 = vector.extract_strided_slice %251 {offsets = [0, 0], sizes = [2, 32], strides = [1, 1]} : vector<2x64xf32> to vector<2x32xf32>
    %253 = vector.extract_strided_slice %251 {offsets = [0, 32], sizes = [2, 32], strides = [1, 1]} : vector<2x64xf32> to vector<2x32xf32>
    %254 = vector.extract_strided_slice %242 {offsets = [0, 64], sizes = [2, 32], strides = [1, 1]} : vector<2x128xf32> to vector<2x32xf32>
    %255 = vector.extract_strided_slice %218 {offsets = [0, 64], sizes = [2, 32], strides = [1, 1]} : vector<2x128xf32> to vector<2x32xf32>
    %256 = arith.mulf %252, %255 : vector<2x32xf32>
    %257 = arith.addf %254, %256 : vector<2x32xf32>
    %258 = math.tanh %257 : vector<2x32xf32>
    %cst_89 = arith.constant 1.000000e+00 : f32
    %259 = vector.broadcast %cst_89 : f32 to vector<2x32xf32>
    %260 = arith.subf %259, %253 : vector<2x32xf32>
    %261 = arith.mulf %260, %258 : vector<2x32xf32>
    %262 = arith.mulf %253, %215 : vector<2x32xf32>
    %263 = arith.addf %261, %262 : vector<2x32xf32>
    %c8_90 = arith.constant 8 : index
    %c0_91 = arith.constant 0 : index
    %264 = vector.load %arg12[%c8_90, %c0_91] : memref<16x32xf32, #tpu.memory_space<vmem>>, vector<2x32xf32>
    tpu.vector_store %arg12[%c8_90, %c0_91], %263 {strides = array<i32>} : memref<16x32xf32, #tpu.memory_space<vmem>>, vector<2x32xf32>,
    %cst_92 = arith.constant dense<0.000000e+00> : vector<2x128xf32>
    %265 = tpu.matmul %263, %2, %cst_92 {dimension_numbers = #tpu.dot_dimension_numbers<[1], [0], [0], [1], [0, 0, 1, 1], [], []>} : vector<2x32xf32>, vector<32x128xf32>, vector<2x128xf32> -> vector<2x128xf32>
    %266 = arith.addf %265, %9 : vector<2x128xf32>
    %267 = vector.extract_strided_slice %266 {offsets = [0, 96], sizes = [2, 32], strides = [1, 1]} : vector<2x128xf32> to vector<2x32xf32>
    %268 = vector.shape_cast %267 : vector<2x32xf32> to vector<2x1x32xf32>
    %269 = vector.broadcast %268 : vector<2x1x32xf32> to vector<2x8x32xf32>
    %270 = arith.addf %23, %269 : vector<2x8x32xf32>
    %271 = math.tanh %270 : vector<2x8x32xf32>
    %272 = arith.mulf %271, %13 : vector<2x8x32xf32>
    %cst_93 = arith.constant dense<0.000000e+00> : vector<2x8xf32>
    %273 = vector.multi_reduction <add>, %272, %cst_93 [2] : vector<2x8x32xf32> to vector<2x8xf32>
    %274 = arith.addf %273, %1 : vector<2x8xf32>
    %cst_94 = arith.constant dense<0xFF800000> : vector<2xf32>
    %275 = vector.multi_reduction <maximumf>, %274, %cst_94 [1] : vector<2x8xf32> to vector<2xf32>
    %276 = vector.shape_cast %275 : vector<2xf32> to vector<2x1xf32>
    %277 = vector.broadcast %276 : vector<2x1xf32> to vector<2x8xf32>
    %278 = arith.subf %274, %277 : vector<2x8xf32>
    %279 = math.exp %278 : vector<2x8xf32>
    %cst_95 = arith.constant dense<0.000000e+00> : vector<2xf32>
    %280 = vector.multi_reduction <add>, %279, %cst_95 [1] : vector<2x8xf32> to vector<2xf32>
    %281 = vector.shape_cast %280 : vector<2xf32> to vector<2x1xf32>
    %282 = tpu.reciprocal %281 {approx = true} : vector<2x1xf32> -> vector<2x1xf32>
    %283 = vector.broadcast %282 : vector<2x1xf32> to vector<2x8xf32>
    %284 = arith.mulf %279, %283 : vector<2x8xf32>
    %285 = vector.shape_cast %284 : vector<2x8xf32> to vector<2x1x8xf32>
    "tpu.trace_start"() <{level = 10 : i32, message = "bqs,bsk->bqk"}> : () -> ()
    %cst_96 = arith.constant dense<0.000000e+00> : vector<2x1x64xf32>
    %286 = tpu.matmul %285, %0, %cst_96 {dimension_numbers = #tpu.dot_dimension_numbers<[2], [1], [1], [2], [0, 0, 0, 1, 1, 2], [0], [0]>} : vector<2x1x8xf32>, vector<2x8x64xf32>, vector<2x1x64xf32> -> vector<2x1x64xf32>
    "tpu.trace_stop"() : () -> ()
    %287 = vector.shape_cast %286 : vector<2x1x64xf32> to vector<2x64xf32>
    %cst_97 = arith.constant dense<0.000000e+00> : vector<2x128xf32>
    %288 = tpu.matmul %287, %5, %cst_97 {dimension_numbers = #tpu.dot_dimension_numbers<[1], [0], [0], [1], [0, 0, 1, 1], [], []>} : vector<2x64xf32>, vector<64x128xf32>, vector<2x128xf32> -> vector<2x128xf32>
    %c10 = arith.constant 10 : index
    %c0_98 = arith.constant 0 : index
    %289 = vector.load %arg10[%c10, %c0_98] : memref<16x128xf32, #tpu.memory_space<vmem>>, vector<2x128xf32>
    %290 = arith.addf %289, %288 : vector<2x128xf32>
    %c10_99 = arith.constant 10 : index
    %c0_100 = arith.constant 0 : index
    %291 = vector.load %arg11[%c10_99, %c0_100] : memref<16x128xf32, #tpu.memory_space<vmem>>, vector<2x128xf32>
    tpu.vector_store %arg11[%c10_99, %c0_100], %290 {strides = array<i32>} : memref<16x128xf32, #tpu.memory_space<vmem>>, vector<2x128xf32>,
    %292 = vector.extract_strided_slice %290 {offsets = [0, 0], sizes = [2, 64], strides = [1, 1]} : vector<2x128xf32> to vector<2x64xf32>
    %293 = vector.extract_strided_slice %266 {offsets = [0, 0], sizes = [2, 64], strides = [1, 1]} : vector<2x128xf32> to vector<2x64xf32>
    %294 = arith.addf %292, %293 : vector<2x64xf32>
    %295 = arith.negf %294 : vector<2x64xf32>
    %296 = math.exp %295 : vector<2x64xf32>
    %cst_101 = arith.constant 1.000000e+00 : f32
    %297 = vector.broadcast %cst_101 : f32 to vector<2x64xf32>
    %298 = arith.addf %297, %296 : vector<2x64xf32>
    %299 = arith.divf %297, %298 : vector<2x64xf32>
    %300 = vector.extract_strided_slice %299 {offsets = [0, 0], sizes = [2, 32], strides = [1, 1]} : vector<2x64xf32> to vector<2x32xf32>
    %301 = vector.extract_strided_slice %299 {offsets = [0, 32], sizes = [2, 32], strides = [1, 1]} : vector<2x64xf32> to vector<2x32xf32>
    %302 = vector.extract_strided_slice %290 {offsets = [0, 64], sizes = [2, 32], strides = [1, 1]} : vector<2x128xf32> to vector<2x32xf32>
    %303 = vector.extract_strided_slice %266 {offsets = [0, 64], sizes = [2, 32], strides = [1, 1]} : vector<2x128xf32> to vector<2x32xf32>
    %304 = arith.mulf %300, %303 : vector<2x32xf32>
    %305 = arith.addf %302, %304 : vector<2x32xf32>
    %306 = math.tanh %305 : vector<2x32xf32>
    %cst_102 = arith.constant 1.000000e+00 : f32
    %307 = vector.broadcast %cst_102 : f32 to vector<2x32xf32>
    %308 = arith.subf %307, %301 : vector<2x32xf32>
    %309 = arith.mulf %308, %306 : vector<2x32xf32>
    %310 = arith.mulf %301, %263 : vector<2x32xf32>
    %311 = arith.addf %309, %310 : vector<2x32xf32>
    %c10_103 = arith.constant 10 : index
    %c0_104 = arith.constant 0 : index
    %312 = vector.load %arg12[%c10_103, %c0_104] : memref<16x32xf32, #tpu.memory_space<vmem>>, vector<2x32xf32>
    tpu.vector_store %arg12[%c10_103, %c0_104], %311 {strides = array<i32>} : memref<16x32xf32, #tpu.memory_space<vmem>>, vector<2x32xf32>,
    %cst_105 = arith.constant dense<0.000000e+00> : vector<2x128xf32>
    %313 = tpu.matmul %311, %2, %cst_105 {dimension_numbers = #tpu.dot_dimension_numbers<[1], [0], [0], [1], [0, 0, 1, 1], [], []>} : vector<2x32xf32>, vector<32x128xf32>, vector<2x128xf32> -> vector<2x128xf32>
    %314 = arith.addf %313, %9 : vector<2x128xf32>
    %315 = vector.extract_strided_slice %314 {offsets = [0, 96], sizes = [2, 32], strides = [1, 1]} : vector<2x128xf32> to vector<2x32xf32>
    %316 = vector.shape_cast %315 : vector<2x32xf32> to vector<2x1x32xf32>
    %317 = vector.broadcast %316 : vector<2x1x32xf32> to vector<2x8x32xf32>
    %318 = arith.addf %23, %317 : vector<2x8x32xf32>
    %319 = math.tanh %318 : vector<2x8x32xf32>
    %320 = arith.mulf %319, %13 : vector<2x8x32xf32>
    %cst_106 = arith.constant dense<0.000000e+00> : vector<2x8xf32>
    %321 = vector.multi_reduction <add>, %320, %cst_106 [2] : vector<2x8x32xf32> to vector<2x8xf32>
    %322 = arith.addf %321, %1 : vector<2x8xf32>
    %cst_107 = arith.constant dense<0xFF800000> : vector<2xf32>
    %323 = vector.multi_reduction <maximumf>, %322, %cst_107 [1] : vector<2x8xf32> to vector<2xf32>
    %324 = vector.shape_cast %323 : vector<2xf32> to vector<2x1xf32>
    %325 = vector.broadcast %324 : vector<2x1xf32> to vector<2x8xf32>
    %326 = arith.subf %322, %325 : vector<2x8xf32>
    %327 = math.exp %326 : vector<2x8xf32>
    %cst_108 = arith.constant dense<0.000000e+00> : vector<2xf32>
    %328 = vector.multi_reduction <add>, %327, %cst_108 [1] : vector<2x8xf32> to vector<2xf32>
    %329 = vector.shape_cast %328 : vector<2xf32> to vector<2x1xf32>
    %330 = tpu.reciprocal %329 {approx = true} : vector<2x1xf32> -> vector<2x1xf32>
    %331 = vector.broadcast %330 : vector<2x1xf32> to vector<2x8xf32>
    %332 = arith.mulf %327, %331 : vector<2x8xf32>
    %333 = vector.shape_cast %332 : vector<2x8xf32> to vector<2x1x8xf32>
    "tpu.trace_start"() <{level = 10 : i32, message = "bqs,bsk->bqk"}> : () -> ()
    %cst_109 = arith.constant dense<0.000000e+00> : vector<2x1x64xf32>
    %334 = tpu.matmul %333, %0, %cst_109 {dimension_numbers = #tpu.dot_dimension_numbers<[2], [1], [1], [2], [0, 0, 0, 1, 1, 2], [0], [0]>} : vector<2x1x8xf32>, vector<2x8x64xf32>, vector<2x1x64xf32> -> vector<2x1x64xf32>
    "tpu.trace_stop"() : () -> ()
    %335 = vector.shape_cast %334 : vector<2x1x64xf32> to vector<2x64xf32>
    %cst_110 = arith.constant dense<0.000000e+00> : vector<2x128xf32>
    %336 = tpu.matmul %335, %5, %cst_110 {dimension_numbers = #tpu.dot_dimension_numbers<[1], [0], [0], [1], [0, 0, 1, 1], [], []>} : vector<2x64xf32>, vector<64x128xf32>, vector<2x128xf32> -> vector<2x128xf32>
    %c12 = arith.constant 12 : index
    %c0_111 = arith.constant 0 : index
    %337 = vector.load %arg10[%c12, %c0_111] : memref<16x128xf32, #tpu.memory_space<vmem>>, vector<2x128xf32>
    %338 = arith.addf %337, %336 : vector<2x128xf32>
    %c12_112 = arith.constant 12 : index
    %c0_113 = arith.constant 0 : index
    %339 = vector.load %arg11[%c12_112, %c0_113] : memref<16x128xf32, #tpu.memory_space<vmem>>, vector<2x128xf32>
    tpu.vector_store %arg11[%c12_112, %c0_113], %338 {strides = array<i32>} : memref<16x128xf32, #tpu.memory_space<vmem>>, vector<2x128xf32>,
    %340 = vector.extract_strided_slice %338 {offsets = [0, 0], sizes = [2, 64], strides = [1, 1]} : vector<2x128xf32> to vector<2x64xf32>
    %341 = vector.extract_strided_slice %314 {offsets = [0, 0], sizes = [2, 64], strides = [1, 1]} : vector<2x128xf32> to vector<2x64xf32>
    %342 = arith.addf %340, %341 : vector<2x64xf32>
    %343 = arith.negf %342 : vector<2x64xf32>
    %344 = math.exp %343 : vector<2x64xf32>
    %cst_114 = arith.constant 1.000000e+00 : f32
    %345 = vector.broadcast %cst_114 : f32 to vector<2x64xf32>
    %346 = arith.addf %345, %344 : vector<2x64xf32>
    %347 = arith.divf %345, %346 : vector<2x64xf32>
    %348 = vector.extract_strided_slice %347 {offsets = [0, 0], sizes = [2, 32], strides = [1, 1]} : vector<2x64xf32> to vector<2x32xf32>
    %349 = vector.extract_strided_slice %347 {offsets = [0, 32], sizes = [2, 32], strides = [1, 1]} : vector<2x64xf32> to vector<2x32xf32>
    %350 = vector.extract_strided_slice %338 {offsets = [0, 64], sizes = [2, 32], strides = [1, 1]} : vector<2x128xf32> to vector<2x32xf32>
    %351 = vector.extract_strided_slice %314 {offsets = [0, 64], sizes = [2, 32], strides = [1, 1]} : vector<2x128xf32> to vector<2x32xf32>
    %352 = arith.mulf %348, %351 : vector<2x32xf32>
    %353 = arith.addf %350, %352 : vector<2x32xf32>
    %354 = math.tanh %353 : vector<2x32xf32>
    %cst_115 = arith.constant 1.000000e+00 : f32
    %355 = vector.broadcast %cst_115 : f32 to vector<2x32xf32>
    %356 = arith.subf %355, %349 : vector<2x32xf32>
    %357 = arith.mulf %356, %354 : vector<2x32xf32>
    %358 = arith.mulf %349, %311 : vector<2x32xf32>
    %359 = arith.addf %357, %358 : vector<2x32xf32>
    %c12_116 = arith.constant 12 : index
    %c0_117 = arith.constant 0 : index
    %360 = vector.load %arg12[%c12_116, %c0_117] : memref<16x32xf32, #tpu.memory_space<vmem>>, vector<2x32xf32>
    tpu.vector_store %arg12[%c12_116, %c0_117], %359 {strides = array<i32>} : memref<16x32xf32, #tpu.memory_space<vmem>>, vector<2x32xf32>,
    %cst_118 = arith.constant dense<0.000000e+00> : vector<2x128xf32>
    %361 = tpu.matmul %359, %2, %cst_118 {dimension_numbers = #tpu.dot_dimension_numbers<[1], [0], [0], [1], [0, 0, 1, 1], [], []>} : vector<2x32xf32>, vector<32x128xf32>, vector<2x128xf32> -> vector<2x128xf32>
    %362 = arith.addf %361, %9 : vector<2x128xf32>
    %363 = vector.extract_strided_slice %362 {offsets = [0, 96], sizes = [2, 32], strides = [1, 1]} : vector<2x128xf32> to vector<2x32xf32>
    %364 = vector.shape_cast %363 : vector<2x32xf32> to vector<2x1x32xf32>
    %365 = vector.broadcast %364 : vector<2x1x32xf32> to vector<2x8x32xf32>
    %366 = arith.addf %23, %365 : vector<2x8x32xf32>
    %367 = math.tanh %366 : vector<2x8x32xf32>
    %368 = arith.mulf %367, %13 : vector<2x8x32xf32>
    %cst_119 = arith.constant dense<0.000000e+00> : vector<2x8xf32>
    %369 = vector.multi_reduction <add>, %368, %cst_119 [2] : vector<2x8x32xf32> to vector<2x8xf32>
    %370 = arith.addf %369, %1 : vector<2x8xf32>
    %cst_120 = arith.constant dense<0xFF800000> : vector<2xf32>
    %371 = vector.multi_reduction <maximumf>, %370, %cst_120 [1] : vector<2x8xf32> to vector<2xf32>
    %372 = vector.shape_cast %371 : vector<2xf32> to vector<2x1xf32>
    %373 = vector.broadcast %372 : vector<2x1xf32> to vector<2x8xf32>
    %374 = arith.subf %370, %373 : vector<2x8xf32>
    %375 = math.exp %374 : vector<2x8xf32>
    %cst_121 = arith.constant dense<0.000000e+00> : vector<2xf32>
    %376 = vector.multi_reduction <add>, %375, %cst_121 [1] : vector<2x8xf32> to vector<2xf32>
    %377 = vector.shape_cast %376 : vector<2xf32> to vector<2x1xf32>
    %378 = tpu.reciprocal %377 {approx = true} : vector<2x1xf32> -> vector<2x1xf32>
    %379 = vector.broadcast %378 : vector<2x1xf32> to vector<2x8xf32>
    %380 = arith.mulf %375, %379 : vector<2x8xf32>
    %381 = vector.shape_cast %380 : vector<2x8xf32> to vector<2x1x8xf32>
    "tpu.trace_start"() <{level = 10 : i32, message = "bqs,bsk->bqk"}> : () -> ()
    %cst_122 = arith.constant dense<0.000000e+00> : vector<2x1x64xf32>
    %382 = tpu.matmul %381, %0, %cst_122 {dimension_numbers = #tpu.dot_dimension_numbers<[2], [1], [1], [2], [0, 0, 0, 1, 1, 2], [0], [0]>} : vector<2x1x8xf32>, vector<2x8x64xf32>, vector<2x1x64xf32> -> vector<2x1x64xf32>
    "tpu.trace_stop"() : () -> ()
    %383 = vector.shape_cast %382 : vector<2x1x64xf32> to vector<2x64xf32>
    %cst_123 = arith.constant dense<0.000000e+00> : vector<2x128xf32>
    %384 = tpu.matmul %383, %5, %cst_123 {dimension_numbers = #tpu.dot_dimension_numbers<[1], [0], [0], [1], [0, 0, 1, 1], [], []>} : vector<2x64xf32>, vector<64x128xf32>, vector<2x128xf32> -> vector<2x128xf32>
    %c14 = arith.constant 14 : index
    %c0_124 = arith.constant 0 : index
    %385 = vector.load %arg10[%c14, %c0_124] : memref<16x128xf32, #tpu.memory_space<vmem>>, vector<2x128xf32>
    %386 = arith.addf %385, %384 : vector<2x128xf32>
    %c14_125 = arith.constant 14 : index
    %c0_126 = arith.constant 0 : index
    %387 = vector.load %arg11[%c14_125, %c0_126] : memref<16x128xf32, #tpu.memory_space<vmem>>, vector<2x128xf32>
    tpu.vector_store %arg11[%c14_125, %c0_126], %386 {strides = array<i32>} : memref<16x128xf32, #tpu.memory_space<vmem>>, vector<2x128xf32>,
    %388 = vector.extract_strided_slice %386 {offsets = [0, 0], sizes = [2, 64], strides = [1, 1]} : vector<2x128xf32> to vector<2x64xf32>
    %389 = vector.extract_strided_slice %362 {offsets = [0, 0], sizes = [2, 64], strides = [1, 1]} : vector<2x128xf32> to vector<2x64xf32>
    %390 = arith.addf %388, %389 : vector<2x64xf32>
    %391 = arith.negf %390 : vector<2x64xf32>
    %392 = math.exp %391 : vector<2x64xf32>
    %cst_127 = arith.constant 1.000000e+00 : f32
    %393 = vector.broadcast %cst_127 : f32 to vector<2x64xf32>
    %394 = arith.addf %393, %392 : vector<2x64xf32>
    %395 = arith.divf %393, %394 : vector<2x64xf32>
    %396 = vector.extract_strided_slice %395 {offsets = [0, 0], sizes = [2, 32], strides = [1, 1]} : vector<2x64xf32> to vector<2x32xf32>
    %397 = vector.extract_strided_slice %395 {offsets = [0, 32], sizes = [2, 32], strides = [1, 1]} : vector<2x64xf32> to vector<2x32xf32>
    %398 = vector.extract_strided_slice %386 {offsets = [0, 64], sizes = [2, 32], strides = [1, 1]} : vector<2x128xf32> to vector<2x32xf32>
    %399 = vector.extract_strided_slice %362 {offsets = [0, 64], sizes = [2, 32], strides = [1, 1]} : vector<2x128xf32> to vector<2x32xf32>
    %400 = arith.mulf %396, %399 : vector<2x32xf32>
    %401 = arith.addf %398, %400 : vector<2x32xf32>
    %402 = math.tanh %401 : vector<2x32xf32>
    %cst_128 = arith.constant 1.000000e+00 : f32
    %403 = vector.broadcast %cst_128 : f32 to vector<2x32xf32>
    %404 = arith.subf %403, %397 : vector<2x32xf32>
    %405 = arith.mulf %404, %402 : vector<2x32xf32>
    %406 = arith.mulf %397, %359 : vector<2x32xf32>
    %407 = arith.addf %405, %406 : vector<2x32xf32>
    %c14_129 = arith.constant 14 : index
    %c0_130 = arith.constant 0 : index
    %408 = vector.load %arg12[%c14_129, %c0_130] : memref<16x32xf32, #tpu.memory_space<vmem>>, vector<2x32xf32>
    tpu.vector_store %arg12[%c14_129, %c0_130], %407 {strides = array<i32>} : memref<16x32xf32, #tpu.memory_space<vmem>>, vector<2x32xf32>,
    %c0_131 = arith.constant 0 : index
    %c0_132 = arith.constant 0 : index
    %409 = vector.load %arg11[%c0_131, %c0_132] : memref<16x128xf32, #tpu.memory_space<vmem>>, vector<16x128xf32>
    %410 = vector.extract_strided_slice %409 {offsets = [0, 96], sizes = [16, 32], strides = [1, 1]} : vector<16x128xf32> to vector<16x32xf32>
    %c0_133 = arith.constant 0 : index
    %c0_134 = arith.constant 0 : index
    %411 = vector.load %arg12[%c0_133, %c0_134] : memref<16x32xf32, #tpu.memory_space<vmem>>, vector<16x32xf32>
    %cst_135 = arith.constant dense<0.000000e+00> : vector<16x32xf32>
    %412 = tpu.matmul %411, %4, %cst_135 {dimension_numbers = #tpu.dot_dimension_numbers<[1], [0], [0], [1], [0, 0, 1, 1], [], []>} : vector<16x32xf32>, vector<32x32xf32>, vector<16x32xf32> -> vector<16x32xf32>
    %413 = arith.addf %410, %412 : vector<16x32xf32>
    %cst_136 = arith.constant dense<0.000000e+00> : vector<16x128xf32>
    %414 = tpu.matmul %413, %3, %cst_136 {dimension_numbers = #tpu.dot_dimension_numbers<[1], [0], [0], [1], [0, 0, 1, 1], [], []>} : vector<16x32xf32>, vector<32x128xf32>, vector<16x128xf32> -> vector<16x128xf32>
    %c0_137 = arith.constant 0 : index
    %c0_138 = arith.constant 0 : index
    %415 = vector.load %arg9[%c0_137, %c0_138] : memref<16x128xf32, #tpu.memory_space<vmem>>, vector<16x128xf32>
    tpu.vector_store %arg9[%c0_137, %c0_138], %414 {strides = array<i32>} : memref<16x128xf32, #tpu.memory_space<vmem>>, vector<16x128xf32>,
    return
  }
  func.func @transform_0(%arg0: i32) -> (i32, i32) {
    %c0_i32 = arith.constant 0 : i32
    %c0_i32_0 = arith.constant 0 : i32
    %c0_i32_1 = arith.constant 0 : i32
    return %c0_i32, %c0_i32_0 : i32, i32
  }
  func.func @transform_1(%arg0: i32) -> (i32, i32, i32) {
    %c0_i32 = arith.constant 0 : i32
    %c0_i32_0 = arith.constant 0 : i32
    %c0_i32_1 = arith.constant 0 : i32
    %c0_i32_2 = arith.constant 0 : i32
    return %c0_i32, %c0_i32_0, %c0_i32_1 : i32, i32, i32
  }
  func.func @transform_2(%arg0: i32) -> (i32, i32) {
    %c0_i32 = arith.constant 0 : i32
    %c0_i32_0 = arith.constant 0 : i32
    %c0_i32_1 = arith.constant 0 : i32
    return %c0_i32, %c0_i32_0 : i32, i32
  }
  func.func @transform_3(%arg0: i32) -> (i32, i32) {
    %c0_i32 = arith.constant 0 : i32
    %c0_i32_0 = arith.constant 0 : i32
    %c0_i32_1 = arith.constant 0 : i32
    return %c0_i32, %c0_i32_0 : i32, i32
  }
  func.func @transform_4(%arg0: i32) -> (i32, i32) {
    %c0_i32 = arith.constant 0 : i32
    %c0_i32_0 = arith.constant 0 : i32
    %c0_i32_1 = arith.constant 0 : i32
    return %c0_i32, %c0_i32_0 : i32, i32
  }
  func.func @transform_5(%arg0: i32) -> (i32, i32) {
    %c0_i32 = arith.constant 0 : i32
    %c0_i32_0 = arith.constant 0 : i32
    %c0_i32_1 = arith.constant 0 : i32
    return %c0_i32, %c0_i32_0 : i32, i32
  }
  func.func @transform_6(%arg0: i32) -> (i32, i32) {
    %c0_i32 = arith.constant 0 : i32
    %c0_i32_0 = arith.constant 0 : i32
    %c0_i32_1 = arith.constant 0 : i32
    return %c0_i32, %c0_i32_0 : i32, i32
  }
  func.func @transform_7(%arg0: i32) -> (i32, i32) {
    %c0_i32 = arith.constant 0 : i32
    %c0_i32_0 = arith.constant 0 : i32
    %c0_i32_1 = arith.constant 0 : i32
    return %c0_i32, %c0_i32_0 : i32, i32
  }
  func.func @transform_8(%arg0: i32) -> (i32, i32) {
    %c0_i32 = arith.constant 0 : i32
    %c0_i32_0 = arith.constant 0 : i32
    %c0_i32_1 = arith.constant 0 : i32
    return %c0_i32, %c0_i32_0 : i32, i32
  }
}

</mosaic_0001>

<llo_original>
// kernel: tpu_custom_call.1
$region0: #{tpu_custom_call.1}
  #allocation0 [shape = 'u32[]', space=smem, size = 0x4, offset = 0x4, fixed_abs, tag = 'smem constant byte address 0x4 - core index']
  #allocation1 [shape = 'u32[144,128]{1,0:T(1,128)}', space=vmem, size = 0x12000, scoped, tag = 'internal scratch']
  #allocation2 [shape = 'f32[16,128]{1,0:T(8,128)}', space=vmem, size = 0x2000, scoped, tag = 'scratch operand']
  #allocation3 [shape = 'f32[16,128]{1,0:T(8,128)}', space=vmem, size = 0x2000, scoped, tag = 'scratch operand']
  #allocation4 [shape = 'f32[16,32]{1,0:T(8,128)}', space=vmem, size = 0x2000, scoped, tag = 'scratch operand']
  %s0 = inlined_call_operand.hbm [shape: f32[16,32], index: 0, kind: input, shape index: {}]
  %s1 = inlined_call_operand.hbm [shape: f32[2,8,64], index: 1, kind: input, shape index: {}]
  %s2 = inlined_call_operand.vmem [shape: f32[2,8], index: 2, kind: input, shape index: {}]
  %s3 = inlined_call_operand.vmem [shape: f32[2,32], index: 3, kind: input, shape index: {}]
  %s4 = inlined_call_operand.hbm [shape: f32[32,128], index: 4, kind: input, shape index: {}]
  %s5 = inlined_call_operand.hbm [shape: f32[32,288], index: 5, kind: input, shape index: {}]
  %s6 = inlined_call_operand.hbm [shape: f32[64,160], index: 6, kind: input, shape index: {}]
  %s7 = inlined_call_operand.vmem [shape: f32[3,128], index: 7, kind: input, shape index: {}]
  %s8 = inlined_call_operand.hbm [shape: f32[16,128], index: 8, kind: output, shape index: {}]
  %s9 = sld [smem:[#allocation0]]
  $region62: #{tpu_custom_call.1} parent=0
    _
  %s11 = ssub.s32 1, %s9
  %s12 = scalar_select 0, %s11, %s9
  $region1: #{tpu_custom_call.1} parent=0
    #allocation5 [shape = 'u8[8192]{0}', space=vmem, size = 0x2000, scoped, tag = 'input window, operand 0, single buffered']
    #allocation6 [shape = 's32[1]{0}', space=sflag, size = 0x4, scoped, tag = 'scoped memory for tpu_custom_call.1']
    #allocation7 [shape = 's32[1]{0}', space=sflag, size = 0x4, scoped, tag = 'scoped memory for tpu_custom_call.1']
    #allocation8 [shape = 'u8[8192]{0}', space=vmem, size = 0x2000, scoped, tag = 'input window, operand 1, single buffered']
    #allocation9 [shape = 's32[1]{0}', space=sflag, size = 0x4, scoped, tag = 'scoped memory for tpu_custom_call.1']
    #allocation10 [shape = 'u8[16384]{0}', space=vmem, size = 0x4000, scoped, tag = 'input window, operand 4, single buffered']
    #allocation11 [shape = 'u8[49152]{0}', space=vmem, size = 0xc000, scoped, tag = 'input window, operand 5, single buffered']
    #allocation12 [shape = 's32[1]{0}', space=sflag, size = 0x4, scoped, tag = 'scoped memory for tpu_custom_call.1']
    #allocation13 [shape = 'u8[65536]{0}', space=vmem, size = 0x10000, scoped, tag = 'input window, operand 6, single buffered']
    #allocation14 [shape = 'u8[8192]{0}', space=vmem, size = 0x2000, scoped, tag = 'output window, operand 0, single buffered']
    %13 = vsyncpa [#allocation6], 0
    %14 = vsyncpa [#allocation9], 0
    %15 = vsyncpa [#allocation12], 0
    %16 = vsyncpa [#allocation7], 0
    // Predicated region
    $region2: #{tpu_custom_call.1} parent=1 // pred_check
      _
    $region3: #{tpu_custom_call.1} parent=1 // pred_check_branch
      %18 = sbr.rel (0) target = $region5
    $region4: #{tpu_custom_call.1} parent=1 // pred_region
      %s20 = ssub.s32 256, 256
      %21 = vsyncadd [#allocation6], %s20
      %s22 = sshll.u32 [#allocation5], 4
      %s23 = int_to_ptr.vmem [resolvable:$true] %s22
      %28 = dma.hbm_to_vmem [thread:$0]  %s0, 256, %s23, [#allocation6], 128, 128, 8
    $region5: #{tpu_custom_call.1} parent=1 // pred_fallthru
      _
    // Predicated region
    $region6: #{tpu_custom_call.1} parent=1 // pred_check
      _
    $region7: #{tpu_custom_call.1} parent=1 // pred_check_branch
      %30 = sbr.rel (0) target = $region9
    $region8: #{tpu_custom_call.1} parent=1 // pred_region
      %s32 = ssub.s32 256, 256
      %33 = vsyncadd [#allocation9], %s32
      %s34 = sshll.u32 [#allocation8], 4
      %s35 = int_to_ptr.vmem [resolvable:$true] %s34
      %40 = dma.hbm_to_vmem [thread:$0]  %s1, 256, %s35, [#allocation9], 128, 128, 8
    $region9: #{tpu_custom_call.1} parent=1 // pred_fallthru
      _
    // Predicated region
    $region10: #{tpu_custom_call.1} parent=1 // pred_check
      _
    $region11: #{tpu_custom_call.1} parent=1 // pred_check_branch
      %42 = sbr.rel (0) target = $region13
    $region12: #{tpu_custom_call.1} parent=1 // pred_region
      _
    $region13: #{tpu_custom_call.1} parent=1 // pred_fallthru
      _
    // Predicated region
    $region14: #{tpu_custom_call.1} parent=1 // pred_check
      _
    $region15: #{tpu_custom_call.1} parent=1 // pred_check_branch
      %44 = sbr.rel (0) target = $region17
    $region16: #{tpu_custom_call.1} parent=1 // pred_region
      _
    $region17: #{tpu_custom_call.1} parent=1 // pred_fallthru
      _
    // Predicated region
    $region18: #{tpu_custom_call.1} parent=1 // pred_check
      _
    $region19: #{tpu_custom_call.1} parent=1 // pred_check_branch
      %46 = sbr.rel (0) target = $region21
    $region20: #{tpu_custom_call.1} parent=1 // pred_region
      %s48 = ssub.s32 512, 512
      %49 = vsyncadd [#allocation9], %s48
      %s50 = sshll.u32 [#allocation10], 4
      %s51 = int_to_ptr.vmem [resolvable:$true] %s50
      %56 = dma.hbm_to_vmem [thread:$0]  %s4, 512, %s51, [#allocation9], 128, 128, 8
    $region21: #{tpu_custom_call.1} parent=1 // pred_fallthru
      _
    // Predicated region
    $region22: #{tpu_custom_call.1} parent=1 // pred_check
      _
    $region23: #{tpu_custom_call.1} parent=1 // pred_check_branch
      %58 = sbr.rel (0) target = $region25
    $region24: #{tpu_custom_call.1} parent=1 // pred_region
      %s60 = ssub.s32 1536, 1536
      %61 = vsyncadd [#allocation12], %s60
      %s62 = sshll.u32 [#allocation11], 4
      %s63 = int_to_ptr.vmem [resolvable:$true] %s62
      %68 = dma.hbm_to_vmem [thread:$0]  %s5, 1536, %s63, [#allocation12], 384, 384, 24
    $region25: #{tpu_custom_call.1} parent=1 // pred_fallthru
      _
    // Predicated region
    $region26: #{tpu_custom_call.1} parent=1 // pred_check
      _
    $region27: #{tpu_custom_call.1} parent=1 // pred_check_branch
      %70 = sbr.rel (0) target = $region29
    $region28: #{tpu_custom_call.1} parent=1 // pred_region
      %s72 = ssub.s32 2048, 2048
      %73 = vsyncadd [#allocation12], %s72
      %s74 = sshll.u32 [#allocation13], 4
      %s75 = int_to_ptr.vmem [resolvable:$true] %s74
      %80 = dma.hbm_to_vmem [thread:$0]  %s6, 2048, %s75, [#allocation12], 256, 256, 16
    $region29: #{tpu_custom_call.1} parent=1 // pred_fallthru
      _
    // Predicated region
    $region30: #{tpu_custom_call.1} parent=1 // pred_check
      _
    $region31: #{tpu_custom_call.1} parent=1 // pred_check_branch
      %82 = sbr.rel (0) target = $region33
    $region32: #{tpu_custom_call.1} parent=1 // pred_region
      _
    $region33: #{tpu_custom_call.1} parent=1 // pred_fallthru
      _
    // Predicated region
    $region34: #{tpu_custom_call.1} parent=1 // pred_check
      _
    $region35: #{tpu_custom_call.1} parent=1 // pred_check_branch
      %84 = sbr.rel (0) target = $region37
    $region36: #{tpu_custom_call.1} parent=1 // pred_region
      %85 = dma.done [#allocation6], 256
    $region37: #{tpu_custom_call.1} parent=1 // pred_fallthru
      _
    // Predicated region
    $region38: #{tpu_custom_call.1} parent=1 // pred_check
      _
    $region39: #{tpu_custom_call.1} parent=1 // pred_check_branch
      %87 = sbr.rel (0) target = $region41
    $region40: #{tpu_custom_call.1} parent=1 // pred_region
      %88 = dma.done [#allocation9], 256
    $region41: #{tpu_custom_call.1} parent=1 // pred_fallthru
      _
    // Predicated region
    $region42: #{tpu_custom_call.1} parent=1 // pred_check
      _
    $region43: #{tpu_custom_call.1} parent=1 // pred_check_branch
      %90 = sbr.rel (0) target = $region45
    $region44: #{tpu_custom_call.1} parent=1 // pred_region
      %91 = dma.done [#allocation9], 512
    $region45: #{tpu_custom_call.1} parent=1 // pred_fallthru
      _
    // Predicated region
    $region46: #{tpu_custom_call.1} parent=1 // pred_check
      _
    $region47: #{tpu_custom_call.1} parent=1 // pred_check_branch
      %93 = sbr.rel (0) target = $region49
    $region48: #{tpu_custom_call.1} parent=1 // pred_region
      %94 = dma.done [#allocation12], 1536
    $region49: #{tpu_custom_call.1} parent=1 // pred_fallthru
      _
    // Predicated region
    $region50: #{tpu_custom_call.1} parent=1 // pred_check
      _
    $region51: #{tpu_custom_call.1} parent=1 // pred_check_branch
      %96 = sbr.rel (0) target = $region53
    $region52: #{tpu_custom_call.1} parent=1 // pred_region
      %97 = dma.done [#allocation12], 2048
    $region53: #{tpu_custom_call.1} parent=1 // pred_fallthru
      _
    %v98 = vld [vmem:[#allocation8] sm:$0xff]
    %v99 = vld [vmem:[#allocation8 + $0x8] sm:$0xff]
    %v100 = vld [vmem:[%s2] sm:$0x3]
    %v101 = vld [vmem:[#allocation11] sm:$0xff]
    %v102 = vld [vmem:[#allocation11 + $0x18] sm:$0xff]
    %v103 = vld [vmem:[#allocation11 + $0x30] sm:$0xff]
    %v104 = vld [vmem:[#allocation11 + $0x48] sm:$0xff]
    %v105 = vld [vmem:[#allocation11 + $0x8] sm:$0xff]
    %v106 = vld [vmem:[#allocation11 + $0x20] sm:$0xff]
    %v107 = vld [vmem:[#allocation11 + $0x38] sm:$0xff]
    %v108 = vld [vmem:[#allocation11 + $0x50] sm:$0xff]
    %v109 = vld [vmem:[#allocation11 + $0x10] sm:$0xff]
    %v110 = vld [vmem:[#allocation11 + $0x28] sm:$0xff]
    %v111 = vld [vmem:[#allocation11 + $0x40] sm:$0xff]
    %v112 = vld [vmem:[#allocation11 + $0x58] sm:$0xff]
    %v113 = vld [vmem:[#allocation13] sm:$0xff]
    %v114 = vld [vmem:[#allocation13 + $0x10] sm:$0xff]
    %v115 = vld [vmem:[#allocation13 + $0x20] sm:$0xff]
    %v116 = vld [vmem:[#allocation13 + $0x30] sm:$0xff]
    %v117 = vld [vmem:[#allocation13 + $0x40] sm:$0xff]
    %v118 = vld [vmem:[#allocation13 + $0x50] sm:$0xff]
    %v119 = vld [vmem:[#allocation13 + $0x60] sm:$0xff]
    %v120 = vld [vmem:[#allocation13 + $0x70] sm:$0xff]
    %v121 = vld [vmem:[#allocation13 + $0x8] sm:$0xff]
    %v122 = vld [vmem:[#allocation13 + $0x18] sm:$0xff]
    %v123 = vld [vmem:[#allocation13 + $0x28] sm:$0xff]
    %v124 = vld [vmem:[#allocation13 + $0x38] sm:$0xff]
    %v125 = vld [vmem:[#allocation13 + $0x48] sm:$0xff]
    %v126 = vld [vmem:[#allocation13 + $0x58] sm:$0xff]
    %v127 = vld [vmem:[#allocation13 + $0x68] sm:$0xff]
    %v128 = vld [vmem:[#allocation13 + $0x78] sm:$0xff]
    %v129 = vld [vmem:[%s7 + $0x1] sm:$0x1]
    %v130 = vlaneseq
    %v131 = vshrl.u32 %v130, 7
    %v132 = vsub.s32 0, %v131
    %v133 = vrot.slane %v129, %v132
    %v134 = vld [vmem:[%s7 + $0x2] sm:$0x1]
    %v135 = vlaneseq
    %v136 = vshrl.u32 %v135, 7
    %v137 = vsub.s32 0, %v136
    %v138 = vrot.slane %v134, %v137
    %v139 = vld [vmem:[#allocation5] sm:$0xff]
    %v140 = vld [vmem:[#allocation5 + $0x8] sm:$0xff]
    %v141 = vld [vmem:[#allocation10] sm:$0xff]
    %v142 = vld [vmem:[#allocation10 + $0x8] sm:$0xff]
    %v143 = vld [vmem:[#allocation10 + $0x10] sm:$0xff]
    %v144 = vld [vmem:[#allocation10 + $0x18] sm:$0xff]
    %v145 = vld [vmem:[%s7] sm:$0x1]
    %v146 = vlaneseq
    %v147 = vshrl.u32 %v146, 7
    %v148 = vsub.s32 0, %v147
    %v149 = vrot.slane %v145, %v148
    %vm150 = vcmask 261120
    %v152 = vsel %vm150, %v139, 0
    %v155 = vsel %vm150, %v140, 0
    %157 = vmatprep.subr.mxu0 0.0
    %158 = vmatpush1.msra.mxu0 %v141
    %159 = vmatprep.subr.mxu0 0.0
    %160 = vmatpush1.msra.mxu0 %v142
    %161 = vmatprep.subr.mxu0 0.0
    %162 = vmatpush1.msra.mxu0 %v143
    %163 = vmatprep.subr.mxu0 0.0
    %164 = vmatpush1.msra.mxu0 %v144
    %165 = vmatprep.subr.mxu0 0.0
    %166 = vmatpush1.msra.mxu0 0.0
    %167 = vmatprep.subr.mxu0 0.0
    %168 = vmatpush1.msra.mxu0 0.0
    %169 = vmatprep.subr.mxu0 0.0
    %170 = vmatpush1.msra.mxu0 0.0
    %171 = vmatprep.subr.mxu0 0.0
    %172 = vmatpush1.msra.mxu0 0.0
    %173 = vmatprep.subr.mxu0 0.0
    %174 = vmatpush1.msra.mxu0 0.0
    %175 = vmatprep.subr.mxu0 0.0
    %176 = vmatpush1.msra.mxu0 0.0
    %177 = vmatprep.subr.mxu0 0.0
    %178 = vmatpush1.msra.mxu0 0.0
    %179 = vmatprep.subr.mxu0 0.0
    %180 = vmatpush1.msra.mxu0 0.0
    %181 = vmatprep.subr.mxu0 0.0
    %182 = vmatpush1.msra.mxu0 0.0
    %183 = vmatprep.subr.mxu0 0.0
    %184 = vmatpush1.msra.mxu0 0.0
    %185 = vmatprep.subr.mxu0 0.0
    %186 = vmatpush1.msra.mxu0 0.0
    %187 = vmatprep.subr.mxu0 0.0
    %188 = vmatpush1.msra.mxu0 0.0
    %189 = vmatprep.subr.mxu0 0.0
    %190 = vmatpush1.msra.mxu0 0.0
    %191 = vmatprep.subr.mxu0 0.0
    %192 = vmatpush1.msra.mxu0 0.0
    %193 = vmatprep.subr.mxu0 0.0
    %194 = vmatpush1.msra.mxu0 0.0
    %195 = vmatprep.subr.mxu0 0.0
    %196 = vmatpush1.msra.mxu0 0.0
    %197 = vmatprep.subr.mxu0 0.0
    %198 = vmatpush1.msra.mxu0 0.0
    %199 = vmatprep.subr.mxu0 0.0
    %200 = vmatpush1.msra.mxu0 0.0
    %201 = vmatprep.subr.mxu0 0.0
    %202 = vmatpush1.msra.mxu0 0.0
    %203 = vmatprep.subr.mxu0 0.0
    %204 = vmatpush1.msra.mxu0 0.0
    %205 = vmatprep.subr.mxu0 0.0
    %206 = vmatpush1.msra.mxu0 0.0
    %207 = vmatprep.subr.mxu0 0.0
    %208 = vmatpush1.msra.mxu0 0.0
    %209 = vmatprep.subr.mxu0 0.0
    %210 = vmatpush1.msra.mxu0 0.0
    %211 = vmatprep.subr.mxu0 0.0
    %212 = vmatpush1.msra.mxu0 0.0
    %213 = vmatprep.subr.mxu0 0.0
    %214 = vmatpush1.msra.mxu0 0.0
    %215 = vmatprep.subr.mxu0 0.0
    %216 = vmatpush1.msra.mxu0 0.0
    %217 = vmatprep.subr.mxu0 0.0
    %218 = vmatpush1.msra.mxu0 0.0
    %219 = vmatprep.subr.mxu0 0.0
    %220 = vmatpush1.msra.mxu0 0.0
    %221 = vmatprep.mubr.f32.mxu0 0.0
    %222 = vmatmul.mubr.f32.gmra.mrb[0].mxu0 %v152
    %v223 = vpop.f32.mrb[0].mxu0
    %v224 = vadd.f32 %v149, %v223
    %v225 = vpop.f32.mrb[0].mxu0
    %226 = vmatprep.mubr.f32.mxu0 0.0
    %227 = vmatmul.mubr.f32.gmra.mrb[0].mxu0 %v155
    %v228 = vpop.f32.mrb[0].mxu0
    %v229 = vadd.f32 %v149, %v228
    %v230 = vpop.f32.mrb[0].mxu0
    %231 = vdwg.mxu0
    %232 = vst [vmem:[#allocation2] sm:$0xff] %v224
    %233 = vst [vmem:[#allocation2 + $0x8] sm:$0xff] %v229
    %vm234 = vcmask 523264
    %v236 = vsel %vm234, %v98, 0
    %v239 = vsel %vm234, %v99, 0
    %241 = vmatprep.subr.mxu0 0.0
    %242 = vmatpush1.msra.mxu0 %v121
    %243 = vmatprep.subr.mxu0 0.0
    %244 = vmatpush1.msra.mxu0 %v122
    %245 = vmatprep.subr.mxu0 0.0
    %246 = vmatpush1.msra.mxu0 %v123
    %247 = vmatprep.subr.mxu0 0.0
    %248 = vmatpush1.msra.mxu0 %v124
    %249 = vmatprep.subr.mxu0 0.0
    %250 = vmatpush1.msra.mxu0 %v125
    %251 = vmatprep.subr.mxu0 0.0
    %252 = vmatpush1.msra.mxu0 %v126
    %253 = vmatprep.subr.mxu0 0.0
    %254 = vmatpush1.msra.mxu0 %v127
    %255 = vmatprep.subr.mxu0 0.0
    %256 = vmatpush1.msra.mxu0 %v128
    %257 = vmatprep.subr.mxu0 0.0
    %258 = vmatpush1.msra.mxu0 0.0
    %259 = vmatprep.subr.mxu0 0.0
    %260 = vmatpush1.msra.mxu0 0.0
    %261 = vmatprep.subr.mxu0 0.0
    %262 = vmatpush1.msra.mxu0 0.0
    %263 = vmatprep.subr.mxu0 0.0
    %264 = vmatpush1.msra.mxu0 0.0
    %265 = vmatprep.subr.mxu0 0.0
    %266 = vmatpush1.msra.mxu0 0.0
    %267 = vmatprep.subr.mxu0 0.0
    %268 = vmatpush1.msra.mxu0 0.0
    %269 = vmatprep.subr.mxu0 0.0
    %270 = vmatpush1.msra.mxu0 0.0
    %271 = vmatprep.subr.mxu0 0.0
    %272 = vmatpush1.msra.mxu0 0.0
    %273 = vmatprep.subr.mxu0 0.0
    %274 = vmatpush1.msra.mxu0 0.0
    %275 = vmatprep.subr.mxu0 0.0
    %276 = vmatpush1.msra.mxu0 0.0
    %277 = vmatprep.subr.mxu0 0.0
    %278 = vmatpush1.msra.mxu0 0.0
    %279 = vmatprep.subr.mxu0 0.0
    %280 = vmatpush1.msra.mxu0 0.0
    %281 = vmatprep.subr.mxu0 0.0
    %282 = vmatpush1.msra.mxu0 0.0
    %283 = vmatprep.subr.mxu0 0.0
    %284 = vmatpush1.msra.mxu0 0.0
    %285 = vmatprep.subr.mxu0 0.0
    %286 = vmatpush1.msra.mxu0 0.0
    %287 = vmatprep.subr.mxu0 0.0
    %288 = vmatpush1.msra.mxu0 0.0
    %289 = vmatprep.subr.mxu0 0.0
    %290 = vmatpush1.msra.mxu0 0.0
    %291 = vmatprep.subr.mxu0 0.0
    %292 = vmatpush1.msra.mxu0 0.0
    %293 = vmatprep.subr.mxu0 0.0
    %294 = vmatpush1.msra.mxu0 0.0
    %295 = vmatprep.subr.mxu0 0.0
    %296 = vmatpush1.msra.mxu0 0.0
    %297 = vmatprep.subr.mxu0 0.0
    %298 = vmatpush1.msra.mxu0 0.0
    %299 = vmatprep.subr.mxu0 0.0
    %300 = vmatpush1.msra.mxu0 0.0
    %301 = vmatprep.subr.mxu0 0.0
    %302 = vmatpush1.msra.mxu0 0.0
    %303 = vmatprep.subr.mxu0 0.0
    %304 = vmatpush1.msra.mxu0 0.0
    %305 = vmatprep.mubr.f32.mxu0 0.0
    %306 = vmatmul.mubr.f32.gmra.mrb[0].mxu0 %v236
    %v307 = vpop.f32.mrb[0].mxu0
    %v308 = vadd.f32 0.0, %v307
    %v309 = vpop.f32.mrb[0].mxu0
    %310 = vmatprep.mubr.f32.mxu0 0.0
    %311 = vmatmul.mubr.f32.gmra.mrb[0].mxu0 %v239
    %v312 = vpop.f32.mrb[0].mxu0
    %v313 = vadd.f32 0.0, %v312
    %v314 = vpop.f32.mrb[0].mxu0
    %315 = vdwg.mxu0
    %v316 = vld [vmem:[%s3] sm:$0x3]
    %v318 = vsel %vm150, %v316, 0
    %320 = vmatprep.subr.mxu0 0.0
    %321 = vmatpush1.msra.mxu0 %v101
    %322 = vmatprep.subr.mxu0 0.0
    %323 = vmatpush1.msra.mxu0 %v102
    %324 = vmatprep.subr.mxu0 0.0
    %325 = vmatpush1.msra.mxu0 %v103
    %326 = vmatprep.subr.mxu0 0.0
    %327 = vmatpush1.msra.mxu0 %v104
    %328 = vmatprep.subr.mxu0 0.0
    %329 = vmatpush1.msra.mxu0 0.0
    %330 = vmatprep.subr.mxu0 0.0
    %331 = vmatpush1.msra.mxu0 0.0
    %332 = vmatprep.subr.mxu0 0.0
    %333 = vmatpush1.msra.mxu0 0.0
    %334 = vmatprep.subr.mxu0 0.0
    %335 = vmatpush1.msra.mxu0 0.0
    %336 = vmatprep.subr.mxu0 0.0
    %337 = vmatpush1.msra.mxu0 0.0
    %338 = vmatprep.subr.mxu0 0.0
    %339 = vmatpush1.msra.mxu0 0.0
    %340 = vmatprep.subr.mxu0 0.0
    %341 = vmatpush1.msra.mxu0 0.0
    %342 = vmatprep.subr.mxu0 0.0
    %343 = vmatpush1.msra.mxu0 0.0
    %344 = vmatprep.subr.mxu0 0.0
    %345 = vmatpush1.msra.mxu0 0.0
    %346 = vmatprep.subr.mxu0 0.0
    %347 = vmatpush1.msra.mxu0 0.0
    %348 = vmatprep.subr.mxu0 0.0
    %349 = vmatpush1.msra.mxu0 0.0
    %350 = vmatprep.subr.mxu0 0.0
    %351 = vmatpush1.msra.mxu0 0.0
    %352 = vmatprep.subr.mxu0 0.0
    %353 = vmatpush1.msra.mxu0 0.0
    %354 = vmatprep.subr.mxu0 0.0
    %355 = vmatpush1.msra.mxu0 0.0
    %356 = vmatprep.subr.mxu0 0.0
    %357 = vmatpush1.msra.mxu0 0.0
    %358 = vmatprep.subr.mxu0 0.0
    %359 = vmatpush1.msra.mxu0 0.0
    %360 = vmatprep.subr.mxu0 0.0
    %361 = vmatpush1.msra.mxu0 0.0
    %362 = vmatprep.subr.mxu0 0.0
    %363 = vmatpush1.msra.mxu0 0.0
    %364 = vmatprep.subr.mxu0 0.0
    %365 = vmatpush1.msra.mxu0 0.0
    %366 = vmatprep.subr.mxu0 0.0
    %367 = vmatpush1.msra.mxu0 0.0
    %368 = vmatprep.subr.mxu0 0.0
    %369 = vmatpush1.msra.mxu0 0.0
    %370 = vmatprep.subr.mxu0 0.0
    %371 = vmatpush1.msra.mxu0 0.0
    %372 = vmatprep.subr.mxu0 0.0
    %373 = vmatpush1.msra.mxu0 0.0
    %374 = vmatprep.subr.mxu0 0.0
    %375 = vmatpush1.msra.mxu0 0.0
    %376 = vmatprep.subr.mxu0 0.0
    %377 = vmatpush1.msra.mxu0 0.0
    %378 = vmatprep.subr.mxu0 0.0
    %379 = vmatpush1.msra.mxu0 0.0
    %380 = vmatprep.subr.mxu0 0.0
    %381 = vmatpush1.msra.mxu0 0.0
    %382 = vmatprep.subr.mxu0 0.0
    %383 = vmatpush1.msra.mxu0 0.0
    %384 = vmatprep.mubr.f32.mxu0 0.0
    %385 = vmatmul.mubr.f32.gmra.mrb[0].mxu0 %v318
    %v386 = vpop.f32.mrb[0].mxu0
    %v387 = vadd.f32 %v133, %v386
    %v388 = vpop.f32.mrb[0].mxu0
    %389 = vdwg.mxu0
    %v392 = vunpack.c.l.s4 1966171168
    %v393 = vunpack.c.0.s8 %v392
    %v394 = vlaneseq
    %v395 = vshrl.u32 %v394, 7
    %v396 = vsub.s32 %v393, %v395
    %v397 = vrot.slane %v387, %v396
    %v398 = vcombine.high %v397, %v397
    %v400 = vunpack.c.l.s4 1966171168
    %v401 = vunpack.c.0.s8 %v400
    %v402 = vlaneseq
    %v403 = vshrl.u32 %v402, 7
    %v404 = vsub.s32 %v401, %v403
    %v405 = vrot.slane %v397, %v404
    %v407 = vunpack.c.l.s4 1966171168
    %v408 = vunpack.c.0.s8 %v407
    %v409 = vlaneseq
    %v410 = vshrl.u32 %v409, 7
    %v411 = vsub.s32 %v408, %v410
    %v412 = vrot.slane %v398, %v411
    %v413 = vlaneseq
    %v414 = vshrl.u32 %v413, 7
    %v415 = vsub.s32 0, %v414
    %v416 = vrot.slane %v405, %v415
    %v417 = vlaneseq
    %v418 = vshrl.u32 %v417, 7
    %v419 = vsub.s32 0, %v418
    %v420 = vrot.slane %v412, %v419
    %421 = vrot.lane.b32.xlu0 %v416, 32
    %v422 = vpop.permute.xlu0 %421
    %423 = vrot.lane.b32.xlu0 %v420, 32
    %v424 = vpop.permute.xlu0 %423
    %v427 = vadd.f32 %v308, %v422
    %v428 = vadd.f32 %v313, %v424
    %v429 = vtanh.pop %v427
    %v430 = vtanh.pop %v428
    %v431 = vmul.f32 %v429, %v138
    %v432 = vmul.f32 %v430, %v138
    %v433 = vsel %vm150, %v431, 0.0
    %434 = vadd.xlane.f32.xlu0 %v433
    %v435 = vpop.xlane.xlu0 %434
    %v436 = vsel %vm150, %v432, 0.0
    %437 = vadd.xlane.f32.xlu0 %v436
    %v438 = vpop.xlane.xlu0 %437
    %v440 = vlaneseq
    %v441 = vshrl.u32 %v440, 7
    %v442 = vsub.s32 0, %v441
    %v443 = vrot.slane %v100, %v442
    %445 = vbcast.lane.b32.xlu0 %v443, 256
    %v446 = vpop.permute.xlu0 %445
    %v447 = vlaneseq
    %v448 = vshrl.u32 %v447, 7
    %v449 = vsub.s32 1, %v448
    %v450 = vrot.slane %v100, %v449
    %452 = vbcast.lane.b32.xlu0 %v450, 256
    %v453 = vpop.permute.xlu0 %452
    %v456 = vadd.f32 %v435, %v446
    %v457 = vadd.f32 %v438, %v453
    %460 = vset.pattern.permute.xlu0 0
    %461 = vperm.xlu0 %460, %v456
    %v462 = vpop.permute.xlu0 %461
    %463 = vset.pattern.permute.xlu0 0
    %464 = vperm.xlu0 %463, %v457
    %v465 = vpop.permute.xlu0 %464
    %v466 = vlaneseq
    %v467 = vand.u32 %v466, 127
    %v468 = vlaneseq
    %v469 = vshrl.u32 %v468, 7
    %v470 = vsub.s32 %v467, %v469
    %v471 = vrot.slane %v462, %v470
    %v472 = vlaneseq
    %v473 = vshrl.u32 %v472, 7
    %v474 = vsub.s32 %v467, %v473
    %v475 = vrot.slane %v465, %v474
    %vm476 = vcmask 1041409
    %v477 = vsel %vm476, %v475, %v471
    %vm479 = vcmask 58368
    %v480 = vsel %vm479, %v477, -inf
    %481 = vmax.xlane.f32.xlu0 %v480
    %v482 = vpop.xlane.xlu0 %481
    %v484 = vlaneseq
    %v485 = vshrl.u32 %v484, 7
    %v486 = vsub.s32 0, %v485
    %v487 = vrot.slane %v482, %v486
    %v488 = vlaneseq
    %v489 = vshrl.u32 %v488, 7
    %v490 = vsub.s32 1, %v489
    %v491 = vrot.slane %v482, %v490
    %v494 = vsub.f32 %v456, %v487
    %v495 = vsub.f32 %v457, %v491
    %v496 = vmul.f32 %v494, 1.442695
    %v497 = vpow.pop %v496
    %v498 = vmul.f32 %v495, 1.442695
    %v499 = vpow.pop %v498
    %502 = vset.pattern.permute.xlu0 0
    %503 = vperm.xlu0 %502, %v497
    %v504 = vpop.permute.xlu0 %503
    %505 = vset.pattern.permute.xlu0 0
    %506 = vperm.xlu0 %505, %v499
    %v507 = vpop.permute.xlu0 %506
    %v508 = vlaneseq
    %v509 = vshrl.u32 %v508, 7
    %v510 = vsub.s32 %v467, %v509
    %v511 = vrot.slane %v504, %v510
    %v512 = vlaneseq
    %v513 = vshrl.u32 %v512, 7
    %v514 = vsub.s32 %v467, %v513
    %v515 = vrot.slane %v507, %v514
    %v516 = vsel %vm476, %v515, %v511
    %v518 = vsel %vm479, %v516, 0.0
    %519 = vadd.xlane.f32.xlu0 %v518
    %v520 = vpop.xlane.xlu0 %519
    %v521 = vrcp.pop %v520
    %v523 = vlaneseq
    %v524 = vshrl.u32 %v523, 7
    %v525 = vsub.s32 0, %v524
    %v526 = vrot.slane %v521, %v525
    %v527 = vlaneseq
    %v528 = vshrl.u32 %v527, 7
    %v529 = vsub.s32 1, %v528
    %v530 = vrot.slane %v521, %v529
    %v533 = vmul.f32 %v497, %v526
    %v534 = vmul.f32 %v499, %v530
    %536 = vset.pattern.permute.xlu0 0
    %537 = vperm.xlu0 %536, %v533
    %v538 = vpop.permute.xlu0 %537
    %v539 = vlaneseq
    %v540 = vshrl.u32 %v539, 7
    %v541 = vsub.s32 %v467, %v540
    %v542 = vrot.slane %v538, %v541
    %vm543 = vcmask 64512
    %v544 = vsel %vm543, %v542, 0
    %546 = vmatprep.subr.mxu0 0.0
    %547 = vmatpush1.msra.mxu0 %v98
    %548 = vmatprep.subr.mxu0 0.0
    %549 = vmatpush1.msra.mxu0 0.0
    %550 = vmatprep.subr.mxu0 0.0
    %551 = vmatpush1.msra.mxu0 0.0
    %552 = vmatprep.subr.mxu0 0.0
    %553 = vmatpush1.msra.mxu0 0.0
    %554 = vmatprep.subr.mxu0 0.0
    %555 = vmatpush1.msra.mxu0 0.0
    %556 = vmatprep.subr.mxu0 0.0
    %557 = vmatpush1.msra.mxu0 0.0
    %558 = vmatprep.subr.mxu0 0.0
    %559 = vmatpush1.msra.mxu0 0.0
    %560 = vmatprep.subr.mxu0 0.0
    %561 = vmatpush1.msra.mxu0 0.0
    %562 = vmatprep.subr.mxu0 0.0
    %563 = vmatpush1.msra.mxu0 0.0
    %564 = vmatprep.subr.mxu0 0.0
    %565 = vmatpush1.msra.mxu0 0.0
    %566 = vmatprep.subr.mxu0 0.0
    %567 = vmatpush1.msra.mxu0 0.0
    %568 = vmatprep.subr.mxu0 0.0
    %569 = vmatpush1.msra.mxu0 0.0
    %570 = vmatprep.subr.mxu0 0.0
    %571 = vmatpush1.msra.mxu0 0.0
    %572 = vmatprep.subr.mxu0 0.0
    %573 = vmatpush1.msra.mxu0 0.0
    %574 = vmatprep.subr.mxu0 0.0
    %575 = vmatpush1.msra.mxu0 0.0
    %576 = vmatprep.subr.mxu0 0.0
    %577 = vmatpush1.msra.mxu0 0.0
    %578 = vmatprep.subr.mxu0 0.0
    %579 = vmatpush1.msra.mxu0 0.0
    %580 = vmatprep.subr.mxu0 0.0
    %581 = vmatpush1.msra.mxu0 0.0
    %582 = vmatprep.subr.mxu0 0.0
    %583 = vmatpush1.msra.mxu0 0.0
    %584 = vmatprep.subr.mxu0 0.0
    %585 = vmatpush1.msra.mxu0 0.0
    %586 = vmatprep.subr.mxu0 0.0
    %587 = vmatpush1.msra.mxu0 0.0
    %588 = vmatprep.subr.mxu0 0.0
    %589 = vmatpush1.msra.mxu0 0.0
    %590 = vmatprep.subr.mxu0 0.0
    %591 = vmatpush1.msra.mxu0 0.0
    %592 = vmatprep.subr.mxu0 0.0
    %593 = vmatpush1.msra.mxu0 0.0
    %594 = vmatprep.subr.mxu0 0.0
    %595 = vmatpush1.msra.mxu0 0.0
    %596 = vmatprep.subr.mxu0 0.0
    %597 = vmatpush1.msra.mxu0 0.0
    %598 = vmatprep.subr.mxu0 0.0
    %599 = vmatpush1.msra.mxu0 0.0
    %600 = vmatprep.subr.mxu0 0.0
    %601 = vmatpush1.msra.mxu0 0.0
    %602 = vmatprep.subr.mxu0 0.0
    %603 = vmatpush1.msra.mxu0 0.0
    %604 = vmatprep.subr.mxu0 0.0
    %605 = vmatpush1.msra.mxu0 0.0
    %606 = vmatprep.subr.mxu0 0.0
    %607 = vmatpush1.msra.mxu0 0.0
    %608 = vmatprep.subr.mxu0 0.0
    %609 = vmatpush1.msra.mxu0 0.0
    %610 = vmatprep.mubr.f32.mxu0 0.0
    %611 = vmatmul.mubr.f32.gmra.mrb[0].mxu0 %v544
    %v612 = vpop.f32.mrb[0].mxu0
    %v613 = vadd.f32 0.0, %v612
    %v614 = vpop.f32.mrb[0].mxu0
    %615 = vdwg.mxu0
    %617 = vset.pattern.permute.xlu0 0
    %618 = vperm.xlu0 %617, %v534
    %v619 = vpop.permute.xlu0 %618
    %v620 = vlaneseq
    %v621 = vshrl.u32 %v620, 7
    %v622 = vsub.s32 %v467, %v621
    %v623 = vrot.slane %v619, %v622
    %v624 = vsel %vm543, %v623, 0
    %626 = vmatprep.subr.mxu0 0.0
    %627 = vmatpush1.msra.mxu0 %v99
    %628 = vmatprep.subr.mxu0 0.0
    %629 = vmatpush1.msra.mxu0 0.0
    %630 = vmatprep.subr.mxu0 0.0
    %631 = vmatpush1.msra.mxu0 0.0
    %632 = vmatprep.subr.mxu0 0.0
    %633 = vmatpush1.msra.mxu0 0.0
    %634 = vmatprep.subr.mxu0 0.0
    %635 = vmatpush1.msra.mxu0 0.0
    %636 = vmatprep.subr.mxu0 0.0
    %637 = vmatpush1.msra.mxu0 0.0
    %638 = vmatprep.subr.mxu0 0.0
    %639 = vmatpush1.msra.mxu0 0.0
    %640 = vmatprep.subr.mxu0 0.0
    %641 = vmatpush1.msra.mxu0 0.0
    %642 = vmatprep.subr.mxu0 0.0
    %643 = vmatpush1.msra.mxu0 0.0
    %644 = vmatprep.subr.mxu0 0.0
    %645 = vmatpush1.msra.mxu0 0.0
    %646 = vmatprep.subr.mxu0 0.0
    %647 = vmatpush1.msra.mxu0 0.0
    %648 = vmatprep.subr.mxu0 0.0
    %649 = vmatpush1.msra.mxu0 0.0
    %650 = vmatprep.subr.mxu0 0.0
    %651 = vmatpush1.msra.mxu0 0.0
    %652 = vmatprep.subr.mxu0 0.0
    %653 = vmatpush1.msra.mxu0 0.0
    %654 = vmatprep.subr.mxu0 0.0
    %655 = vmatpush1.msra.mxu0 0.0
    %656 = vmatprep.subr.mxu0 0.0
    %657 = vmatpush1.msra.mxu0 0.0
    %658 = vmatprep.subr.mxu0 0.0
    %659 = vmatpush1.msra.mxu0 0.0
    %660 = vmatprep.subr.mxu0 0.0
    %661 = vmatpush1.msra.mxu0 0.0
    %662 = vmatprep.subr.mxu0 0.0
    %663 = vmatpush1.msra.mxu0 0.0
    %664 = vmatprep.subr.mxu0 0.0
    %665 = vmatpush1.msra.mxu0 0.0
    %666 = vmatprep.subr.mxu0 0.0
    %667 = vmatpush1.msra.mxu0 0.0
    %668 = vmatprep.subr.mxu0 0.0
    %669 = vmatpush1.msra.mxu0 0.0
    %670 = vmatprep.subr.mxu0 0.0
    %671 = vmatpush1.msra.mxu0 0.0
    %672 = vmatprep.subr.mxu0 0.0
    %673 = vmatpush1.msra.mxu0 0.0
    %674 = vmatprep.subr.mxu0 0.0
    %675 = vmatpush1.msra.mxu0 0.0
    %676 = vmatprep.subr.mxu0 0.0
    %677 = vmatpush1.msra.mxu0 0.0
    %678 = vmatprep.subr.mxu0 0.0
    %679 = vmatpush1.msra.mxu0 0.0
    %680 = vmatprep.subr.mxu0 0.0
    %681 = vmatpush1.msra.mxu0 0.0
    %682 = vmatprep.subr.mxu0 0.0
    %683 = vmatpush1.msra.mxu0 0.0
    %684 = vmatprep.subr.mxu0 0.0
    %685 = vmatpush1.msra.mxu0 0.0
    %686 = vmatprep.subr.mxu0 0.0
    %687 = vmatpush1.msra.mxu0 0.0
    %688 = vmatprep.subr.mxu0 0.0
    %689 = vmatpush1.msra.mxu0 0.0
    %690 = vmatprep.mubr.f32.mxu0 0.0
    %691 = vmatmul.mubr.f32.gmra.mrb[0].mxu0 %v624
    %v692 = vpop.f32.mrb[0].mxu0
    %v693 = vadd.f32 0.0, %v692
    %v694 = vpop.f32.mrb[0].mxu0
    %695 = vdwg.mxu0
    %v698 = vrot.slane %v693, 7
    %v699 = vsel %vm476, %v698, %v613
    %v700 = vsel %vm234, %v699, 0
    %702 = vmatprep.subr.mxu0 0.0
    %703 = vmatpush1.msra.mxu0 %v113
    %704 = vmatprep.subr.mxu0 0.0
    %705 = vmatpush1.msra.mxu0 %v114
    %706 = vmatprep.subr.mxu0 0.0
    %707 = vmatpush1.msra.mxu0 %v115
    %708 = vmatprep.subr.mxu0 0.0
    %709 = vmatpush1.msra.mxu0 %v116
    %710 = vmatprep.subr.mxu0 0.0
    %711 = vmatpush1.msra.mxu0 %v117
    %712 = vmatprep.subr.mxu0 0.0
    %713 = vmatpush1.msra.mxu0 %v118
    %714 = vmatprep.subr.mxu0 0.0
    %715 = vmatpush1.msra.mxu0 %v119
    %716 = vmatprep.subr.mxu0 0.0
    %717 = vmatpush1.msra.mxu0 %v120
    %718 = vmatprep.subr.mxu0 0.0
    %719 = vmatpush1.msra.mxu0 0.0
    %720 = vmatprep.subr.mxu0 0.0
    %721 = vmatpush1.msra.mxu0 0.0
    %722 = vmatprep.subr.mxu0 0.0
    %723 = vmatpush1.msra.mxu0 0.0
    %724 = vmatprep.subr.mxu0 0.0
    %725 = vmatpush1.msra.mxu0 0.0
    %726 = vmatprep.subr.mxu0 0.0
    %727 = vmatpush1.msra.mxu0 0.0
    %728 = vmatprep.subr.mxu0 0.0
    %729 = vmatpush1.msra.mxu0 0.0
    %730 = vmatprep.subr.mxu0 0.0
    %731 = vmatpush1.msra.mxu0 0.0
    %732 = vmatprep.subr.mxu0 0.0
    %733 = vmatpush1.msra.mxu0 0.0
    %734 = vmatprep.subr.mxu0 0.0
    %735 = vmatpush1.msra.mxu0 0.0
    %736 = vmatprep.subr.mxu0 0.0
    %737 = vmatpush1.msra.mxu0 0.0
    %738 = vmatprep.subr.mxu0 0.0
    %739 = vmatpush1.msra.mxu0 0.0
    %740 = vmatprep.subr.mxu0 0.0
    %741 = vmatpush1.msra.mxu0 0.0
    %742 = vmatprep.subr.mxu0 0.0
    %743 = vmatpush1.msra.mxu0 0.0
    %744 = vmatprep.subr.mxu0 0.0
    %745 = vmatpush1.msra.mxu0 0.0
    %746 = vmatprep.subr.mxu0 0.0
    %747 = vmatpush1.msra.mxu0 0.0
    %748 = vmatprep.subr.mxu0 0.0
    %749 = vmatpush1.msra.mxu0 0.0
    %750 = vmatprep.subr.mxu0 0.0
    %751 = vmatpush1.msra.mxu0 0.0
    %752 = vmatprep.subr.mxu0 0.0
    %753 = vmatpush1.msra.mxu0 0.0
    %754 = vmatprep.subr.mxu0 0.0
    %755 = vmatpush1.msra.mxu0 0.0
    %756 = vmatprep.subr.mxu0 0.0
    %757 = vmatpush1.msra.mxu0 0.0
    %758 = vmatprep.subr.mxu0 0.0
    %759 = vmatpush1.msra.mxu0 0.0
    %760 = vmatprep.subr.mxu0 0.0
    %761 = vmatpush1.msra.mxu0 0.0
    %762 = vmatprep.subr.mxu0 0.0
    %763 = vmatpush1.msra.mxu0 0.0
    %764 = vmatprep.subr.mxu0 0.0
    %765 = vmatpush1.msra.mxu0 0.0
    %766 = vmatprep.mubr.f32.mxu0 0.0
    %767 = vmatmul.mubr.f32.gmra.mrb[0].mxu0 %v700
    %v768 = vpop.f32.mrb[0].mxu0
    %v769 = vadd.f32 0.0, %v768
    %v770 = vpop.f32.mrb[0].mxu0
    %771 = vdwg.mxu0
    %v772 = vld [vmem:[#allocation2] sm:$0x3]
    %v773 = vadd.f32 %v772, %v769
    %774 = vst [vmem:[#allocation3] sm:$0x3] %v773
    %v775 = vadd.f32 %v773, %v387
    %v776 = vxor.u32 %v775, 2147483648
    %v777 = vmul.f32 %v776, 1.442695
    %v778 = vpow.pop %v777
    %v779 = vadd.f32 %v778, 1.0
    %v780 = vrcp.pop %v779
    %v781 = vmul.f32 1.0, %v780
    %782 = vrot.lane.b32.xlu0 %v387, 64
    %v783 = vpop.permute.xlu0 %782
    %v785 = vmul.f32 %v781, %v783
    %787 = vrot.lane.b32.xlu0 %v785, 64
    %v788 = vpop.permute.xlu0 %787
    %v790 = vadd.f32 %v773, %v788
    %v791 = vtanh.pop %v790
    %v792 = vsub.f32 1.0, %v781
    %794 = vrot.lane.b32.xlu0 %v791, 96
    %v795 = vpop.permute.xlu0 %794
    %v797 = vmul.f32 %v792, %v795
    %798 = vrot.lane.b32.xlu0 %v316, 32
    %v799 = vpop.permute.xlu0 %798
    %v801 = vmul.f32 %v781, %v799
    %v802 = vadd.f32 %v797, %v801
    %804 = vrot.lane.b32.xlu0 %v802, 96
    %v805 = vpop.permute.xlu0 %804
    %vm807 = vcmask 254976
    %808 = vst.msk [vmem:[#allocation4] sm:$0x3] %vm807, %v805
    %v809 = vsel %vm150, %v805, 0
    %811 = vmatprep.subr.mxu0 0.0
    %812 = vmatpush1.msra.mxu0 %v101
    %813 = vmatprep.subr.mxu0 0.0
    %814 = vmatpush1.msra.mxu0 %v102
    %815 = vmatprep.subr.mxu0 0.0
    %816 = vmatpush1.msra.mxu0 %v103
    %817 = vmatprep.subr.mxu0 0.0
    %818 = vmatpush1.msra.mxu0 %v104
    %819 = vmatprep.subr.mxu0 0.0
    %820 = vmatpush1.msra.mxu0 0.0
    %821 = vmatprep.subr.mxu0 0.0
    %822 = vmatpush1.msra.mxu0 0.0
    %823 = vmatprep.subr.mxu0 0.0
    %824 = vmatpush1.msra.mxu0 0.0
    %825 = vmatprep.subr.mxu0 0.0
    %826 = vmatpush1.msra.mxu0 0.0
    %827 = vmatprep.subr.mxu0 0.0
    %828 = vmatpush1.msra.mxu0 0.0
    %829 = vmatprep.subr.mxu0 0.0
    %830 = vmatpush1.msra.mxu0 0.0
    %831 = vmatprep.subr.mxu0 0.0
    %832 = vmatpush1.msra.mxu0 0.0
    %833 = vmatprep.subr.mxu0 0.0
    %834 = vmatpush1.msra.mxu0 0.0
    %835 = vmatprep.subr.mxu0 0.0
    %836 = vmatpush1.msra.mxu0 0.0
    %837 = vmatprep.subr.mxu0 0.0
    %838 = vmatpush1.msra.mxu0 0.0
    %839 = vmatprep.subr.mxu0 0.0
    %840 = vmatpush1.msra.mxu0 0.0
    %841 = vmatprep.subr.mxu0 0.0
    %842 = vmatpush1.msra.mxu0 0.0
    %843 = vmatprep.subr.mxu0 0.0
    %844 = vmatpush1.msra.mxu0 0.0
    %845 = vmatprep.subr.mxu0 0.0
    %846 = vmatpush1.msra.mxu0 0.0
    %847 = vmatprep.subr.mxu0 0.0
    %848 = vmatpush1.msra.mxu0 0.0
    %849 = vmatprep.subr.mxu0 0.0
    %850 = vmatpush1.msra.mxu0 0.0
    %851 = vmatprep.subr.mxu0 0.0
    %852 = vmatpush1.msra.mxu0 0.0
    %853 = vmatprep.subr.mxu0 0.0
    %854 = vmatpush1.msra.mxu0 0.0
    %855 = vmatprep.subr.mxu0 0.0
    %856 = vmatpush1.msra.mxu0 0.0
    %857 = vmatprep.subr.mxu0 0.0
    %858 = vmatpush1.msra.mxu0 0.0
    %859 = vmatprep.subr.mxu0 0.0
    %860 = vmatpush1.msra.mxu0 0.0
    %861 = vmatprep.subr.mxu0 0.0
    %862 = vmatpush1.msra.mxu0 0.0
    %863 = vmatprep.subr.mxu0 0.0
    %864 = vmatpush1.msra.mxu0 0.0
    %865 = vmatprep.subr.mxu0 0.0
    %866 = vmatpush1.msra.mxu0 0.0
    %867 = vmatprep.subr.mxu0 0.0
    %868 = vmatpush1.msra.mxu0 0.0
    %869 = vmatprep.subr.mxu0 0.0
    %870 = vmatpush1.msra.mxu0 0.0
    %871 = vmatprep.subr.mxu0 0.0
    %872 = vmatpush1.msra.mxu0 0.0
    %873 = vmatprep.subr.mxu0 0.0
    %874 = vmatpush1.msra.mxu0 0.0
    %875 = vmatprep.mubr.f32.mxu0 0.0
    %876 = vmatmul.mubr.f32.gmra.mrb[0].mxu0 %v809
    %v877 = vpop.f32.mrb[0].mxu0
    %v878 = vadd.f32 %v133, %v877
    %v879 = vpop.f32.mrb[0].mxu0
    %880 = vdwg.mxu0
    %v883 = vunpack.c.l.s4 1966171168
    %v884 = vunpack.c.0.s8 %v883
    %v885 = vlaneseq
    %v886 = vshrl.u32 %v885, 7
    %v887 = vsub.s32 %v884, %v886
    %v888 = vrot.slane %v878, %v887
    %v889 = vcombine.high %v888, %v888
    %v891 = vunpack.c.l.s4 1966171168
    %v892 = vunpack.c.0.s8 %v891
    %v893 = vlaneseq
    %v894 = vshrl.u32 %v893, 7
    %v895 = vsub.s32 %v892, %v894
    %v896 = vrot.slane %v888, %v895
    %v898 = vunpack.c.l.s4 1966171168
    %v899 = vunpack.c.0.s8 %v898
    %v900 = vlaneseq
    %v901 = vshrl.u32 %v900, 7
    %v902 = vsub.s32 %v899, %v901
    %v903 = vrot.slane %v889, %v902
    %v904 = vlaneseq
    %v905 = vshrl.u32 %v904, 7
    %v906 = vsub.s32 0, %v905
    %v907 = vrot.slane %v896, %v906
    %v908 = vlaneseq
    %v909 = vshrl.u32 %v908, 7
    %v910 = vsub.s32 0, %v909
    %v911 = vrot.slane %v903, %v910
    %912 = vrot.lane.b32.xlu0 %v907, 32
    %v913 = vpop.permute.xlu0 %912
    %914 = vrot.lane.b32.xlu0 %v911, 32
    %v915 = vpop.permute.xlu0 %914
    %v918 = vadd.f32 %v308, %v913
    %v919 = vadd.f32 %v313, %v915
    %v920 = vtanh.pop %v918
    %v921 = vtanh.pop %v919
    %v922 = vmul.f32 %v920, %v138
    %v923 = vmul.f32 %v921, %v138
    %v924 = vsel %vm150, %v922, 0.0
    %925 = vadd.xlane.f32.xlu0 %v924
    %v926 = vpop.xlane.xlu0 %925
    %v927 = vsel %vm150, %v923, 0.0
    %928 = vadd.xlane.f32.xlu0 %v927
    %v929 = vpop.xlane.xlu0 %928
    %v930 = vadd.f32 %v926, %v446
    %v931 = vadd.f32 %v929, %v453
    %934 = vset.pattern.permute.xlu0 0
    %935 = vperm.xlu0 %934, %v930
    %v936 = vpop.permute.xlu0 %935
    %937 = vset.pattern.permute.xlu0 0
    %938 = vperm.xlu0 %937, %v931
    %v939 = vpop.permute.xlu0 %938
    %v940 = vlaneseq
    %v941 = vshrl.u32 %v940, 7
    %v942 = vsub.s32 %v467, %v941
    %v943 = vrot.slane %v936, %v942
    %v944 = vlaneseq
    %v945 = vshrl.u32 %v944, 7
    %v946 = vsub.s32 %v467, %v945
    %v947 = vrot.slane %v939, %v946
    %v948 = vsel %vm476, %v947, %v943
    %v950 = vsel %vm479, %v948, -inf
    %951 = vmax.xlane.f32.xlu0 %v950
    %v952 = vpop.xlane.xlu0 %951
    %v954 = vlaneseq
    %v955 = vshrl.u32 %v954, 7
    %v956 = vsub.s32 0, %v955
    %v957 = vrot.slane %v952, %v956
    %v958 = vlaneseq
    %v959 = vshrl.u32 %v958, 7
    %v960 = vsub.s32 1, %v959
    %v961 = vrot.slane %v952, %v960
    %v964 = vsub.f32 %v930, %v957
    %v965 = vsub.f32 %v931, %v961
    %v966 = vmul.f32 %v964, 1.442695
    %v967 = vpow.pop %v966
    %v968 = vmul.f32 %v965, 1.442695
    %v969 = vpow.pop %v968
    %972 = vset.pattern.permute.xlu0 0
    %973 = vperm.xlu0 %972, %v967
    %v974 = vpop.permute.xlu0 %973
    %975 = vset.pattern.permute.xlu0 0
    %976 = vperm.xlu0 %975, %v969
    %v977 = vpop.permute.xlu0 %976
    %v978 = vlaneseq
    %v979 = vshrl.u32 %v978, 7
    %v980 = vsub.s32 %v467, %v979
    %v981 = vrot.slane %v974, %v980
    %v982 = vlaneseq
    %v983 = vshrl.u32 %v982, 7
    %v984 = vsub.s32 %v467, %v983
    %v985 = vrot.slane %v977, %v984
    %v986 = vsel %vm476, %v985, %v981
    %v988 = vsel %vm479, %v986, 0.0
    %989 = vadd.xlane.f32.xlu0 %v988
    %v990 = vpop.xlane.xlu0 %989
    %v991 = vrcp.pop %v990
    %v993 = vlaneseq
    %v994 = vshrl.u32 %v993, 7
    %v995 = vsub.s32 0, %v994
    %v996 = vrot.slane %v991, %v995
    %v997 = vlaneseq
    %v998 = vshrl.u32 %v997, 7
    %v999 = vsub.s32 1, %v998
    %v1000 = vrot.slane %v991, %v999
    %v1003 = vmul.f32 %v967, %v996
    %v1004 = vmul.f32 %v969, %v1000
    %1006 = vset.pattern.permute.xlu0 0
    %1007 = vperm.xlu0 %1006, %v1003
    %v1008 = vpop.permute.xlu0 %1007
    %v1009 = vlaneseq
    %v1010 = vshrl.u32 %v1009, 7
    %v1011 = vsub.s32 %v467, %v1010
    %v1012 = vrot.slane %v1008, %v1011
    %v1013 = vsel %vm543, %v1012, 0
    %1015 = vmatprep.subr.mxu0 0.0
    %1016 = vmatpush1.msra.mxu0 %v98
    %1017 = vmatprep.subr.mxu0 0.0
    %1018 = vmatpush1.msra.mxu0 0.0
    %1019 = vmatprep.subr.mxu0 0.0
    %1020 = vmatpush1.msra.mxu0 0.0
    %1021 = vmatprep.subr.mxu0 0.0
    %1022 = vmatpush1.msra.mxu0 0.0
    %1023 = vmatprep.subr.mxu0 0.0
    %1024 = vmatpush1.msra.mxu0 0.0
    %1025 = vmatprep.subr.mxu0 0.0
    %1026 = vmatpush1.msra.mxu0 0.0
    %1027 = vmatprep.subr.mxu0 0.0
    %1028 = vmatpush1.msra.mxu0 0.0
    %1029 = vmatprep.subr.mxu0 0.0
    %1030 = vmatpush1.msra.mxu0 0.0
    %1031 = vmatprep.subr.mxu0 0.0
    %1032 = vmatpush1.msra.mxu0 0.0
    %1033 = vmatprep.subr.mxu0 0.0
    %1034 = vmatpush1.msra.mxu0 0.0
    %1035 = vmatprep.subr.mxu0 0.0
    %1036 = vmatpush1.msra.mxu0 0.0
    %1037 = vmatprep.subr.mxu0 0.0
    %1038 = vmatpush1.msra.mxu0 0.0
    %1039 = vmatprep.subr.mxu0 0.0
    %1040 = vmatpush1.msra.mxu0 0.0
    %1041 = vmatprep.subr.mxu0 0.0
    %1042 = vmatpush1.msra.mxu0 0.0
    %1043 = vmatprep.subr.mxu0 0.0
    %1044 = vmatpush1.msra.mxu0 0.0
    %1045 = vmatprep.subr.mxu0 0.0
    %1046 = vmatpush1.msra.mxu0 0.0
    %1047 = vmatprep.subr.mxu0 0.0
    %1048 = vmatpush1.msra.mxu0 0.0
    %1049 = vmatprep.subr.mxu0 0.0
    %1050 = vmatpush1.msra.mxu0 0.0
    %1051 = vmatprep.subr.mxu0 0.0
    %1052 = vmatpush1.msra.mxu0 0.0
    %1053 = vmatprep.subr.mxu0 0.0
    %1054 = vmatpush1.msra.mxu0 0.0
    %1055 = vmatprep.subr.mxu0 0.0
    %1056 = vmatpush1.msra.mxu0 0.0
    %1057 = vmatprep.subr.mxu0 0.0
    %1058 = vmatpush1.msra.mxu0 0.0
    %1059 = vmatprep.subr.mxu0 0.0
    %1060 = vmatpush1.msra.mxu0 0.0
    %1061 = vmatprep.subr.mxu0 0.0
    %1062 = vmatpush1.msra.mxu0 0.0
    %1063 = vmatprep.subr.mxu0 0.0
    %1064 = vmatpush1.msra.mxu0 0.0
    %1065 = vmatprep.subr.mxu0 0.0
    %1066 = vmatpush1.msra.mxu0 0.0
    %1067 = vmatprep.subr.mxu0 0.0
    %1068 = vmatpush1.msra.mxu0 0.0
    %1069 = vmatprep.subr.mxu0 0.0
    %1070 = vmatpush1.msra.mxu0 0.0
    %1071 = vmatprep.subr.mxu0 0.0
    %1072 = vmatpush1.msra.mxu0 0.0
    %1073 = vmatprep.subr.mxu0 0.0
    %1074 = vmatpush1.msra.mxu0 0.0
    %1075 = vmatprep.subr.mxu0 0.0
    %1076 = vmatpush1.msra.mxu0 0.0
    %1077 = vmatprep.subr.mxu0 0.0
    %1078 = vmatpush1.msra.mxu0 0.0
    %1079 = vmatprep.mubr.f32.mxu0 0.0
    %1080 = vmatmul.mubr.f32.gmra.mrb[0].mxu0 %v1013
    %v1081 = vpop.f32.mrb[0].mxu0
    %v1082 = vadd.f32 0.0, %v1081
    %v1083 = vpop.f32.mrb[0].mxu0
    %1084 = vdwg.mxu0
    %1086 = vset.pattern.permute.xlu0 0
    %1087 = vperm.xlu0 %1086, %v1004
    %v1088 = vpop.permute.xlu0 %1087
    %v1089 = vlaneseq
    %v1090 = vshrl.u32 %v1089, 7
    %v1091 = vsub.s32 %v467, %v1090
    %v1092 = vrot.slane %v1088, %v1091
    %v1093 = vsel %vm543, %v1092, 0
    %1095 = vmatprep.subr.mxu0 0.0
    %1096 = vmatpush1.msra.mxu0 %v99
    %1097 = vmatprep.subr.mxu0 0.0
    %1098 = vmatpush1.msra.mxu0 0.0
    %1099 = vmatprep.subr.mxu0 0.0
    %1100 = vmatpush1.msra.mxu0 0.0
    %1101 = vmatprep.subr.mxu0 0.0
    %1102 = vmatpush1.msra.mxu0 0.0
    %1103 = vmatprep.subr.mxu0 0.0
    %1104 = vmatpush1.msra.mxu0 0.0
    %1105 = vmatprep.subr.mxu0 0.0
    %1106 = vmatpush1.msra.mxu0 0.0
    %1107 = vmatprep.subr.mxu0 0.0
    %1108 = vmatpush1.msra.mxu0 0.0
    %1109 = vmatprep.subr.mxu0 0.0
    %1110 = vmatpush1.msra.mxu0 0.0
    %1111 = vmatprep.subr.mxu0 0.0
    %1112 = vmatpush1.msra.mxu0 0.0
    %1113 = vmatprep.subr.mxu0 0.0
    %1114 = vmatpush1.msra.mxu0 0.0
    %1115 = vmatprep.subr.mxu0 0.0
    %1116 = vmatpush1.msra.mxu0 0.0
    %1117 = vmatprep.subr.mxu0 0.0
    %1118 = vmatpush1.msra.mxu0 0.0
    %1119 = vmatprep.subr.mxu0 0.0
    %1120 = vmatpush1.msra.mxu0 0.0
    %1121 = vmatprep.subr.mxu0 0.0
    %1122 = vmatpush1.msra.mxu0 0.0
    %1123 = vmatprep.subr.mxu0 0.0
    %1124 = vmatpush1.msra.mxu0 0.0
    %1125 = vmatprep.subr.mxu0 0.0
    %1126 = vmatpush1.msra.mxu0 0.0
    %1127 = vmatprep.subr.mxu0 0.0
    %1128 = vmatpush1.msra.mxu0 0.0
    %1129 = vmatprep.subr.mxu0 0.0
    %1130 = vmatpush1.msra.mxu0 0.0
    %1131 = vmatprep.subr.mxu0 0.0
    %1132 = vmatpush1.msra.mxu0 0.0
    %1133 = vmatprep.subr.mxu0 0.0
    %1134 = vmatpush1.msra.mxu0 0.0
    %1135 = vmatprep.subr.mxu0 0.0
    %1136 = vmatpush1.msra.mxu0 0.0
    %1137 = vmatprep.subr.mxu0 0.0
    %1138 = vmatpush1.msra.mxu0 0.0
    %1139 = vmatprep.subr.mxu0 0.0
    %1140 = vmatpush1.msra.mxu0 0.0
    %1141 = vmatprep.subr.mxu0 0.0
    %1142 = vmatpush1.msra.mxu0 0.0
    %1143 = vmatprep.subr.mxu0 0.0
    %1144 = vmatpush1.msra.mxu0 0.0
    %1145 = vmatprep.subr.mxu0 0.0
    %1146 = vmatpush1.msra.mxu0 0.0
    %1147 = vmatprep.subr.mxu0 0.0
    %1148 = vmatpush1.msra.mxu0 0.0
    %1149 = vmatprep.subr.mxu0 0.0
    %1150 = vmatpush1.msra.mxu0 0.0
    %1151 = vmatprep.subr.mxu0 0.0
    %1152 = vmatpush1.msra.mxu0 0.0
    %1153 = vmatprep.subr.mxu0 0.0
    %1154 = vmatpush1.msra.mxu0 0.0
    %1155 = vmatprep.subr.mxu0 0.0
    %1156 = vmatpush1.msra.mxu0 0.0
    %1157 = vmatprep.subr.mxu0 0.0
    %1158 = vmatpush1.msra.mxu0 0.0
    %1159 = vmatprep.mubr.f32.mxu0 0.0
    %1160 = vmatmul.mubr.f32.gmra.mrb[0].mxu0 %v1093
    %v1161 = vpop.f32.mrb[0].mxu0
    %v1162 = vadd.f32 0.0, %v1161
    %v1163 = vpop.f32.mrb[0].mxu0
    %1164 = vdwg.mxu0
    %v1167 = vrot.slane %v1162, 7
    %v1168 = vsel %vm476, %v1167, %v1082
    %v1169 = vsel %vm234, %v1168, 0
    %1171 = vmatprep.subr.mxu0 0.0
    %1172 = vmatpush1.msra.mxu0 %v113
    %1173 = vmatprep.subr.mxu0 0.0
    %1174 = vmatpush1.msra.mxu0 %v114
    %1175 = vmatprep.subr.mxu0 0.0
    %1176 = vmatpush1.msra.mxu0 %v115
    %1177 = vmatprep.subr.mxu0 0.0
    %1178 = vmatpush1.msra.mxu0 %v116
    %1179 = vmatprep.subr.mxu0 0.0
    %1180 = vmatpush1.msra.mxu0 %v117
    %1181 = vmatprep.subr.mxu0 0.0
    %1182 = vmatpush1.msra.mxu0 %v118
    %1183 = vmatprep.subr.mxu0 0.0
    %1184 = vmatpush1.msra.mxu0 %v119
    %1185 = vmatprep.subr.mxu0 0.0
    %1186 = vmatpush1.msra.mxu0 %v120
    %1187 = vmatprep.subr.mxu0 0.0
    %1188 = vmatpush1.msra.mxu0 0.0
    %1189 = vmatprep.subr.mxu0 0.0
    %1190 = vmatpush1.msra.mxu0 0.0
    %1191 = vmatprep.subr.mxu0 0.0
    %1192 = vmatpush1.msra.mxu0 0.0
    %1193 = vmatprep.subr.mxu0 0.0
    %1194 = vmatpush1.msra.mxu0 0.0
    %1195 = vmatprep.subr.mxu0 0.0
    %1196 = vmatpush1.msra.mxu0 0.0
    %1197 = vmatprep.subr.mxu0 0.0
    %1198 = vmatpush1.msra.mxu0 0.0
    %1199 = vmatprep.subr.mxu0 0.0
    %1200 = vmatpush1.msra.mxu0 0.0
    %1201 = vmatprep.subr.mxu0 0.0
    %1202 = vmatpush1.msra.mxu0 0.0
    %1203 = vmatprep.subr.mxu0 0.0
    %1204 = vmatpush1.msra.mxu0 0.0
    %1205 = vmatprep.subr.mxu0 0.0
    %1206 = vmatpush1.msra.mxu0 0.0
    %1207 = vmatprep.subr.mxu0 0.0
    %1208 = vmatpush1.msra.mxu0 0.0
    %1209 = vmatprep.subr.mxu0 0.0
    %1210 = vmatpush1.msra.mxu0 0.0
    %1211 = vmatprep.subr.mxu0 0.0
    %1212 = vmatpush1.msra.mxu0 0.0
    %1213 = vmatprep.subr.mxu0 0.0
    %1214 = vmatpush1.msra.mxu0 0.0
    %1215 = vmatprep.subr.mxu0 0.0
    %1216 = vmatpush1.msra.mxu0 0.0
    %1217 = vmatprep.subr.mxu0 0.0
    %1218 = vmatpush1.msra.mxu0 0.0
    %1219 = vmatprep.subr.mxu0 0.0
    %1220 = vmatpush1.msra.mxu0 0.0
    %1221 = vmatprep.subr.mxu0 0.0
    %1222 = vmatpush1.msra.mxu0 0.0
    %1223 = vmatprep.subr.mxu0 0.0
    %1224 = vmatpush1.msra.mxu0 0.0
    %1225 = vmatprep.subr.mxu0 0.0
    %1226 = vmatpush1.msra.mxu0 0.0
    %1227 = vmatprep.subr.mxu0 0.0
    %1228 = vmatpush1.msra.mxu0 0.0
    %1229 = vmatprep.subr.mxu0 0.0
    %1230 = vmatpush1.msra.mxu0 0.0
    %1231 = vmatprep.subr.mxu0 0.0
    %1232 = vmatpush1.msra.mxu0 0.0
    %1233 = vmatprep.subr.mxu0 0.0
    %1234 = vmatpush1.msra.mxu0 0.0
    %1235 = vmatprep.mubr.f32.mxu0 0.0
    %1236 = vmatmul.mubr.f32.gmra.mrb[0].mxu0 %v1169
    %v1237 = vpop.f32.mrb[0].mxu0
    %v1238 = vadd.f32 0.0, %v1237
    %v1239 = vpop.f32.mrb[0].mxu0
    %1240 = vdwg.mxu0
    %v1241 = vld [vmem:[#allocation2 + $0x2] sm:$0x3]
    %v1242 = vadd.f32 %v1241, %v1238
    %1243 = vst [vmem:[#allocation3 + $0x2] sm:$0x3] %v1242
    %v1244 = vadd.f32 %v1242, %v878
    %v1245 = vxor.u32 %v1244, 2147483648
    %v1246 = vmul.f32 %v1245, 1.442695
    %v1247 = vpow.pop %v1246
    %v1248 = vadd.f32 %v1247, 1.0
    %v1249 = vrcp.pop %v1248
    %v1250 = vmul.f32 1.0, %v1249
    %1251 = vrot.lane.b32.xlu0 %v878, 64
    %v1252 = vpop.permute.xlu0 %1251
    %v1254 = vmul.f32 %v1250, %v1252
    %1256 = vrot.lane.b32.xlu0 %v1254, 64
    %v1257 = vpop.permute.xlu0 %1256
    %v1259 = vadd.f32 %v1242, %v1257
    %v1260 = vtanh.pop %v1259
    %v1261 = vsub.f32 1.0, %v1250
    %1263 = vrot.lane.b32.xlu0 %v1260, 96
    %v1264 = vpop.permute.xlu0 %1263
    %v1266 = vmul.f32 %v1261, %v1264
    %v1267 = vmul.f32 %v1250, %v802
    %v1268 = vadd.f32 %v1266, %v1267
    %1270 = vrot.lane.b32.xlu0 %v1268, 96
    %v1271 = vpop.permute.xlu0 %1270
    %1273 = vst.msk [vmem:[#allocation4 + $0x2] sm:$0x3] %vm807, %v1271
    %v1274 = vsel %vm150, %v1271, 0
    %1276 = vmatprep.subr.mxu0 0.0
    %1277 = vmatpush1.msra.mxu0 %v101
    %1278 = vmatprep.subr.mxu0 0.0
    %1279 = vmatpush1.msra.mxu0 %v102
    %1280 = vmatprep.subr.mxu0 0.0
    %1281 = vmatpush1.msra.mxu0 %v103
    %1282 = vmatprep.subr.mxu0 0.0
    %1283 = vmatpush1.msra.mxu0 %v104
    %1284 = vmatprep.subr.mxu0 0.0
    %1285 = vmatpush1.msra.mxu0 0.0
    %1286 = vmatprep.subr.mxu0 0.0
    %1287 = vmatpush1.msra.mxu0 0.0
    %1288 = vmatprep.subr.mxu0 0.0
    %1289 = vmatpush1.msra.mxu0 0.0
    %1290 = vmatprep.subr.mxu0 0.0
    %1291 = vmatpush1.msra.mxu0 0.0
    %1292 = vmatprep.subr.mxu0 0.0
    %1293 = vmatpush1.msra.mxu0 0.0
    %1294 = vmatprep.subr.mxu0 0.0
    %1295 = vmatpush1.msra.mxu0 0.0
    %1296 = vmatprep.subr.mxu0 0.0
    %1297 = vmatpush1.msra.mxu0 0.0
    %1298 = vmatprep.subr.mxu0 0.0
    %1299 = vmatpush1.msra.mxu0 0.0
    %1300 = vmatprep.subr.mxu0 0.0
    %1301 = vmatpush1.msra.mxu0 0.0
    %1302 = vmatprep.subr.mxu0 0.0
    %1303 = vmatpush1.msra.mxu0 0.0
    %1304 = vmatprep.subr.mxu0 0.0
    %1305 = vmatpush1.msra.mxu0 0.0
    %1306 = vmatprep.subr.mxu0 0.0
    %1307 = vmatpush1.msra.mxu0 0.0
    %1308 = vmatprep.subr.mxu0 0.0
    %1309 = vmatpush1.msra.mxu0 0.0
    %1310 = vmatprep.subr.mxu0 0.0
    %1311 = vmatpush1.msra.mxu0 0.0
    %1312 = vmatprep.subr.mxu0 0.0
    %1313 = vmatpush1.msra.mxu0 0.0
    %1314 = vmatprep.subr.mxu0 0.0
    %1315 = vmatpush1.msra.mxu0 0.0
    %1316 = vmatprep.subr.mxu0 0.0
    %1317 = vmatpush1.msra.mxu0 0.0
    %1318 = vmatprep.subr.mxu0 0.0
    %1319 = vmatpush1.msra.mxu0 0.0
    %1320 = vmatprep.subr.mxu0 0.0
    %1321 = vmatpush1.msra.mxu0 0.0
    %1322 = vmatprep.subr.mxu0 0.0
    %1323 = vmatpush1.msra.mxu0 0.0
    %1324 = vmatprep.subr.mxu0 0.0
    %1325 = vmatpush1.msra.mxu0 0.0
    %1326 = vmatprep.subr.mxu0 0.0
    %1327 = vmatpush1.msra.mxu0 0.0
    %1328 = vmatprep.subr.mxu0 0.0
    %1329 = vmatpush1.msra.mxu0 0.0
    %1330 = vmatprep.subr.mxu0 0.0
    %1331 = vmatpush1.msra.mxu0 0.0
    %1332 = vmatprep.subr.mxu0 0.0
    %1333 = vmatpush1.msra.mxu0 0.0
    %1334 = vmatprep.subr.mxu0 0.0
    %1335 = vmatpush1.msra.mxu0 0.0
    %1336 = vmatprep.subr.mxu0 0.0
    %1337 = vmatpush1.msra.mxu0 0.0
    %1338 = vmatprep.subr.mxu0 0.0
    %1339 = vmatpush1.msra.mxu0 0.0
    %1340 = vmatprep.mubr.f32.mxu0 0.0
    %1341 = vmatmul.mubr.f32.gmra.mrb[0].mxu0 %v1274
    %v1342 = vpop.f32.mrb[0].mxu0
    %v1343 = vadd.f32 %v133, %v1342
    %v1344 = vpop.f32.mrb[0].mxu0
    %1345 = vdwg.mxu0
    %v1348 = vunpack.c.l.s4 1966171168
    %v1349 = vunpack.c.0.s8 %v1348
    %v1350 = vlaneseq
    %v1351 = vshrl.u32 %v1350, 7
    %v1352 = vsub.s32 %v1349, %v1351
    %v1353 = vrot.slane %v1343, %v1352
    %v1354 = vcombine.high %v1353, %v1353
    %v1356 = vunpack.c.l.s4 1966171168
    %v1357 = vunpack.c.0.s8 %v1356
    %v1358 = vlaneseq
    %v1359 = vshrl.u32 %v1358, 7
    %v1360 = vsub.s32 %v1357, %v1359
    %v1361 = vrot.slane %v1353, %v1360
    %v1363 = vunpack.c.l.s4 1966171168
    %v1364 = vunpack.c.0.s8 %v1363
    %v1365 = vlaneseq
    %v1366 = vshrl.u32 %v1365, 7
    %v1367 = vsub.s32 %v1364, %v1366
    %v1368 = vrot.slane %v1354, %v1367
    %v1369 = vlaneseq
    %v1370 = vshrl.u32 %v1369, 7
    %v1371 = vsub.s32 0, %v1370
    %v1372 = vrot.slane %v1361, %v1371
    %v1373 = vlaneseq
    %v1374 = vshrl.u32 %v1373, 7
    %v1375 = vsub.s32 0, %v1374
    %v1376 = vrot.slane %v1368, %v1375
    %1377 = vrot.lane.b32.xlu0 %v1372, 32
    %v1378 = vpop.permute.xlu0 %1377
    %1379 = vrot.lane.b32.xlu0 %v1376, 32
    %v1380 = vpop.permute.xlu0 %1379
    %v1383 = vadd.f32 %v308, %v1378
    %v1384 = vadd.f32 %v313, %v1380
    %v1385 = vtanh.pop %v1383
    %v1386 = vtanh.pop %v1384
    %v1387 = vmul.f32 %v1385, %v138
    %v1388 = vmul.f32 %v1386, %v138
    %v1389 = vsel %vm150, %v1387, 0.0
    %1390 = vadd.xlane.f32.xlu0 %v1389
    %v1391 = vpop.xlane.xlu0 %1390
    %v1392 = vsel %vm150, %v1388, 0.0
    %1393 = vadd.xlane.f32.xlu0 %v1392
    %v1394 = vpop.xlane.xlu0 %1393
    %v1395 = vadd.f32 %v1391, %v446
    %v1396 = vadd.f32 %v1394, %v453
    %1399 = vset.pattern.permute.xlu0 0
    %1400 = vperm.xlu0 %1399, %v1395
    %v1401 = vpop.permute.xlu0 %1400
    %1402 = vset.pattern.permute.xlu0 0
    %1403 = vperm.xlu0 %1402, %v1396
    %v1404 = vpop.permute.xlu0 %1403
    %v1405 = vlaneseq
    %v1406 = vshrl.u32 %v1405, 7
    %v1407 = vsub.s32 %v467, %v1406
    %v1408 = vrot.slane %v1401, %v1407
    %v1409 = vlaneseq
    %v1410 = vshrl.u32 %v1409, 7
    %v1411 = vsub.s32 %v467, %v1410
    %v1412 = vrot.slane %v1404, %v1411
    %v1413 = vsel %vm476, %v1412, %v1408
    %v1415 = vsel %vm479, %v1413, -inf
    %1416 = vmax.xlane.f32.xlu0 %v1415
    %v1417 = vpop.xlane.xlu0 %1416
    %v1419 = vlaneseq
    %v1420 = vshrl.u32 %v1419, 7
    %v1421 = vsub.s32 0, %v1420
    %v1422 = vrot.slane %v1417, %v1421
    %v1423 = vlaneseq
    %v1424 = vshrl.u32 %v1423, 7
    %v1425 = vsub.s32 1, %v1424
    %v1426 = vrot.slane %v1417, %v1425
    %v1429 = vsub.f32 %v1395, %v1422
    %v1430 = vsub.f32 %v1396, %v1426
    %v1431 = vmul.f32 %v1429, 1.442695
    %v1432 = vpow.pop %v1431
    %v1433 = vmul.f32 %v1430, 1.442695
    %v1434 = vpow.pop %v1433
    %1437 = vset.pattern.permute.xlu0 0
    %1438 = vperm.xlu0 %1437, %v1432
    %v1439 = vpop.permute.xlu0 %1438
    %1440 = vset.pattern.permute.xlu0 0
    %1441 = vperm.xlu0 %1440, %v1434
    %v1442 = vpop.permute.xlu0 %1441
    %v1443 = vlaneseq
    %v1444 = vshrl.u32 %v1443, 7
    %v1445 = vsub.s32 %v467, %v1444
    %v1446 = vrot.slane %v1439, %v1445
    %v1447 = vlaneseq
    %v1448 = vshrl.u32 %v1447, 7
    %v1449 = vsub.s32 %v467, %v1448
    %v1450 = vrot.slane %v1442, %v1449
    %v1451 = vsel %vm476, %v1450, %v1446
    %v1453 = vsel %vm479, %v1451, 0.0
    %1454 = vadd.xlane.f32.xlu0 %v1453
    %v1455 = vpop.xlane.xlu0 %1454
    %v1456 = vrcp.pop %v1455
    %v1458 = vlaneseq
    %v1459 = vshrl.u32 %v1458, 7
    %v1460 = vsub.s32 0, %v1459
    %v1461 = vrot.slane %v1456, %v1460
    %v1462 = vlaneseq
    %v1463 = vshrl.u32 %v1462, 7
    %v1464 = vsub.s32 1, %v1463
    %v1465 = vrot.slane %v1456, %v1464
    %v1468 = vmul.f32 %v1432, %v1461
    %v1469 = vmul.f32 %v1434, %v1465
    %1471 = vset.pattern.permute.xlu0 0
    %1472 = vperm.xlu0 %1471, %v1468
    %v1473 = vpop.permute.xlu0 %1472
    %v1474 = vlaneseq
    %v1475 = vshrl.u32 %v1474, 7
    %v1476 = vsub.s32 %v467, %v1475
    %v1477 = vrot.slane %v1473, %v1476
    %v1478 = vsel %vm543, %v1477, 0
    %1480 = vmatprep.subr.mxu0 0.0
    %1481 = vmatpush1.msra.mxu0 %v98
    %1482 = vmatprep.subr.mxu0 0.0
    %1483 = vmatpush1.msra.mxu0 0.0
    %1484 = vmatprep.subr.mxu0 0.0
    %1485 = vmatpush1.msra.mxu0 0.0
    %1486 = vmatprep.subr.mxu0 0.0
    %1487 = vmatpush1.msra.mxu0 0.0
    %1488 = vmatprep.subr.mxu0 0.0
    %1489 = vmatpush1.msra.mxu0 0.0
    %1490 = vmatprep.subr.mxu0 0.0
    %1491 = vmatpush1.msra.mxu0 0.0
    %1492 = vmatprep.subr.mxu0 0.0
    %1493 = vmatpush1.msra.mxu0 0.0
    %1494 = vmatprep.subr.mxu0 0.0
    %1495 = vmatpush1.msra.mxu0 0.0
    %1496 = vmatprep.subr.mxu0 0.0
    %1497 = vmatpush1.msra.mxu0 0.0
    %1498 = vmatprep.subr.mxu0 0.0
    %1499 = vmatpush1.msra.mxu0 0.0
    %1500 = vmatprep.subr.mxu0 0.0
    %1501 = vmatpush1.msra.mxu0 0.0
    %1502 = vmatprep.subr.mxu0 0.0
    %1503 = vmatpush1.msra.mxu0 0.0
    %1504 = vmatprep.subr.mxu0 0.0
    %1505 = vmatpush1.msra.mxu0 0.0
    %1506 = vmatprep.subr.mxu0 0.0
    %1507 = vmatpush1.msra.mxu0 0.0
    %1508 = vmatprep.subr.mxu0 0.0
    %1509 = vmatpush1.msra.mxu0 0.0
    %1510 = vmatprep.subr.mxu0 0.0
    %1511 = vmatpush1.msra.mxu0 0.0
    %1512 = vmatprep.subr.mxu0 0.0
    %1513 = vmatpush1.msra.mxu0 0.0
    %1514 = vmatprep.subr.mxu0 0.0
    %1515 = vmatpush1.msra.mxu0 0.0
    %1516 = vmatprep.subr.mxu0 0.0
    %1517 = vmatpush1.msra.mxu0 0.0
    %1518 = vmatprep.subr.mxu0 0.0
    %1519 = vmatpush1.msra.mxu0 0.0
    %1520 = vmatprep.subr.mxu0 0.0
    %1521 = vmatpush1.msra.mxu0 0.0
    %1522 = vmatprep.subr.mxu0 0.0
    %1523 = vmatpush1.msra.mxu0 0.0
    %1524 = vmatprep.subr.mxu0 0.0
    %1525 = vmatpush1.msra.mxu0 0.0
    %1526 = vmatprep.subr.mxu0 0.0
    %1527 = vmatpush1.msra.mxu0 0.0
    %1528 = vmatprep.subr.mxu0 0.0
    %1529 = vmatpush1.msra.mxu0 0.0
    %1530 = vmatprep.subr.mxu0 0.0
    %1531 = vmatpush1.msra.mxu0 0.0
    %1532 = vmatprep.subr.mxu0 0.0
    %1533 = vmatpush1.msra.mxu0 0.0
    %1534 = vmatprep.subr.mxu0 0.0
    %1535 = vmatpush1.msra.mxu0 0.0
    %1536 = vmatprep.subr.mxu0 0.0
    %1537 = vmatpush1.msra.mxu0 0.0
    %1538 = vmatprep.subr.mxu0 0.0
    %1539 = vmatpush1.msra.mxu0 0.0
    %1540 = vmatprep.subr.mxu0 0.0
    %1541 = vmatpush1.msra.mxu0 0.0
    %1542 = vmatprep.subr.mxu0 0.0
    %1543 = vmatpush1.msra.mxu0 0.0
    %1544 = vmatprep.mubr.f32.mxu0 0.0
    %1545 = vmatmul.mubr.f32.gmra.mrb[0].mxu0 %v1478
    %v1546 = vpop.f32.mrb[0].mxu0
    %v1547 = vadd.f32 0.0, %v1546
    %v1548 = vpop.f32.mrb[0].mxu0
    %1549 = vdwg.mxu0
    %1551 = vset.pattern.permute.xlu0 0
    %1552 = vperm.xlu0 %1551, %v1469
    %v1553 = vpop.permute.xlu0 %1552
    %v1554 = vlaneseq
    %v1555 = vshrl.u32 %v1554, 7
    %v1556 = vsub.s32 %v467, %v1555
    %v1557 = vrot.slane %v1553, %v1556
    %v1558 = vsel %vm543, %v1557, 0
    %1560 = vmatprep.subr.mxu0 0.0
    %1561 = vmatpush1.msra.mxu0 %v99
    %1562 = vmatprep.subr.mxu0 0.0
    %1563 = vmatpush1.msra.mxu0 0.0
    %1564 = vmatprep.subr.mxu0 0.0
    %1565 = vmatpush1.msra.mxu0 0.0
    %1566 = vmatprep.subr.mxu0 0.0
    %1567 = vmatpush1.msra.mxu0 0.0
    %1568 = vmatprep.subr.mxu0 0.0
    %1569 = vmatpush1.msra.mxu0 0.0
    %1570 = vmatprep.subr.mxu0 0.0
    %1571 = vmatpush1.msra.mxu0 0.0
    %1572 = vmatprep.subr.mxu0 0.0
    %1573 = vmatpush1.msra.mxu0 0.0
    %1574 = vmatprep.subr.mxu0 0.0
    %1575 = vmatpush1.msra.mxu0 0.0
    %1576 = vmatprep.subr.mxu0 0.0
    %1577 = vmatpush1.msra.mxu0 0.0
    %1578 = vmatprep.subr.mxu0 0.0
    %1579 = vmatpush1.msra.mxu0 0.0
    %1580 = vmatprep.subr.mxu0 0.0
    %1581 = vmatpush1.msra.mxu0 0.0
    %1582 = vmatprep.subr.mxu0 0.0
    %1583 = vmatpush1.msra.mxu0 0.0
    %1584 = vmatprep.subr.mxu0 0.0
    %1585 = vmatpush1.msra.mxu0 0.0
    %1586 = vmatprep.subr.mxu0 0.0
    %1587 = vmatpush1.msra.mxu0 0.0
    %1588 = vmatprep.subr.mxu0 0.0
    %1589 = vmatpush1.msra.mxu0 0.0
    %1590 = vmatprep.subr.mxu0 0.0
    %1591 = vmatpush1.msra.mxu0 0.0
    %1592 = vmatprep.subr.mxu0 0.0
    %1593 = vmatpush1.msra.mxu0 0.0
    %1594 = vmatprep.subr.mxu0 0.0
    %1595 = vmatpush1.msra.mxu0 0.0
    %1596 = vmatprep.subr.mxu0 0.0
    %1597 = vmatpush1.msra.mxu0 0.0
    %1598 = vmatprep.subr.mxu0 0.0
    %1599 = vmatpush1.msra.mxu0 0.0
    %1600 = vmatprep.subr.mxu0 0.0
    %1601 = vmatpush1.msra.mxu0 0.0
    %1602 = vmatprep.subr.mxu0 0.0
    %1603 = vmatpush1.msra.mxu0 0.0
    %1604 = vmatprep.subr.mxu0 0.0
    %1605 = vmatpush1.msra.mxu0 0.0
    %1606 = vmatprep.subr.mxu0 0.0
    %1607 = vmatpush1.msra.mxu0 0.0
    %1608 = vmatprep.subr.mxu0 0.0
    %1609 = vmatpush1.msra.mxu0 0.0
    %1610 = vmatprep.subr.mxu0 0.0
    %1611 = vmatpush1.msra.mxu0 0.0
    %1612 = vmatprep.subr.mxu0 0.0
    %1613 = vmatpush1.msra.mxu0 0.0
    %1614 = vmatprep.subr.mxu0 0.0
    %1615 = vmatpush1.msra.mxu0 0.0
    %1616 = vmatprep.subr.mxu0 0.0
    %1617 = vmatpush1.msra.mxu0 0.0
    %1618 = vmatprep.subr.mxu0 0.0
    %1619 = vmatpush1.msra.mxu0 0.0
    %1620 = vmatprep.subr.mxu0 0.0
    %1621 = vmatpush1.msra.mxu0 0.0
    %1622 = vmatprep.subr.mxu0 0.0
    %1623 = vmatpush1.msra.mxu0 0.0
    %1624 = vmatprep.mubr.f32.mxu0 0.0
    %1625 = vmatmul.mubr.f32.gmra.mrb[0].mxu0 %v1558
    %v1626 = vpop.f32.mrb[0].mxu0
    %v1627 = vadd.f32 0.0, %v1626
    %v1628 = vpop.f32.mrb[0].mxu0
    %1629 = vdwg.mxu0
    %v1632 = vrot.slane %v1627, 7
    %v1633 = vsel %vm476, %v1632, %v1547
    %v1634 = vsel %vm234, %v1633, 0
    %1636 = vmatprep.subr.mxu0 0.0
    %1637 = vmatpush1.msra.mxu0 %v113
    %1638 = vmatprep.subr.mxu0 0.0
    %1639 = vmatpush1.msra.mxu0 %v114
    %1640 = vmatprep.subr.mxu0 0.0
    %1641 = vmatpush1.msra.mxu0 %v115
    %1642 = vmatprep.subr.mxu0 0.0
    %1643 = vmatpush1.msra.mxu0 %v116
    %1644 = vmatprep.subr.mxu0 0.0
    %1645 = vmatpush1.msra.mxu0 %v117
    %1646 = vmatprep.subr.mxu0 0.0
    %1647 = vmatpush1.msra.mxu0 %v118
    %1648 = vmatprep.subr.mxu0 0.0
    %1649 = vmatpush1.msra.mxu0 %v119
    %1650 = vmatprep.subr.mxu0 0.0
    %1651 = vmatpush1.msra.mxu0 %v120
    %1652 = vmatprep.subr.mxu0 0.0
    %1653 = vmatpush1.msra.mxu0 0.0
    %1654 = vmatprep.subr.mxu0 0.0
    %1655 = vmatpush1.msra.mxu0 0.0
    %1656 = vmatprep.subr.mxu0 0.0
    %1657 = vmatpush1.msra.mxu0 0.0
    %1658 = vmatprep.subr.mxu0 0.0
    %1659 = vmatpush1.msra.mxu0 0.0
    %1660 = vmatprep.subr.mxu0 0.0
    %1661 = vmatpush1.msra.mxu0 0.0
    %1662 = vmatprep.subr.mxu0 0.0
    %1663 = vmatpush1.msra.mxu0 0.0
    %1664 = vmatprep.subr.mxu0 0.0
    %1665 = vmatpush1.msra.mxu0 0.0
    %1666 = vmatprep.subr.mxu0 0.0
    %1667 = vmatpush1.msra.mxu0 0.0
    %1668 = vmatprep.subr.mxu0 0.0
    %1669 = vmatpush1.msra.mxu0 0.0
    %1670 = vmatprep.subr.mxu0 0.0
    %1671 = vmatpush1.msra.mxu0 0.0
    %1672 = vmatprep.subr.mxu0 0.0
    %1673 = vmatpush1.msra.mxu0 0.0
    %1674 = vmatprep.subr.mxu0 0.0
    %1675 = vmatpush1.msra.mxu0 0.0
    %1676 = vmatprep.subr.mxu0 0.0
    %1677 = vmatpush1.msra.mxu0 0.0
    %1678 = vmatprep.subr.mxu0 0.0
    %1679 = vmatpush1.msra.mxu0 0.0
    %1680 = vmatprep.subr.mxu0 0.0
    %1681 = vmatpush1.msra.mxu0 0.0
    %1682 = vmatprep.subr.mxu0 0.0
    %1683 = vmatpush1.msra.mxu0 0.0
    %1684 = vmatprep.subr.mxu0 0.0
    %1685 = vmatpush1.msra.mxu0 0.0
    %1686 = vmatprep.subr.mxu0 0.0
    %1687 = vmatpush1.msra.mxu0 0.0
    %1688 = vmatprep.subr.mxu0 0.0
    %1689 = vmatpush1.msra.mxu0 0.0
    %1690 = vmatprep.subr.mxu0 0.0
    %1691 = vmatpush1.msra.mxu0 0.0
    %1692 = vmatprep.subr.mxu0 0.0
    %1693 = vmatpush1.msra.mxu0 0.0
    %1694 = vmatprep.subr.mxu0 0.0
    %1695 = vmatpush1.msra.mxu0 0.0
    %1696 = vmatprep.subr.mxu0 0.0
    %1697 = vmatpush1.msra.mxu0 0.0
    %1698 = vmatprep.subr.mxu0 0.0
    %1699 = vmatpush1.msra.mxu0 0.0
    %1700 = vmatprep.mubr.f32.mxu0 0.0
    %1701 = vmatmul.mubr.f32.gmra.mrb[0].mxu0 %v1634
    %v1702 = vpop.f32.mrb[0].mxu0
    %v1703 = vadd.f32 0.0, %v1702
    %v1704 = vpop.f32.mrb[0].mxu0
    %1705 = vdwg.mxu0
    %v1706 = vld [vmem:[#allocation2 + $0x4] sm:$0x3]
    %v1707 = vadd.f32 %v1706, %v1703
    %1708 = vst [vmem:[#allocation3 + $0x4] sm:$0x3] %v1707
    %v1709 = vadd.f32 %v1707, %v1343
    %v1710 = vxor.u32 %v1709, 2147483648
    %v1711 = vmul.f32 %v1710, 1.442695
    %v1712 = vpow.pop %v1711
    %v1713 = vadd.f32 %v1712, 1.0
    %v1714 = vrcp.pop %v1713
    %v1715 = vmul.f32 1.0, %v1714
    %1716 = vrot.lane.b32.xlu0 %v1343, 64
    %v1717 = vpop.permute.xlu0 %1716
    %v1719 = vmul.f32 %v1715, %v1717
    %1721 = vrot.lane.b32.xlu0 %v1719, 64
    %v1722 = vpop.permute.xlu0 %1721
    %v1724 = vadd.f32 %v1707, %v1722
    %v1725 = vtanh.pop %v1724
    %v1726 = vsub.f32 1.0, %v1715
    %1728 = vrot.lane.b32.xlu0 %v1725, 96
    %v1729 = vpop.permute.xlu0 %1728
    %v1731 = vmul.f32 %v1726, %v1729
    %v1732 = vmul.f32 %v1715, %v1268
    %v1733 = vadd.f32 %v1731, %v1732
    %1735 = vrot.lane.b32.xlu0 %v1733, 96
    %v1736 = vpop.permute.xlu0 %1735
    %1738 = vst.msk [vmem:[#allocation4 + $0x4] sm:$0x3] %vm807, %v1736
    %v1739 = vsel %vm150, %v1736, 0
    %1741 = vmatprep.subr.mxu0 0.0
    %1742 = vmatpush1.msra.mxu0 %v101
    %1743 = vmatprep.subr.mxu0 0.0
    %1744 = vmatpush1.msra.mxu0 %v102
    %1745 = vmatprep.subr.mxu0 0.0
    %1746 = vmatpush1.msra.mxu0 %v103
    %1747 = vmatprep.subr.mxu0 0.0
    %1748 = vmatpush1.msra.mxu0 %v104
    %1749 = vmatprep.subr.mxu0 0.0
    %1750 = vmatpush1.msra.mxu0 0.0
    %1751 = vmatprep.subr.mxu0 0.0
    %1752 = vmatpush1.msra.mxu0 0.0
    %1753 = vmatprep.subr.mxu0 0.0
    %1754 = vmatpush1.msra.mxu0 0.0
    %1755 = vmatprep.subr.mxu0 0.0
    %1756 = vmatpush1.msra.mxu0 0.0
    %1757 = vmatprep.subr.mxu0 0.0
    %1758 = vmatpush1.msra.mxu0 0.0
    %1759 = vmatprep.subr.mxu0 0.0
    %1760 = vmatpush1.msra.mxu0 0.0
    %1761 = vmatprep.subr.mxu0 0.0
    %1762 = vmatpush1.msra.mxu0 0.0
    %1763 = vmatprep.subr.mxu0 0.0
    %1764 = vmatpush1.msra.mxu0 0.0
    %1765 = vmatprep.subr.mxu0 0.0
    %1766 = vmatpush1.msra.mxu0 0.0
    %1767 = vmatprep.subr.mxu0 0.0
    %1768 = vmatpush1.msra.mxu0 0.0
    %1769 = vmatprep.subr.mxu0 0.0
    %1770 = vmatpush1.msra.mxu0 0.0
    %1771 = vmatprep.subr.mxu0 0.0
    %1772 = vmatpush1.msra.mxu0 0.0
    %1773 = vmatprep.subr.mxu0 0.0
    %1774 = vmatpush1.msra.mxu0 0.0
    %1775 = vmatprep.subr.mxu0 0.0
    %1776 = vmatpush1.msra.mxu0 0.0
    %1777 = vmatprep.subr.mxu0 0.0
    %1778 = vmatpush1.msra.mxu0 0.0
    %1779 = vmatprep.subr.mxu0 0.0
    %1780 = vmatpush1.msra.mxu0 0.0
    %1781 = vmatprep.subr.mxu0 0.0
    %1782 = vmatpush1.msra.mxu0 0.0
    %1783 = vmatprep.subr.mxu0 0.0
    %1784 = vmatpush1.msra.mxu0 0.0
    %1785 = vmatprep.subr.mxu0 0.0
    %1786 = vmatpush1.msra.mxu0 0.0
    %1787 = vmatprep.subr.mxu0 0.0
    %1788 = vmatpush1.msra.mxu0 0.0
    %1789 = vmatprep.subr.mxu0 0.0
    %1790 = vmatpush1.msra.mxu0 0.0
    %1791 = vmatprep.subr.mxu0 0.0
    %1792 = vmatpush1.msra.mxu0 0.0
    %1793 = vmatprep.subr.mxu0 0.0
    %1794 = vmatpush1.msra.mxu0 0.0
    %1795 = vmatprep.subr.mxu0 0.0
    %1796 = vmatpush1.msra.mxu0 0.0
    %1797 = vmatprep.subr.mxu0 0.0
    %1798 = vmatpush1.msra.mxu0 0.0
    %1799 = vmatprep.subr.mxu0 0.0
    %1800 = vmatpush1.msra.mxu0 0.0
    %1801 = vmatprep.subr.mxu0 0.0
    %1802 = vmatpush1.msra.mxu0 0.0
    %1803 = vmatprep.subr.mxu0 0.0
    %1804 = vmatpush1.msra.mxu0 0.0
    %1805 = vmatprep.mubr.f32.mxu0 0.0
    %1806 = vmatmul.mubr.f32.gmra.mrb[0].mxu0 %v1739
    %v1807 = vpop.f32.mrb[0].mxu0
    %v1808 = vadd.f32 %v133, %v1807
    %v1809 = vpop.f32.mrb[0].mxu0
    %1810 = vdwg.mxu0
    %v1813 = vunpack.c.l.s4 1966171168
    %v1814 = vunpack.c.0.s8 %v1813
    %v1815 = vlaneseq
    %v1816 = vshrl.u32 %v1815, 7
    %v1817 = vsub.s32 %v1814, %v1816
    %v1818 = vrot.slane %v1808, %v1817
    %v1819 = vcombine.high %v1818, %v1818
    %v1821 = vunpack.c.l.s4 1966171168
    %v1822 = vunpack.c.0.s8 %v1821
    %v1823 = vlaneseq
    %v1824 = vshrl.u32 %v1823, 7
    %v1825 = vsub.s32 %v1822, %v1824
    %v1826 = vrot.slane %v1818, %v1825
    %v1828 = vunpack.c.l.s4 1966171168
    %v1829 = vunpack.c.0.s8 %v1828
    %v1830 = vlaneseq
    %v1831 = vshrl.u32 %v1830, 7
    %v1832 = vsub.s32 %v1829, %v1831
    %v1833 = vrot.slane %v1819, %v1832
    %v1834 = vlaneseq
    %v1835 = vshrl.u32 %v1834, 7
    %v1836 = vsub.s32 0, %v1835
    %v1837 = vrot.slane %v1826, %v1836
    %v1838 = vlaneseq
    %v1839 = vshrl.u32 %v1838, 7
    %v1840 = vsub.s32 0, %v1839
    %v1841 = vrot.slane %v1833, %v1840
    %1842 = vrot.lane.b32.xlu0 %v1837, 32
    %v1843 = vpop.permute.xlu0 %1842
    %1844 = vrot.lane.b32.xlu0 %v1841, 32
    %v1845 = vpop.permute.xlu0 %1844
    %v1848 = vadd.f32 %v308, %v1843
    %v1849 = vadd.f32 %v313, %v1845
    %v1850 = vtanh.pop %v1848
    %v1851 = vtanh.pop %v1849
    %v1852 = vmul.f32 %v1850, %v138
    %v1853 = vmul.f32 %v1851, %v138
    %v1854 = vsel %vm150, %v1852, 0.0
    %1855 = vadd.xlane.f32.xlu0 %v1854
    %v1856 = vpop.xlane.xlu0 %1855
    %v1857 = vsel %vm150, %v1853, 0.0
    %1858 = vadd.xlane.f32.xlu0 %v1857
    %v1859 = vpop.xlane.xlu0 %1858
    %v1860 = vadd.f32 %v1856, %v446
    %v1861 = vadd.f32 %v1859, %v453
    %1864 = vset.pattern.permute.xlu0 0
    %1865 = vperm.xlu0 %1864, %v1860
    %v1866 = vpop.permute.xlu0 %1865
    %1867 = vset.pattern.permute.xlu0 0
    %1868 = vperm.xlu0 %1867, %v1861
    %v1869 = vpop.permute.xlu0 %1868
    %v1870 = vlaneseq
    %v1871 = vshrl.u32 %v1870, 7
    %v1872 = vsub.s32 %v467, %v1871
    %v1873 = vrot.slane %v1866, %v1872
    %v1874 = vlaneseq
    %v1875 = vshrl.u32 %v1874, 7
    %v1876 = vsub.s32 %v467, %v1875
    %v1877 = vrot.slane %v1869, %v1876
    %v1878 = vsel %vm476, %v1877, %v1873
    %v1880 = vsel %vm479, %v1878, -inf
    %1881 = vmax.xlane.f32.xlu0 %v1880
    %v1882 = vpop.xlane.xlu0 %1881
    %v1884 = vlaneseq
    %v1885 = vshrl.u32 %v1884, 7
    %v1886 = vsub.s32 0, %v1885
    %v1887 = vrot.slane %v1882, %v1886
    %v1888 = vlaneseq
    %v1889 = vshrl.u32 %v1888, 7
    %v1890 = vsub.s32 1, %v1889
    %v1891 = vrot.slane %v1882, %v1890
    %v1894 = vsub.f32 %v1860, %v1887
    %v1895 = vsub.f32 %v1861, %v1891
    %v1896 = vmul.f32 %v1894, 1.442695
    %v1897 = vpow.pop %v1896
    %v1898 = vmul.f32 %v1895, 1.442695
    %v1899 = vpow.pop %v1898
    %1902 = vset.pattern.permute.xlu0 0
    %1903 = vperm.xlu0 %1902, %v1897
    %v1904 = vpop.permute.xlu0 %1903
    %1905 = vset.pattern.permute.xlu0 0
    %1906 = vperm.xlu0 %1905, %v1899
    %v1907 = vpop.permute.xlu0 %1906
    %v1908 = vlaneseq
    %v1909 = vshrl.u32 %v1908, 7
    %v1910 = vsub.s32 %v467, %v1909
    %v1911 = vrot.slane %v1904, %v1910
    %v1912 = vlaneseq
    %v1913 = vshrl.u32 %v1912, 7
    %v1914 = vsub.s32 %v467, %v1913
    %v1915 = vrot.slane %v1907, %v1914
    %v1916 = vsel %vm476, %v1915, %v1911
    %v1918 = vsel %vm479, %v1916, 0.0
    %1919 = vadd.xlane.f32.xlu0 %v1918
    %v1920 = vpop.xlane.xlu0 %1919
    %v1921 = vrcp.pop %v1920
    %v1923 = vlaneseq
    %v1924 = vshrl.u32 %v1923, 7
    %v1925 = vsub.s32 0, %v1924
    %v1926 = vrot.slane %v1921, %v1925
    %v1927 = vlaneseq
    %v1928 = vshrl.u32 %v1927, 7
    %v1929 = vsub.s32 1, %v1928
    %v1930 = vrot.slane %v1921, %v1929
    %v1933 = vmul.f32 %v1897, %v1926
    %v1934 = vmul.f32 %v1899, %v1930
    %1936 = vset.pattern.permute.xlu0 0
    %1937 = vperm.xlu0 %1936, %v1933
    %v1938 = vpop.permute.xlu0 %1937
    %v1939 = vlaneseq
    %v1940 = vshrl.u32 %v1939, 7
    %v1941 = vsub.s32 %v467, %v1940
    %v1942 = vrot.slane %v1938, %v1941
    %v1943 = vsel %vm543, %v1942, 0
    %1945 = vmatprep.subr.mxu0 0.0
    %1946 = vmatpush1.msra.mxu0 %v98
    %1947 = vmatprep.subr.mxu0 0.0
    %1948 = vmatpush1.msra.mxu0 0.0
    %1949 = vmatprep.subr.mxu0 0.0
    %1950 = vmatpush1.msra.mxu0 0.0
    %1951 = vmatprep.subr.mxu0 0.0
    %1952 = vmatpush1.msra.mxu0 0.0
    %1953 = vmatprep.subr.mxu0 0.0
    %1954 = vmatpush1.msra.mxu0 0.0
    %1955 = vmatprep.subr.mxu0 0.0
    %1956 = vmatpush1.msra.mxu0 0.0
    %1957 = vmatprep.subr.mxu0 0.0
    %1958 = vmatpush1.msra.mxu0 0.0
    %1959 = vmatprep.subr.mxu0 0.0
    %1960 = vmatpush1.msra.mxu0 0.0
    %1961 = vmatprep.subr.mxu0 0.0
    %1962 = vmatpush1.msra.mxu0 0.0
    %1963 = vmatprep.subr.mxu0 0.0
    %1964 = vmatpush1.msra.mxu0 0.0
    %1965 = vmatprep.subr.mxu0 0.0
    %1966 = vmatpush1.msra.mxu0 0.0
    %1967 = vmatprep.subr.mxu0 0.0
    %1968 = vmatpush1.msra.mxu0 0.0
    %1969 = vmatprep.subr.mxu0 0.0
    %1970 = vmatpush1.msra.mxu0 0.0
    %1971 = vmatprep.subr.mxu0 0.0
    %1972 = vmatpush1.msra.mxu0 0.0
    %1973 = vmatprep.subr.mxu0 0.0
    %1974 = vmatpush1.msra.mxu0 0.0
    %1975 = vmatprep.subr.mxu0 0.0
    %1976 = vmatpush1.msra.mxu0 0.0
    %1977 = vmatprep.subr.mxu0 0.0
    %1978 = vmatpush1.msra.mxu0 0.0
    %1979 = vmatprep.subr.mxu0 0.0
    %1980 = vmatpush1.msra.mxu0 0.0
    %1981 = vmatprep.subr.mxu0 0.0
    %1982 = vmatpush1.msra.mxu0 0.0
    %1983 = vmatprep.subr.mxu0 0.0
    %1984 = vmatpush1.msra.mxu0 0.0
    %1985 = vmatprep.subr.mxu0 0.0
    %1986 = vmatpush1.msra.mxu0 0.0
    %1987 = vmatprep.subr.mxu0 0.0
    %1988 = vmatpush1.msra.mxu0 0.0
    %1989 = vmatprep.subr.mxu0 0.0
    %1990 = vmatpush1.msra.mxu0 0.0
    %1991 = vmatprep.subr.mxu0 0.0
    %1992 = vmatpush1.msra.mxu0 0.0
    %1993 = vmatprep.subr.mxu0 0.0
    %1994 = vmatpush1.msra.mxu0 0.0
    %1995 = vmatprep.subr.mxu0 0.0
    %1996 = vmatpush1.msra.mxu0 0.0
    %1997 = vmatprep.subr.mxu0 0.0
    %1998 = vmatpush1.msra.mxu0 0.0
    %1999 = vmatprep.subr.mxu0 0.0
    %2000 = vmatpush1.msra.mxu0 0.0
    %2001 = vmatprep.subr.mxu0 0.0
    %2002 = vmatpush1.msra.mxu0 0.0
    %2003 = vmatprep.subr.mxu0 0.0
    %2004 = vmatpush1.msra.mxu0 0.0
    %2005 = vmatprep.subr.mxu0 0.0
    %2006 = vmatpush1.msra.mxu0 0.0
    %2007 = vmatprep.subr.mxu0 0.0
    %2008 = vmatpush1.msra.mxu0 0.0
    %2009 = vmatprep.mubr.f32.mxu0 0.0
    %2010 = vmatmul.mubr.f32.gmra.mrb[0].mxu0 %v1943
    %v2011 = vpop.f32.mrb[0].mxu0
    %v2012 = vadd.f32 0.0, %v2011
    %v2013 = vpop.f32.mrb[0].mxu0
    %2014 = vdwg.mxu0
    %2016 = vset.pattern.permute.xlu0 0
    %2017 = vperm.xlu0 %2016, %v1934
    %v2018 = vpop.permute.xlu0 %2017
    %v2019 = vlaneseq
    %v2020 = vshrl.u32 %v2019, 7
    %v2021 = vsub.s32 %v467, %v2020
    %v2022 = vrot.slane %v2018, %v2021
    %v2023 = vsel %vm543, %v2022, 0
    %2025 = vmatprep.subr.mxu0 0.0
    %2026 = vmatpush1.msra.mxu0 %v99
    %2027 = vmatprep.subr.mxu0 0.0
    %2028 = vmatpush1.msra.mxu0 0.0
    %2029 = vmatprep.subr.mxu0 0.0
    %2030 = vmatpush1.msra.mxu0 0.0
    %2031 = vmatprep.subr.mxu0 0.0
    %2032 = vmatpush1.msra.mxu0 0.0
    %2033 = vmatprep.subr.mxu0 0.0
    %2034 = vmatpush1.msra.mxu0 0.0
    %2035 = vmatprep.subr.mxu0 0.0
    %2036 = vmatpush1.msra.mxu0 0.0
    %2037 = vmatprep.subr.mxu0 0.0
    %2038 = vmatpush1.msra.mxu0 0.0
    %2039 = vmatprep.subr.mxu0 0.0
    %2040 = vmatpush1.msra.mxu0 0.0
    %2041 = vmatprep.subr.mxu0 0.0
    %2042 = vmatpush1.msra.mxu0 0.0
    %2043 = vmatprep.subr.mxu0 0.0
    %2044 = vmatpush1.msra.mxu0 0.0
    %2045 = vmatprep.subr.mxu0 0.0
    %2046 = vmatpush1.msra.mxu0 0.0
    %2047 = vmatprep.subr.mxu0 0.0
    %2048 = vmatpush1.msra.mxu0 0.0
    %2049 = vmatprep.subr.mxu0 0.0
    %2050 = vmatpush1.msra.mxu0 0.0
    %2051 = vmatprep.subr.mxu0 0.0
    %2052 = vmatpush1.msra.mxu0 0.0
    %2053 = vmatprep.subr.mxu0 0.0
    %2054 = vmatpush1.msra.mxu0 0.0
    %2055 = vmatprep.subr.mxu0 0.0
    %2056 = vmatpush1.msra.mxu0 0.0
    %2057 = vmatprep.subr.mxu0 0.0
    %2058 = vmatpush1.msra.mxu0 0.0
    %2059 = vmatprep.subr.mxu0 0.0
    %2060 = vmatpush1.msra.mxu0 0.0
    %2061 = vmatprep.subr.mxu0 0.0
    %2062 = vmatpush1.msra.mxu0 0.0
    %2063 = vmatprep.subr.mxu0 0.0
    %2064 = vmatpush1.msra.mxu0 0.0
    %2065 = vmatprep.subr.mxu0 0.0
    %2066 = vmatpush1.msra.mxu0 0.0
    %2067 = vmatprep.subr.mxu0 0.0
    %2068 = vmatpush1.msra.mxu0 0.0
    %2069 = vmatprep.subr.mxu0 0.0
    %2070 = vmatpush1.msra.mxu0 0.0
    %2071 = vmatprep.subr.mxu0 0.0
    %2072 = vmatpush1.msra.mxu0 0.0
    %2073 = vmatprep.subr.mxu0 0.0
    %2074 = vmatpush1.msra.mxu0 0.0
    %2075 = vmatprep.subr.mxu0 0.0
    %2076 = vmatpush1.msra.mxu0 0.0
    %2077 = vmatprep.subr.mxu0 0.0
    %2078 = vmatpush1.msra.mxu0 0.0
    %2079 = vmatprep.subr.mxu0 0.0
    %2080 = vmatpush1.msra.mxu0 0.0
    %2081 = vmatprep.subr.mxu0 0.0
    %2082 = vmatpush1.msra.mxu0 0.0
    %2083 = vmatprep.subr.mxu0 0.0
    %2084 = vmatpush1.msra.mxu0 0.0
    %2085 = vmatprep.subr.mxu0 0.0
    %2086 = vmatpush1.msra.mxu0 0.0
    %2087 = vmatprep.subr.mxu0 0.0
    %2088 = vmatpush1.msra.mxu0 0.0
    %2089 = vmatprep.mubr.f32.mxu0 0.0
    %2090 = vmatmul.mubr.f32.gmra.mrb[0].mxu0 %v2023
    %v2091 = vpop.f32.mrb[0].mxu0
    %v2092 = vadd.f32 0.0, %v2091
    %v2093 = vpop.f32.mrb[0].mxu0
    %2094 = vdwg.mxu0
    %v2097 = vrot.slane %v2092, 7
    %v2098 = vsel %vm476, %v2097, %v2012
    %v2099 = vsel %vm234, %v2098, 0
    %2101 = vmatprep.subr.mxu0 0.0
    %2102 = vmatpush1.msra.mxu0 %v113
    %2103 = vmatprep.subr.mxu0 0.0
    %2104 = vmatpush1.msra.mxu0 %v114
    %2105 = vmatprep.subr.mxu0 0.0
    %2106 = vmatpush1.msra.mxu0 %v115
    %2107 = vmatprep.subr.mxu0 0.0
    %2108 = vmatpush1.msra.mxu0 %v116
    %2109 = vmatprep.subr.mxu0 0.0
    %2110 = vmatpush1.msra.mxu0 %v117
    %2111 = vmatprep.subr.mxu0 0.0
    %2112 = vmatpush1.msra.mxu0 %v118
    %2113 = vmatprep.subr.mxu0 0.0
    %2114 = vmatpush1.msra.mxu0 %v119
    %2115 = vmatprep.subr.mxu0 0.0
    %2116 = vmatpush1.msra.mxu0 %v120
    %2117 = vmatprep.subr.mxu0 0.0
    %2118 = vmatpush1.msra.mxu0 0.0
    %2119 = vmatprep.subr.mxu0 0.0
    %2120 = vmatpush1.msra.mxu0 0.0
    %2121 = vmatprep.subr.mxu0 0.0
    %2122 = vmatpush1.msra.mxu0 0.0
    %2123 = vmatprep.subr.mxu0 0.0
    %2124 = vmatpush1.msra.mxu0 0.0
    %2125 = vmatprep.subr.mxu0 0.0
    %2126 = vmatpush1.msra.mxu0 0.0
    %2127 = vmatprep.subr.mxu0 0.0
    %2128 = vmatpush1.msra.mxu0 0.0
    %2129 = vmatprep.subr.mxu0 0.0
    %2130 = vmatpush1.msra.mxu0 0.0
    %2131 = vmatprep.subr.mxu0 0.0
    %2132 = vmatpush1.msra.mxu0 0.0
    %2133 = vmatprep.subr.mxu0 0.0
    %2134 = vmatpush1.msra.mxu0 0.0
    %2135 = vmatprep.subr.mxu0 0.0
    %2136 = vmatpush1.msra.mxu0 0.0
    %2137 = vmatprep.subr.mxu0 0.0
    %2138 = vmatpush1.msra.mxu0 0.0
    %2139 = vmatprep.subr.mxu0 0.0
    %2140 = vmatpush1.msra.mxu0 0.0
    %2141 = vmatprep.subr.mxu0 0.0
    %2142 = vmatpush1.msra.mxu0 0.0
    %2143 = vmatprep.subr.mxu0 0.0
    %2144 = vmatpush1.msra.mxu0 0.0
    %2145 = vmatprep.subr.mxu0 0.0
    %2146 = vmatpush1.msra.mxu0 0.0
    %2147 = vmatprep.subr.mxu0 0.0
    %2148 = vmatpush1.msra.mxu0 0.0
    %2149 = vmatprep.subr.mxu0 0.0
    %2150 = vmatpush1.msra.mxu0 0.0
    %2151 = vmatprep.subr.mxu0 0.0
    %2152 = vmatpush1.msra.mxu0 0.0
    %2153 = vmatprep.subr.mxu0 0.0
    %2154 = vmatpush1.msra.mxu0 0.0
    %2155 = vmatprep.subr.mxu0 0.0
    %2156 = vmatpush1.msra.mxu0 0.0
    %2157 = vmatprep.subr.mxu0 0.0
    %2158 = vmatpush1.msra.mxu0 0.0
    %2159 = vmatprep.subr.mxu0 0.0
    %2160 = vmatpush1.msra.mxu0 0.0
    %2161 = vmatprep.subr.mxu0 0.0
    %2162 = vmatpush1.msra.mxu0 0.0
    %2163 = vmatprep.subr.mxu0 0.0
    %2164 = vmatpush1.msra.mxu0 0.0
    %2165 = vmatprep.mubr.f32.mxu0 0.0
    %2166 = vmatmul.mubr.f32.gmra.mrb[0].mxu0 %v2099
    %v2167 = vpop.f32.mrb[0].mxu0
    %v2168 = vadd.f32 0.0, %v2167
    %v2169 = vpop.f32.mrb[0].mxu0
    %2170 = vdwg.mxu0
    %v2171 = vld [vmem:[#allocation2 + $0x6] sm:$0x3]
    %v2172 = vadd.f32 %v2171, %v2168
    %2173 = vst [vmem:[#allocation3 + $0x6] sm:$0x3] %v2172
    %v2174 = vadd.f32 %v2172, %v1808
    %v2175 = vxor.u32 %v2174, 2147483648
    %v2176 = vmul.f32 %v2175, 1.442695
    %v2177 = vpow.pop %v2176
    %v2178 = vadd.f32 %v2177, 1.0
    %v2179 = vrcp.pop %v2178
    %v2180 = vmul.f32 1.0, %v2179
    %2181 = vrot.lane.b32.xlu0 %v1808, 64
    %v2182 = vpop.permute.xlu0 %2181
    %v2184 = vmul.f32 %v2180, %v2182
    %2186 = vrot.lane.b32.xlu0 %v2184, 64
    %v2187 = vpop.permute.xlu0 %2186
    %v2189 = vadd.f32 %v2172, %v2187
    %v2190 = vtanh.pop %v2189
    %v2191 = vsub.f32 1.0, %v2180
    %2193 = vrot.lane.b32.xlu0 %v2190, 96
    %v2194 = vpop.permute.xlu0 %2193
    %v2196 = vmul.f32 %v2191, %v2194
    %v2197 = vmul.f32 %v2180, %v1733
    %v2198 = vadd.f32 %v2196, %v2197
    %2200 = vrot.lane.b32.xlu0 %v2198, 96
    %v2201 = vpop.permute.xlu0 %2200
    %2203 = vst.msk [vmem:[#allocation4 + $0x6] sm:$0x3] %vm807, %v2201
    %v2204 = vsel %vm150, %v2201, 0
    %2206 = vmatprep.subr.mxu0 0.0
    %2207 = vmatpush1.msra.mxu0 %v101
    %2208 = vmatprep.subr.mxu0 0.0
    %2209 = vmatpush1.msra.mxu0 %v102
    %2210 = vmatprep.subr.mxu0 0.0
    %2211 = vmatpush1.msra.mxu0 %v103
    %2212 = vmatprep.subr.mxu0 0.0
    %2213 = vmatpush1.msra.mxu0 %v104
    %2214 = vmatprep.subr.mxu0 0.0
    %2215 = vmatpush1.msra.mxu0 0.0
    %2216 = vmatprep.subr.mxu0 0.0
    %2217 = vmatpush1.msra.mxu0 0.0
    %2218 = vmatprep.subr.mxu0 0.0
    %2219 = vmatpush1.msra.mxu0 0.0
    %2220 = vmatprep.subr.mxu0 0.0
    %2221 = vmatpush1.msra.mxu0 0.0
    %2222 = vmatprep.subr.mxu0 0.0
    %2223 = vmatpush1.msra.mxu0 0.0
    %2224 = vmatprep.subr.mxu0 0.0
    %2225 = vmatpush1.msra.mxu0 0.0
    %2226 = vmatprep.subr.mxu0 0.0
    %2227 = vmatpush1.msra.mxu0 0.0
    %2228 = vmatprep.subr.mxu0 0.0
    %2229 = vmatpush1.msra.mxu0 0.0
    %2230 = vmatprep.subr.mxu0 0.0
    %2231 = vmatpush1.msra.mxu0 0.0
    %2232 = vmatprep.subr.mxu0 0.0
    %2233 = vmatpush1.msra.mxu0 0.0
    %2234 = vmatprep.subr.mxu0 0.0
    %2235 = vmatpush1.msra.mxu0 0.0
    %2236 = vmatprep.subr.mxu0 0.0
    %2237 = vmatpush1.msra.mxu0 0.0
    %2238 = vmatprep.subr.mxu0 0.0
    %2239 = vmatpush1.msra.mxu0 0.0
    %2240 = vmatprep.subr.mxu0 0.0
    %2241 = vmatpush1.msra.mxu0 0.0
    %2242 = vmatprep.subr.mxu0 0.0
    %2243 = vmatpush1.msra.mxu0 0.0
    %2244 = vmatprep.subr.mxu0 0.0
    %2245 = vmatpush1.msra.mxu0 0.0
    %2246 = vmatprep.subr.mxu0 0.0
    %2247 = vmatpush1.msra.mxu0 0.0
    %2248 = vmatprep.subr.mxu0 0.0
    %2249 = vmatpush1.msra.mxu0 0.0
    %2250 = vmatprep.subr.mxu0 0.0
    %2251 = vmatpush1.msra.mxu0 0.0
    %2252 = vmatprep.subr.mxu0 0.0
    %2253 = vmatpush1.msra.mxu0 0.0
    %2254 = vmatprep.subr.mxu0 0.0
    %2255 = vmatpush1.msra.mxu0 0.0
    %2256 = vmatprep.subr.mxu0 0.0
    %2257 = vmatpush1.msra.mxu0 0.0
    %2258 = vmatprep.subr.mxu0 0.0
    %2259 = vmatpush1.msra.mxu0 0.0
    %2260 = vmatprep.subr.mxu0 0.0
    %2261 = vmatpush1.msra.mxu0 0.0
    %2262 = vmatprep.subr.mxu0 0.0
    %2263 = vmatpush1.msra.mxu0 0.0
    %2264 = vmatprep.subr.mxu0 0.0
    %2265 = vmatpush1.msra.mxu0 0.0
    %2266 = vmatprep.subr.mxu0 0.0
    %2267 = vmatpush1.msra.mxu0 0.0
    %2268 = vmatprep.subr.mxu0 0.0
    %2269 = vmatpush1.msra.mxu0 0.0
    %2270 = vmatprep.mubr.f32.mxu0 0.0
    %2271 = vmatmul.mubr.f32.gmra.mrb[0].mxu0 %v2204
    %v2272 = vpop.f32.mrb[0].mxu0
    %v2273 = vadd.f32 %v133, %v2272
    %v2274 = vpop.f32.mrb[0].mxu0
    %2275 = vdwg.mxu0
    %v2278 = vunpack.c.l.s4 1966171168
    %v2279 = vunpack.c.0.s8 %v2278
    %v2280 = vlaneseq
    %v2281 = vshrl.u32 %v2280, 7
    %v2282 = vsub.s32 %v2279, %v2281
    %v2283 = vrot.slane %v2273, %v2282
    %v2284 = vcombine.high %v2283, %v2283
    %v2286 = vunpack.c.l.s4 1966171168
    %v2287 = vunpack.c.0.s8 %v2286
    %v2288 = vlaneseq
    %v2289 = vshrl.u32 %v2288, 7
    %v2290 = vsub.s32 %v2287, %v2289
    %v2291 = vrot.slane %v2283, %v2290
    %v2293 = vunpack.c.l.s4 1966171168
    %v2294 = vunpack.c.0.s8 %v2293
    %v2295 = vlaneseq
    %v2296 = vshrl.u32 %v2295, 7
    %v2297 = vsub.s32 %v2294, %v2296
    %v2298 = vrot.slane %v2284, %v2297
    %v2299 = vlaneseq
    %v2300 = vshrl.u32 %v2299, 7
    %v2301 = vsub.s32 0, %v2300
    %v2302 = vrot.slane %v2291, %v2301
    %v2303 = vlaneseq
    %v2304 = vshrl.u32 %v2303, 7
    %v2305 = vsub.s32 0, %v2304
    %v2306 = vrot.slane %v2298, %v2305
    %2307 = vrot.lane.b32.xlu0 %v2302, 32
    %v2308 = vpop.permute.xlu0 %2307
    %2309 = vrot.lane.b32.xlu0 %v2306, 32
    %v2310 = vpop.permute.xlu0 %2309
    %v2313 = vadd.f32 %v308, %v2308
    %v2314 = vadd.f32 %v313, %v2310
    %v2315 = vtanh.pop %v2313
    %v2316 = vtanh.pop %v2314
    %v2317 = vmul.f32 %v2315, %v138
    %v2318 = vmul.f32 %v2316, %v138
    %v2319 = vsel %vm150, %v2317, 0.0
    %2320 = vadd.xlane.f32.xlu0 %v2319
    %v2321 = vpop.xlane.xlu0 %2320
    %v2322 = vsel %vm150, %v2318, 0.0
    %2323 = vadd.xlane.f32.xlu0 %v2322
    %v2324 = vpop.xlane.xlu0 %2323
    %v2325 = vadd.f32 %v2321, %v446
    %v2326 = vadd.f32 %v2324, %v453
    %2329 = vset.pattern.permute.xlu0 0
    %2330 = vperm.xlu0 %2329, %v2325
    %v2331 = vpop.permute.xlu0 %2330
    %2332 = vset.pattern.permute.xlu0 0
    %2333 = vperm.xlu0 %2332, %v2326
    %v2334 = vpop.permute.xlu0 %2333
    %v2335 = vlaneseq
    %v2336 = vshrl.u32 %v2335, 7
    %v2337 = vsub.s32 %v467, %v2336
    %v2338 = vrot.slane %v2331, %v2337
    %v2339 = vlaneseq
    %v2340 = vshrl.u32 %v2339, 7
    %v2341 = vsub.s32 %v467, %v2340
    %v2342 = vrot.slane %v2334, %v2341
    %v2343 = vsel %vm476, %v2342, %v2338
    %v2345 = vsel %vm479, %v2343, -inf
    %2346 = vmax.xlane.f32.xlu0 %v2345
    %v2347 = vpop.xlane.xlu0 %2346
    %v2349 = vlaneseq
    %v2350 = vshrl.u32 %v2349, 7
    %v2351 = vsub.s32 0, %v2350
    %v2352 = vrot.slane %v2347, %v2351
    %v2353 = vlaneseq
    %v2354 = vshrl.u32 %v2353, 7
    %v2355 = vsub.s32 1, %v2354
    %v2356 = vrot.slane %v2347, %v2355
    %v2359 = vsub.f32 %v2325, %v2352
    %v2360 = vsub.f32 %v2326, %v2356
    %v2361 = vmul.f32 %v2359, 1.442695
    %v2362 = vpow.pop %v2361
    %v2363 = vmul.f32 %v2360, 1.442695
    %v2364 = vpow.pop %v2363
    %2367 = vset.pattern.permute.xlu0 0
    %2368 = vperm.xlu0 %2367, %v2362
    %v2369 = vpop.permute.xlu0 %2368
    %2370 = vset.pattern.permute.xlu0 0
    %2371 = vperm.xlu0 %2370, %v2364
    %v2372 = vpop.permute.xlu0 %2371
    %v2373 = vlaneseq
    %v2374 = vshrl.u32 %v2373, 7
    %v2375 = vsub.s32 %v467, %v2374
    %v2376 = vrot.slane %v2369, %v2375
    %v2377 = vlaneseq
    %v2378 = vshrl.u32 %v2377, 7
    %v2379 = vsub.s32 %v467, %v2378
    %v2380 = vrot.slane %v2372, %v2379
    %v2381 = vsel %vm476, %v2380, %v2376
    %v2383 = vsel %vm479, %v2381, 0.0
    %2384 = vadd.xlane.f32.xlu0 %v2383
    %v2385 = vpop.xlane.xlu0 %2384
    %v2386 = vrcp.pop %v2385
    %v2388 = vlaneseq
    %v2389 = vshrl.u32 %v2388, 7
    %v2390 = vsub.s32 0, %v2389
    %v2391 = vrot.slane %v2386, %v2390
    %v2392 = vlaneseq
    %v2393 = vshrl.u32 %v2392, 7
    %v2394 = vsub.s32 1, %v2393
    %v2395 = vrot.slane %v2386, %v2394
    %v2398 = vmul.f32 %v2362, %v2391
    %v2399 = vmul.f32 %v2364, %v2395
    %2401 = vset.pattern.permute.xlu0 0
    %2402 = vperm.xlu0 %2401, %v2398
    %v2403 = vpop.permute.xlu0 %2402
    %v2404 = vlaneseq
    %v2405 = vshrl.u32 %v2404, 7
    %v2406 = vsub.s32 %v467, %v2405
    %v2407 = vrot.slane %v2403, %v2406
    %v2408 = vsel %vm543, %v2407, 0
    %2410 = vmatprep.subr.mxu0 0.0
    %2411 = vmatpush1.msra.mxu0 %v98
    %2412 = vmatprep.subr.mxu0 0.0
    %2413 = vmatpush1.msra.mxu0 0.0
    %2414 = vmatprep.subr.mxu0 0.0
    %2415 = vmatpush1.msra.mxu0 0.0
    %2416 = vmatprep.subr.mxu0 0.0
    %2417 = vmatpush1.msra.mxu0 0.0
    %2418 = vmatprep.subr.mxu0 0.0
    %2419 = vmatpush1.msra.mxu0 0.0
    %2420 = vmatprep.subr.mxu0 0.0
    %2421 = vmatpush1.msra.mxu0 0.0
    %2422 = vmatprep.subr.mxu0 0.0
    %2423 = vmatpush1.msra.mxu0 0.0
    %2424 = vmatprep.subr.mxu0 0.0
    %2425 = vmatpush1.msra.mxu0 0.0
    %2426 = vmatprep.subr.mxu0 0.0
    %2427 = vmatpush1.msra.mxu0 0.0
    %2428 = vmatprep.subr.mxu0 0.0
    %2429 = vmatpush1.msra.mxu0 0.0
    %2430 = vmatprep.subr.mxu0 0.0
    %2431 = vmatpush1.msra.mxu0 0.0
    %2432 = vmatprep.subr.mxu0 0.0
    %2433 = vmatpush1.msra.mxu0 0.0
    %2434 = vmatprep.subr.mxu0 0.0
    %2435 = vmatpush1.msra.mxu0 0.0
    %2436 = vmatprep.subr.mxu0 0.0
    %2437 = vmatpush1.msra.mxu0 0.0
    %2438 = vmatprep.subr.mxu0 0.0
    %2439 = vmatpush1.msra.mxu0 0.0
    %2440 = vmatprep.subr.mxu0 0.0
    %2441 = vmatpush1.msra.mxu0 0.0
    %2442 = vmatprep.subr.mxu0 0.0
    %2443 = vmatpush1.msra.mxu0 0.0
    %2444 = vmatprep.subr.mxu0 0.0
    %2445 = vmatpush1.msra.mxu0 0.0
    %2446 = vmatprep.subr.mxu0 0.0
    %2447 = vmatpush1.msra.mxu0 0.0
    %2448 = vmatprep.subr.mxu0 0.0
    %2449 = vmatpush1.msra.mxu0 0.0
    %2450 = vmatprep.subr.mxu0 0.0
    %2451 = vmatpush1.msra.mxu0 0.0
    %2452 = vmatprep.subr.mxu0 0.0
    %2453 = vmatpush1.msra.mxu0 0.0
    %2454 = vmatprep.subr.mxu0 0.0
    %2455 = vmatpush1.msra.mxu0 0.0
    %2456 = vmatprep.subr.mxu0 0.0
    %2457 = vmatpush1.msra.mxu0 0.0
    %2458 = vmatprep.subr.mxu0 0.0
    %2459 = vmatpush1.msra.mxu0 0.0
    %2460 = vmatprep.subr.mxu0 0.0
    %2461 = vmatpush1.msra.mxu0 0.0
    %2462 = vmatprep.subr.mxu0 0.0
    %2463 = vmatpush1.msra.mxu0 0.0
    %2464 = vmatprep.subr.mxu0 0.0
    %2465 = vmatpush1.msra.mxu0 0.0
    %2466 = vmatprep.subr.mxu0 0.0
    %2467 = vmatpush1.msra.mxu0 0.0
    %2468 = vmatprep.subr.mxu0 0.0
    %2469 = vmatpush1.msra.mxu0 0.0
    %2470 = vmatprep.subr.mxu0 0.0
    %2471 = vmatpush1.msra.mxu0 0.0
    %2472 = vmatprep.subr.mxu0 0.0
    %2473 = vmatpush1.msra.mxu0 0.0
    %2474 = vmatprep.mubr.f32.mxu0 0.0
    %2475 = vmatmul.mubr.f32.gmra.mrb[0].mxu0 %v2408
    %v2476 = vpop.f32.mrb[0].mxu0
    %v2477 = vadd.f32 0.0, %v2476
    %v2478 = vpop.f32.mrb[0].mxu0
    %2479 = vdwg.mxu0
    %2481 = vset.pattern.permute.xlu0 0
    %2482 = vperm.xlu0 %2481, %v2399
    %v2483 = vpop.permute.xlu0 %2482
    %v2484 = vlaneseq
    %v2485 = vshrl.u32 %v2484, 7
    %v2486 = vsub.s32 %v467, %v2485
    %v2487 = vrot.slane %v2483, %v2486
    %v2488 = vsel %vm543, %v2487, 0
    %2490 = vmatprep.subr.mxu0 0.0
    %2491 = vmatpush1.msra.mxu0 %v99
    %2492 = vmatprep.subr.mxu0 0.0
    %2493 = vmatpush1.msra.mxu0 0.0
    %2494 = vmatprep.subr.mxu0 0.0
    %2495 = vmatpush1.msra.mxu0 0.0
    %2496 = vmatprep.subr.mxu0 0.0
    %2497 = vmatpush1.msra.mxu0 0.0
    %2498 = vmatprep.subr.mxu0 0.0
    %2499 = vmatpush1.msra.mxu0 0.0
    %2500 = vmatprep.subr.mxu0 0.0
    %2501 = vmatpush1.msra.mxu0 0.0
    %2502 = vmatprep.subr.mxu0 0.0
    %2503 = vmatpush1.msra.mxu0 0.0
    %2504 = vmatprep.subr.mxu0 0.0
    %2505 = vmatpush1.msra.mxu0 0.0
    %2506 = vmatprep.subr.mxu0 0.0
    %2507 = vmatpush1.msra.mxu0 0.0
    %2508 = vmatprep.subr.mxu0 0.0
    %2509 = vmatpush1.msra.mxu0 0.0
    %2510 = vmatprep.subr.mxu0 0.0
    %2511 = vmatpush1.msra.mxu0 0.0
    %2512 = vmatprep.subr.mxu0 0.0
    %2513 = vmatpush1.msra.mxu0 0.0
    %2514 = vmatprep.subr.mxu0 0.0
    %2515 = vmatpush1.msra.mxu0 0.0
    %2516 = vmatprep.subr.mxu0 0.0
    %2517 = vmatpush1.msra.mxu0 0.0
    %2518 = vmatprep.subr.mxu0 0.0
    %2519 = vmatpush1.msra.mxu0 0.0
    %2520 = vmatprep.subr.mxu0 0.0
    %2521 = vmatpush1.msra.mxu0 0.0
    %2522 = vmatprep.subr.mxu0 0.0
    %2523 = vmatpush1.msra.mxu0 0.0
    %2524 = vmatprep.subr.mxu0 0.0
    %2525 = vmatpush1.msra.mxu0 0.0
    %2526 = vmatprep.subr.mxu0 0.0
    %2527 = vmatpush1.msra.mxu0 0.0
    %2528 = vmatprep.subr.mxu0 0.0
    %2529 = vmatpush1.msra.mxu0 0.0
    %2530 = vmatprep.subr.mxu0 0.0
    %2531 = vmatpush1.msra.mxu0 0.0
    %2532 = vmatprep.subr.mxu0 0.0
    %2533 = vmatpush1.msra.mxu0 0.0
    %2534 = vmatprep.subr.mxu0 0.0
    %2535 = vmatpush1.msra.mxu0 0.0
    %2536 = vmatprep.subr.mxu0 0.0
    %2537 = vmatpush1.msra.mxu0 0.0
    %2538 = vmatprep.subr.mxu0 0.0
    %2539 = vmatpush1.msra.mxu0 0.0
    %2540 = vmatprep.subr.mxu0 0.0
    %2541 = vmatpush1.msra.mxu0 0.0
    %2542 = vmatprep.subr.mxu0 0.0
    %2543 = vmatpush1.msra.mxu0 0.0
    %2544 = vmatprep.subr.mxu0 0.0
    %2545 = vmatpush1.msra.mxu0 0.0
    %2546 = vmatprep.subr.mxu0 0.0
    %2547 = vmatpush1.msra.mxu0 0.0
    %2548 = vmatprep.subr.mxu0 0.0
    %2549 = vmatpush1.msra.mxu0 0.0
    %2550 = vmatprep.subr.mxu0 0.0
    %2551 = vmatpush1.msra.mxu0 0.0
    %2552 = vmatprep.subr.mxu0 0.0
    %2553 = vmatpush1.msra.mxu0 0.0
    %2554 = vmatprep.mubr.f32.mxu0 0.0
    %2555 = vmatmul.mubr.f32.gmra.mrb[0].mxu0 %v2488
    %v2556 = vpop.f32.mrb[0].mxu0
    %v2557 = vadd.f32 0.0, %v2556
    %v2558 = vpop.f32.mrb[0].mxu0
    %2559 = vdwg.mxu0
    %v2562 = vrot.slane %v2557, 7
    %v2563 = vsel %vm476, %v2562, %v2477
    %v2564 = vsel %vm234, %v2563, 0
    %2566 = vmatprep.subr.mxu0 0.0
    %2567 = vmatpush1.msra.mxu0 %v113
    %2568 = vmatprep.subr.mxu0 0.0
    %2569 = vmatpush1.msra.mxu0 %v114
    %2570 = vmatprep.subr.mxu0 0.0
    %2571 = vmatpush1.msra.mxu0 %v115
    %2572 = vmatprep.subr.mxu0 0.0
    %2573 = vmatpush1.msra.mxu0 %v116
    %2574 = vmatprep.subr.mxu0 0.0
    %2575 = vmatpush1.msra.mxu0 %v117
    %2576 = vmatprep.subr.mxu0 0.0
    %2577 = vmatpush1.msra.mxu0 %v118
    %2578 = vmatprep.subr.mxu0 0.0
    %2579 = vmatpush1.msra.mxu0 %v119
    %2580 = vmatprep.subr.mxu0 0.0
    %2581 = vmatpush1.msra.mxu0 %v120
    %2582 = vmatprep.subr.mxu0 0.0
    %2583 = vmatpush1.msra.mxu0 0.0
    %2584 = vmatprep.subr.mxu0 0.0
    %2585 = vmatpush1.msra.mxu0 0.0
    %2586 = vmatprep.subr.mxu0 0.0
    %2587 = vmatpush1.msra.mxu0 0.0
    %2588 = vmatprep.subr.mxu0 0.0
    %2589 = vmatpush1.msra.mxu0 0.0
    %2590 = vmatprep.subr.mxu0 0.0
    %2591 = vmatpush1.msra.mxu0 0.0
    %2592 = vmatprep.subr.mxu0 0.0
    %2593 = vmatpush1.msra.mxu0 0.0
    %2594 = vmatprep.subr.mxu0 0.0
    %2595 = vmatpush1.msra.mxu0 0.0
    %2596 = vmatprep.subr.mxu0 0.0
    %2597 = vmatpush1.msra.mxu0 0.0
    %2598 = vmatprep.subr.mxu0 0.0
    %2599 = vmatpush1.msra.mxu0 0.0
    %2600 = vmatprep.subr.mxu0 0.0
    %2601 = vmatpush1.msra.mxu0 0.0
    %2602 = vmatprep.subr.mxu0 0.0
    %2603 = vmatpush1.msra.mxu0 0.0
    %2604 = vmatprep.subr.mxu0 0.0
    %2605 = vmatpush1.msra.mxu0 0.0
    %2606 = vmatprep.subr.mxu0 0.0
    %2607 = vmatpush1.msra.mxu0 0.0
    %2608 = vmatprep.subr.mxu0 0.0
    %2609 = vmatpush1.msra.mxu0 0.0
    %2610 = vmatprep.subr.mxu0 0.0
    %2611 = vmatpush1.msra.mxu0 0.0
    %2612 = vmatprep.subr.mxu0 0.0
    %2613 = vmatpush1.msra.mxu0 0.0
    %2614 = vmatprep.subr.mxu0 0.0
    %2615 = vmatpush1.msra.mxu0 0.0
    %2616 = vmatprep.subr.mxu0 0.0
    %2617 = vmatpush1.msra.mxu0 0.0
    %2618 = vmatprep.subr.mxu0 0.0
    %2619 = vmatpush1.msra.mxu0 0.0
    %2620 = vmatprep.subr.mxu0 0.0
    %2621 = vmatpush1.msra.mxu0 0.0
    %2622 = vmatprep.subr.mxu0 0.0
    %2623 = vmatpush1.msra.mxu0 0.0
    %2624 = vmatprep.subr.mxu0 0.0
    %2625 = vmatpush1.msra.mxu0 0.0
    %2626 = vmatprep.subr.mxu0 0.0
    %2627 = vmatpush1.msra.mxu0 0.0
    %2628 = vmatprep.subr.mxu0 0.0
    %2629 = vmatpush1.msra.mxu0 0.0
    %2630 = vmatprep.mubr.f32.mxu0 0.0
    %2631 = vmatmul.mubr.f32.gmra.mrb[0].mxu0 %v2564
    %v2632 = vpop.f32.mrb[0].mxu0
    %v2633 = vadd.f32 0.0, %v2632
    %v2634 = vpop.f32.mrb[0].mxu0
    %2635 = vdwg.mxu0
    %v2636 = vld [vmem:[#allocation2 + $0x8] sm:$0x3]
    %v2637 = vadd.f32 %v2636, %v2633
    %2638 = vst [vmem:[#allocation3 + $0x8] sm:$0x3] %v2637
    %v2639 = vadd.f32 %v2637, %v2273
    %v2640 = vxor.u32 %v2639, 2147483648
    %v2641 = vmul.f32 %v2640, 1.442695
    %v2642 = vpow.pop %v2641
    %v2643 = vadd.f32 %v2642, 1.0
    %v2644 = vrcp.pop %v2643
    %v2645 = vmul.f32 1.0, %v2644
    %2646 = vrot.lane.b32.xlu0 %v2273, 64
    %v2647 = vpop.permute.xlu0 %2646
    %v2649 = vmul.f32 %v2645, %v2647
    %2651 = vrot.lane.b32.xlu0 %v2649, 64
    %v2652 = vpop.permute.xlu0 %2651
    %v2654 = vadd.f32 %v2637, %v2652
    %v2655 = vtanh.pop %v2654
    %v2656 = vsub.f32 1.0, %v2645
    %2658 = vrot.lane.b32.xlu0 %v2655, 96
    %v2659 = vpop.permute.xlu0 %2658
    %v2661 = vmul.f32 %v2656, %v2659
    %v2662 = vmul.f32 %v2645, %v2198
    %v2663 = vadd.f32 %v2661, %v2662
    %2665 = vrot.lane.b32.xlu0 %v2663, 96
    %v2666 = vpop.permute.xlu0 %2665
    %2668 = vst.msk [vmem:[#allocation4 + $0x8] sm:$0x3] %vm807, %v2666
    %v2669 = vsel %vm150, %v2666, 0
    %2671 = vmatprep.subr.mxu0 0.0
    %2672 = vmatpush1.msra.mxu0 %v101
    %2673 = vmatprep.subr.mxu0 0.0
    %2674 = vmatpush1.msra.mxu0 %v102
    %2675 = vmatprep.subr.mxu0 0.0
    %2676 = vmatpush1.msra.mxu0 %v103
    %2677 = vmatprep.subr.mxu0 0.0
    %2678 = vmatpush1.msra.mxu0 %v104
    %2679 = vmatprep.subr.mxu0 0.0
    %2680 = vmatpush1.msra.mxu0 0.0
    %2681 = vmatprep.subr.mxu0 0.0
    %2682 = vmatpush1.msra.mxu0 0.0
    %2683 = vmatprep.subr.mxu0 0.0
    %2684 = vmatpush1.msra.mxu0 0.0
    %2685 = vmatprep.subr.mxu0 0.0
    %2686 = vmatpush1.msra.mxu0 0.0
    %2687 = vmatprep.subr.mxu0 0.0
    %2688 = vmatpush1.msra.mxu0 0.0
    %2689 = vmatprep.subr.mxu0 0.0
    %2690 = vmatpush1.msra.mxu0 0.0
    %2691 = vmatprep.subr.mxu0 0.0
    %2692 = vmatpush1.msra.mxu0 0.0
    %2693 = vmatprep.subr.mxu0 0.0
    %2694 = vmatpush1.msra.mxu0 0.0
    %2695 = vmatprep.subr.mxu0 0.0
    %2696 = vmatpush1.msra.mxu0 0.0
    %2697 = vmatprep.subr.mxu0 0.0
    %2698 = vmatpush1.msra.mxu0 0.0
    %2699 = vmatprep.subr.mxu0 0.0
    %2700 = vmatpush1.msra.mxu0 0.0
    %2701 = vmatprep.subr.mxu0 0.0
    %2702 = vmatpush1.msra.mxu0 0.0
    %2703 = vmatprep.subr.mxu0 0.0
    %2704 = vmatpush1.msra.mxu0 0.0
    %2705 = vmatprep.subr.mxu0 0.0
    %2706 = vmatpush1.msra.mxu0 0.0
    %2707 = vmatprep.subr.mxu0 0.0
    %2708 = vmatpush1.msra.mxu0 0.0
    %2709 = vmatprep.subr.mxu0 0.0
    %2710 = vmatpush1.msra.mxu0 0.0
    %2711 = vmatprep.subr.mxu0 0.0
    %2712 = vmatpush1.msra.mxu0 0.0
    %2713 = vmatprep.subr.mxu0 0.0
    %2714 = vmatpush1.msra.mxu0 0.0
    %2715 = vmatprep.subr.mxu0 0.0
    %2716 = vmatpush1.msra.mxu0 0.0
    %2717 = vmatprep.subr.mxu0 0.0
    %2718 = vmatpush1.msra.mxu0 0.0
    %2719 = vmatprep.subr.mxu0 0.0
    %2720 = vmatpush1.msra.mxu0 0.0
    %2721 = vmatprep.subr.mxu0 0.0
    %2722 = vmatpush1.msra.mxu0 0.0
    %2723 = vmatprep.subr.mxu0 0.0
    %2724 = vmatpush1.msra.mxu0 0.0
    %2725 = vmatprep.subr.mxu0 0.0
    %2726 = vmatpush1.msra.mxu0 0.0
    %2727 = vmatprep.subr.mxu0 0.0
    %2728 = vmatpush1.msra.mxu0 0.0
    %2729 = vmatprep.subr.mxu0 0.0
    %2730 = vmatpush1.msra.mxu0 0.0
    %2731 = vmatprep.subr.mxu0 0.0
    %2732 = vmatpush1.msra.mxu0 0.0
    %2733 = vmatprep.subr.mxu0 0.0
    %2734 = vmatpush1.msra.mxu0 0.0
    %2735 = vmatprep.mubr.f32.mxu0 0.0
    %2736 = vmatmul.mubr.f32.gmra.mrb[0].mxu0 %v2669
    %v2737 = vpop.f32.mrb[0].mxu0
    %v2738 = vadd.f32 %v133, %v2737
    %v2739 = vpop.f32.mrb[0].mxu0
    %2740 = vdwg.mxu0
    %v2743 = vunpack.c.l.s4 1966171168
    %v2744 = vunpack.c.0.s8 %v2743
    %v2745 = vlaneseq
    %v2746 = vshrl.u32 %v2745, 7
    %v2747 = vsub.s32 %v2744, %v2746
    %v2748 = vrot.slane %v2738, %v2747
    %v2749 = vcombine.high %v2748, %v2748
    %v2751 = vunpack.c.l.s4 1966171168
    %v2752 = vunpack.c.0.s8 %v2751
    %v2753 = vlaneseq
    %v2754 = vshrl.u32 %v2753, 7
    %v2755 = vsub.s32 %v2752, %v2754
    %v2756 = vrot.slane %v2748, %v2755
    %v2758 = vunpack.c.l.s4 1966171168
    %v2759 = vunpack.c.0.s8 %v2758
    %v2760 = vlaneseq
    %v2761 = vshrl.u32 %v2760, 7
    %v2762 = vsub.s32 %v2759, %v2761
    %v2763 = vrot.slane %v2749, %v2762
    %v2764 = vlaneseq
    %v2765 = vshrl.u32 %v2764, 7
    %v2766 = vsub.s32 0, %v2765
    %v2767 = vrot.slane %v2756, %v2766
    %v2768 = vlaneseq
    %v2769 = vshrl.u32 %v2768, 7
    %v2770 = vsub.s32 0, %v2769
    %v2771 = vrot.slane %v2763, %v2770
    %2772 = vrot.lane.b32.xlu0 %v2767, 32
    %v2773 = vpop.permute.xlu0 %2772
    %2774 = vrot.lane.b32.xlu0 %v2771, 32
    %v2775 = vpop.permute.xlu0 %2774
    %v2778 = vadd.f32 %v308, %v2773
    %v2779 = vadd.f32 %v313, %v2775
    %v2780 = vtanh.pop %v2778
    %v2781 = vtanh.pop %v2779
    %v2782 = vmul.f32 %v2780, %v138
    %v2783 = vmul.f32 %v2781, %v138
    %v2784 = vsel %vm150, %v2782, 0.0
    %2785 = vadd.xlane.f32.xlu0 %v2784
    %v2786 = vpop.xlane.xlu0 %2785
    %v2787 = vsel %vm150, %v2783, 0.0
    %2788 = vadd.xlane.f32.xlu0 %v2787
    %v2789 = vpop.xlane.xlu0 %2788
    %v2790 = vadd.f32 %v2786, %v446
    %v2791 = vadd.f32 %v2789, %v453
    %2794 = vset.pattern.permute.xlu0 0
    %2795 = vperm.xlu0 %2794, %v2790
    %v2796 = vpop.permute.xlu0 %2795
    %2797 = vset.pattern.permute.xlu0 0
    %2798 = vperm.xlu0 %2797, %v2791
    %v2799 = vpop.permute.xlu0 %2798
    %v2800 = vlaneseq
    %v2801 = vshrl.u32 %v2800, 7
    %v2802 = vsub.s32 %v467, %v2801
    %v2803 = vrot.slane %v2796, %v2802
    %v2804 = vlaneseq
    %v2805 = vshrl.u32 %v2804, 7
    %v2806 = vsub.s32 %v467, %v2805
    %v2807 = vrot.slane %v2799, %v2806
    %v2808 = vsel %vm476, %v2807, %v2803
    %v2810 = vsel %vm479, %v2808, -inf
    %2811 = vmax.xlane.f32.xlu0 %v2810
    %v2812 = vpop.xlane.xlu0 %2811
    %v2814 = vlaneseq
    %v2815 = vshrl.u32 %v2814, 7
    %v2816 = vsub.s32 0, %v2815
    %v2817 = vrot.slane %v2812, %v2816
    %v2818 = vlaneseq
    %v2819 = vshrl.u32 %v2818, 7
    %v2820 = vsub.s32 1, %v2819
    %v2821 = vrot.slane %v2812, %v2820
    %v2824 = vsub.f32 %v2790, %v2817
    %v2825 = vsub.f32 %v2791, %v2821
    %v2826 = vmul.f32 %v2824, 1.442695
    %v2827 = vpow.pop %v2826
    %v2828 = vmul.f32 %v2825, 1.442695
    %v2829 = vpow.pop %v2828
    %2832 = vset.pattern.permute.xlu0 0
    %2833 = vperm.xlu0 %2832, %v2827
    %v2834 = vpop.permute.xlu0 %2833
    %2835 = vset.pattern.permute.xlu0 0
    %2836 = vperm.xlu0 %2835, %v2829
    %v2837 = vpop.permute.xlu0 %2836
    %v2838 = vlaneseq
    %v2839 = vshrl.u32 %v2838, 7
    %v2840 = vsub.s32 %v467, %v2839
    %v2841 = vrot.slane %v2834, %v2840
    %v2842 = vlaneseq
    %v2843 = vshrl.u32 %v2842, 7
    %v2844 = vsub.s32 %v467, %v2843
    %v2845 = vrot.slane %v2837, %v2844
    %v2846 = vsel %vm476, %v2845, %v2841
    %v2848 = vsel %vm479, %v2846, 0.0
    %2849 = vadd.xlane.f32.xlu0 %v2848
    %v2850 = vpop.xlane.xlu0 %2849
    %v2851 = vrcp.pop %v2850
    %v2853 = vlaneseq
    %v2854 = vshrl.u32 %v2853, 7
    %v2855 = vsub.s32 0, %v2854
    %v2856 = vrot.slane %v2851, %v2855
    %v2857 = vlaneseq
    %v2858 = vshrl.u32 %v2857, 7
    %v2859 = vsub.s32 1, %v2858
    %v2860 = vrot.slane %v2851, %v2859
    %v2863 = vmul.f32 %v2827, %v2856
    %v2864 = vmul.f32 %v2829, %v2860
    %2866 = vset.pattern.permute.xlu0 0
    %2867 = vperm.xlu0 %2866, %v2863
    %v2868 = vpop.permute.xlu0 %2867
    %v2869 = vlaneseq
    %v2870 = vshrl.u32 %v2869, 7
    %v2871 = vsub.s32 %v467, %v2870
    %v2872 = vrot.slane %v2868, %v2871
    %v2873 = vsel %vm543, %v2872, 0
    %2875 = vmatprep.subr.mxu0 0.0
    %2876 = vmatpush1.msra.mxu0 %v98
    %2877 = vmatprep.subr.mxu0 0.0
    %2878 = vmatpush1.msra.mxu0 0.0
    %2879 = vmatprep.subr.mxu0 0.0
    %2880 = vmatpush1.msra.mxu0 0.0
    %2881 = vmatprep.subr.mxu0 0.0
    %2882 = vmatpush1.msra.mxu0 0.0
    %2883 = vmatprep.subr.mxu0 0.0
    %2884 = vmatpush1.msra.mxu0 0.0
    %2885 = vmatprep.subr.mxu0 0.0
    %2886 = vmatpush1.msra.mxu0 0.0
    %2887 = vmatprep.subr.mxu0 0.0
    %2888 = vmatpush1.msra.mxu0 0.0
    %2889 = vmatprep.subr.mxu0 0.0
    %2890 = vmatpush1.msra.mxu0 0.0
    %2891 = vmatprep.subr.mxu0 0.0
    %2892 = vmatpush1.msra.mxu0 0.0
    %2893 = vmatprep.subr.mxu0 0.0
    %2894 = vmatpush1.msra.mxu0 0.0
    %2895 = vmatprep.subr.mxu0 0.0
    %2896 = vmatpush1.msra.mxu0 0.0
    %2897 = vmatprep.subr.mxu0 0.0
    %2898 = vmatpush1.msra.mxu0 0.0
    %2899 = vmatprep.subr.mxu0 0.0
    %2900 = vmatpush1.msra.mxu0 0.0
    %2901 = vmatprep.subr.mxu0 0.0
    %2902 = vmatpush1.msra.mxu0 0.0
    %2903 = vmatprep.subr.mxu0 0.0
    %2904 = vmatpush1.msra.mxu0 0.0
    %2905 = vmatprep.subr.mxu0 0.0
    %2906 = vmatpush1.msra.mxu0 0.0
    %2907 = vmatprep.subr.mxu0 0.0
    %2908 = vmatpush1.msra.mxu0 0.0
    %2909 = vmatprep.subr.mxu0 0.0
    %2910 = vmatpush1.msra.mxu0 0.0
    %2911 = vmatprep.subr.mxu0 0.0
    %2912 = vmatpush1.msra.mxu0 0.0
    %2913 = vmatprep.subr.mxu0 0.0
    %2914 = vmatpush1.msra.mxu0 0.0
    %2915 = vmatprep.subr.mxu0 0.0
    %2916 = vmatpush1.msra.mxu0 0.0
    %2917 = vmatprep.subr.mxu0 0.0
    %2918 = vmatpush1.msra.mxu0 0.0
    %2919 = vmatprep.subr.mxu0 0.0
    %2920 = vmatpush1.msra.mxu0 0.0
    %2921 = vmatprep.subr.mxu0 0.0
    %2922 = vmatpush1.msra.mxu0 0.0
    %2923 = vmatprep.subr.mxu0 0.0
    %2924 = vmatpush1.msra.mxu0 0.0
    %2925 = vmatprep.subr.mxu0 0.0
    %2926 = vmatpush1.msra.mxu0 0.0
    %2927 = vmatprep.subr.mxu0 0.0
    %2928 = vmatpush1.msra.mxu0 0.0
    %2929 = vmatprep.subr.mxu0 0.0
    %2930 = vmatpush1.msra.mxu0 0.0
    %2931 = vmatprep.subr.mxu0 0.0
    %2932 = vmatpush1.msra.mxu0 0.0
    %2933 = vmatprep.subr.mxu0 0.0
    %2934 = vmatpush1.msra.mxu0 0.0
    %2935 = vmatprep.subr.mxu0 0.0
    %2936 = vmatpush1.msra.mxu0 0.0
    %2937 = vmatprep.subr.mxu0 0.0
    %2938 = vmatpush1.msra.mxu0 0.0
    %2939 = vmatprep.mubr.f32.mxu0 0.0
    %2940 = vmatmul.mubr.f32.gmra.mrb[0].mxu0 %v2873
    %v2941 = vpop.f32.mrb[0].mxu0
    %v2942 = vadd.f32 0.0, %v2941
    %v2943 = vpop.f32.mrb[0].mxu0
    %2944 = vdwg.mxu0
    %2946 = vset.pattern.permute.xlu0 0
    %2947 = vperm.xlu0 %2946, %v2864
    %v2948 = vpop.permute.xlu0 %2947
    %v2949 = vlaneseq
    %v2950 = vshrl.u32 %v2949, 7
    %v2951 = vsub.s32 %v467, %v2950
    %v2952 = vrot.slane %v2948, %v2951
    %v2953 = vsel %vm543, %v2952, 0
    %2955 = vmatprep.subr.mxu0 0.0
    %2956 = vmatpush1.msra.mxu0 %v99
    %2957 = vmatprep.subr.mxu0 0.0
    %2958 = vmatpush1.msra.mxu0 0.0
    %2959 = vmatprep.subr.mxu0 0.0
    %2960 = vmatpush1.msra.mxu0 0.0
    %2961 = vmatprep.subr.mxu0 0.0
    %2962 = vmatpush1.msra.mxu0 0.0
    %2963 = vmatprep.subr.mxu0 0.0
    %2964 = vmatpush1.msra.mxu0 0.0
    %2965 = vmatprep.subr.mxu0 0.0
    %2966 = vmatpush1.msra.mxu0 0.0
    %2967 = vmatprep.subr.mxu0 0.0
    %2968 = vmatpush1.msra.mxu0 0.0
    %2969 = vmatprep.subr.mxu0 0.0
    %2970 = vmatpush1.msra.mxu0 0.0
    %2971 = vmatprep.subr.mxu0 0.0
    %2972 = vmatpush1.msra.mxu0 0.0
    %2973 = vmatprep.subr.mxu0 0.0
    %2974 = vmatpush1.msra.mxu0 0.0
    %2975 = vmatprep.subr.mxu0 0.0
    %2976 = vmatpush1.msra.mxu0 0.0
    %2977 = vmatprep.subr.mxu0 0.0
    %2978 = vmatpush1.msra.mxu0 0.0
    %2979 = vmatprep.subr.mxu0 0.0
    %2980 = vmatpush1.msra.mxu0 0.0
    %2981 = vmatprep.subr.mxu0 0.0
    %2982 = vmatpush1.msra.mxu0 0.0
    %2983 = vmatprep.subr.mxu0 0.0
    %2984 = vmatpush1.msra.mxu0 0.0
    %2985 = vmatprep.subr.mxu0 0.0
    %2986 = vmatpush1.msra.mxu0 0.0
    %2987 = vmatprep.subr.mxu0 0.0
    %2988 = vmatpush1.msra.mxu0 0.0
    %2989 = vmatprep.subr.mxu0 0.0
    %2990 = vmatpush1.msra.mxu0 0.0
    %2991 = vmatprep.subr.mxu0 0.0
    %2992 = vmatpush1.msra.mxu0 0.0
    %2993 = vmatprep.subr.mxu0 0.0
    %2994 = vmatpush1.msra.mxu0 0.0
    %2995 = vmatprep.subr.mxu0 0.0
    %2996 = vmatpush1.msra.mxu0 0.0
    %2997 = vmatprep.subr.mxu0 0.0
    %2998 = vmatpush1.msra.mxu0 0.0
    %2999 = vmatprep.subr.mxu0 0.0
    %3000 = vmatpush1.msra.mxu0 0.0
    %3001 = vmatprep.subr.mxu0 0.0
    %3002 = vmatpush1.msra.mxu0 0.0
    %3003 = vmatprep.subr.mxu0 0.0
    %3004 = vmatpush1.msra.mxu0 0.0
    %3005 = vmatprep.subr.mxu0 0.0
    %3006 = vmatpush1.msra.mxu0 0.0
    %3007 = vmatprep.subr.mxu0 0.0
    %3008 = vmatpush1.msra.mxu0 0.0
    %3009 = vmatprep.subr.mxu0 0.0
    %3010 = vmatpush1.msra.mxu0 0.0
    %3011 = vmatprep.subr.mxu0 0.0
    %3012 = vmatpush1.msra.mxu0 0.0
    %3013 = vmatprep.subr.mxu0 0.0
    %3014 = vmatpush1.msra.mxu0 0.0
    %3015 = vmatprep.subr.mxu0 0.0
    %3016 = vmatpush1.msra.mxu0 0.0
    %3017 = vmatprep.subr.mxu0 0.0
    %3018 = vmatpush1.msra.mxu0 0.0
    %3019 = vmatprep.mubr.f32.mxu0 0.0
    %3020 = vmatmul.mubr.f32.gmra.mrb[0].mxu0 %v2953
    %v3021 = vpop.f32.mrb[0].mxu0
    %v3022 = vadd.f32 0.0, %v3021
    %v3023 = vpop.f32.mrb[0].mxu0
    %3024 = vdwg.mxu0
    %v3027 = vrot.slane %v3022, 7
    %v3028 = vsel %vm476, %v3027, %v2942
    %v3029 = vsel %vm234, %v3028, 0
    %3031 = vmatprep.subr.mxu0 0.0
    %3032 = vmatpush1.msra.mxu0 %v113
    %3033 = vmatprep.subr.mxu0 0.0
    %3034 = vmatpush1.msra.mxu0 %v114
    %3035 = vmatprep.subr.mxu0 0.0
    %3036 = vmatpush1.msra.mxu0 %v115
    %3037 = vmatprep.subr.mxu0 0.0
    %3038 = vmatpush1.msra.mxu0 %v116
    %3039 = vmatprep.subr.mxu0 0.0
    %3040 = vmatpush1.msra.mxu0 %v117
    %3041 = vmatprep.subr.mxu0 0.0
    %3042 = vmatpush1.msra.mxu0 %v118
    %3043 = vmatprep.subr.mxu0 0.0
    %3044 = vmatpush1.msra.mxu0 %v119
    %3045 = vmatprep.subr.mxu0 0.0
    %3046 = vmatpush1.msra.mxu0 %v120
    %3047 = vmatprep.subr.mxu0 0.0
    %3048 = vmatpush1.msra.mxu0 0.0
    %3049 = vmatprep.subr.mxu0 0.0
    %3050 = vmatpush1.msra.mxu0 0.0
    %3051 = vmatprep.subr.mxu0 0.0
    %3052 = vmatpush1.msra.mxu0 0.0
    %3053 = vmatprep.subr.mxu0 0.0
    %3054 = vmatpush1.msra.mxu0 0.0
    %3055 = vmatprep.subr.mxu0 0.0
    %3056 = vmatpush1.msra.mxu0 0.0
    %3057 = vmatprep.subr.mxu0 0.0
    %3058 = vmatpush1.msra.mxu0 0.0
    %3059 = vmatprep.subr.mxu0 0.0
    %3060 = vmatpush1.msra.mxu0 0.0
    %3061 = vmatprep.subr.mxu0 0.0
    %3062 = vmatpush1.msra.mxu0 0.0
    %3063 = vmatprep.subr.mxu0 0.0
    %3064 = vmatpush1.msra.mxu0 0.0
    %3065 = vmatprep.subr.mxu0 0.0
    %3066 = vmatpush1.msra.mxu0 0.0
    %3067 = vmatprep.subr.mxu0 0.0
    %3068 = vmatpush1.msra.mxu0 0.0
    %3069 = vmatprep.subr.mxu0 0.0
    %3070 = vmatpush1.msra.mxu0 0.0
    %3071 = vmatprep.subr.mxu0 0.0
    %3072 = vmatpush1.msra.mxu0 0.0
    %3073 = vmatprep.subr.mxu0 0.0
    %3074 = vmatpush1.msra.mxu0 0.0
    %3075 = vmatprep.subr.mxu0 0.0
    %3076 = vmatpush1.msra.mxu0 0.0
    %3077 = vmatprep.subr.mxu0 0.0
    %3078 = vmatpush1.msra.mxu0 0.0
    %3079 = vmatprep.subr.mxu0 0.0
    %3080 = vmatpush1.msra.mxu0 0.0
    %3081 = vmatprep.subr.mxu0 0.0
    %3082 = vmatpush1.msra.mxu0 0.0
    %3083 = vmatprep.subr.mxu0 0.0
    %3084 = vmatpush1.msra.mxu0 0.0
    %3085 = vmatprep.subr.mxu0 0.0
    %3086 = vmatpush1.msra.mxu0 0.0
    %3087 = vmatprep.subr.mxu0 0.0
    %3088 = vmatpush1.msra.mxu0 0.0
    %3089 = vmatprep.subr.mxu0 0.0
    %3090 = vmatpush1.msra.mxu0 0.0
    %3091 = vmatprep.subr.mxu0 0.0
    %3092 = vmatpush1.msra.mxu0 0.0
    %3093 = vmatprep.subr.mxu0 0.0
    %3094 = vmatpush1.msra.mxu0 0.0
    %3095 = vmatprep.mubr.f32.mxu0 0.0
    %3096 = vmatmul.mubr.f32.gmra.mrb[0].mxu0 %v3029
    %v3097 = vpop.f32.mrb[0].mxu0
    %v3098 = vadd.f32 0.0, %v3097
    %v3099 = vpop.f32.mrb[0].mxu0
    %3100 = vdwg.mxu0
    %v3101 = vld [vmem:[#allocation2 + $0xa] sm:$0x3]
    %v3102 = vadd.f32 %v3101, %v3098
    %3103 = vst [vmem:[#allocation3 + $0xa] sm:$0x3] %v3102
    %v3104 = vadd.f32 %v3102, %v2738
    %v3105 = vxor.u32 %v3104, 2147483648
    %v3106 = vmul.f32 %v3105, 1.442695
    %v3107 = vpow.pop %v3106
    %v3108 = vadd.f32 %v3107, 1.0
    %v3109 = vrcp.pop %v3108
    %v3110 = vmul.f32 1.0, %v3109
    %3111 = vrot.lane.b32.xlu0 %v2738, 64
    %v3112 = vpop.permute.xlu0 %3111
    %v3114 = vmul.f32 %v3110, %v3112
    %3116 = vrot.lane.b32.xlu0 %v3114, 64
    %v3117 = vpop.permute.xlu0 %3116
    %v3119 = vadd.f32 %v3102, %v3117
    %v3120 = vtanh.pop %v3119
    %v3121 = vsub.f32 1.0, %v3110
    %3123 = vrot.lane.b32.xlu0 %v3120, 96
    %v3124 = vpop.permute.xlu0 %3123
    %v3126 = vmul.f32 %v3121, %v3124
    %v3127 = vmul.f32 %v3110, %v2663
    %v3128 = vadd.f32 %v3126, %v3127
    %3130 = vrot.lane.b32.xlu0 %v3128, 96
    %v3131 = vpop.permute.xlu0 %3130
    %3133 = vst.msk [vmem:[#allocation4 + $0xa] sm:$0x3] %vm807, %v3131
    %v3134 = vsel %vm150, %v3131, 0
    %3136 = vmatprep.subr.mxu0 0.0
    %3137 = vmatpush1.msra.mxu0 %v101
    %3138 = vmatprep.subr.mxu0 0.0
    %3139 = vmatpush1.msra.mxu0 %v102
    %3140 = vmatprep.subr.mxu0 0.0
    %3141 = vmatpush1.msra.mxu0 %v103
    %3142 = vmatprep.subr.mxu0 0.0
    %3143 = vmatpush1.msra.mxu0 %v104
    %3144 = vmatprep.subr.mxu0 0.0
    %3145 = vmatpush1.msra.mxu0 0.0
    %3146 = vmatprep.subr.mxu0 0.0
    %3147 = vmatpush1.msra.mxu0 0.0
    %3148 = vmatprep.subr.mxu0 0.0
    %3149 = vmatpush1.msra.mxu0 0.0
    %3150 = vmatprep.subr.mxu0 0.0
    %3151 = vmatpush1.msra.mxu0 0.0
    %3152 = vmatprep.subr.mxu0 0.0
    %3153 = vmatpush1.msra.mxu0 0.0
    %3154 = vmatprep.subr.mxu0 0.0
    %3155 = vmatpush1.msra.mxu0 0.0
    %3156 = vmatprep.subr.mxu0 0.0
    %3157 = vmatpush1.msra.mxu0 0.0
    %3158 = vmatprep.subr.mxu0 0.0
    %3159 = vmatpush1.msra.mxu0 0.0
    %3160 = vmatprep.subr.mxu0 0.0
    %3161 = vmatpush1.msra.mxu0 0.0
    %3162 = vmatprep.subr.mxu0 0.0
    %3163 = vmatpush1.msra.mxu0 0.0
    %3164 = vmatprep.subr.mxu0 0.0
    %3165 = vmatpush1.msra.mxu0 0.0
    %3166 = vmatprep.subr.mxu0 0.0
    %3167 = vmatpush1.msra.mxu0 0.0
    %3168 = vmatprep.subr.mxu0 0.0
    %3169 = vmatpush1.msra.mxu0 0.0
    %3170 = vmatprep.subr.mxu0 0.0
    %3171 = vmatpush1.msra.mxu0 0.0
    %3172 = vmatprep.subr.mxu0 0.0
    %3173 = vmatpush1.msra.mxu0 0.0
    %3174 = vmatprep.subr.mxu0 0.0
    %3175 = vmatpush1.msra.mxu0 0.0
    %3176 = vmatprep.subr.mxu0 0.0
    %3177 = vmatpush1.msra.mxu0 0.0
    %3178 = vmatprep.subr.mxu0 0.0
    %3179 = vmatpush1.msra.mxu0 0.0
    %3180 = vmatprep.subr.mxu0 0.0
    %3181 = vmatpush1.msra.mxu0 0.0
    %3182 = vmatprep.subr.mxu0 0.0
    %3183 = vmatpush1.msra.mxu0 0.0
    %3184 = vmatprep.subr.mxu0 0.0
    %3185 = vmatpush1.msra.mxu0 0.0
    %3186 = vmatprep.subr.mxu0 0.0
    %3187 = vmatpush1.msra.mxu0 0.0
    %3188 = vmatprep.subr.mxu0 0.0
    %3189 = vmatpush1.msra.mxu0 0.0
    %3190 = vmatprep.subr.mxu0 0.0
    %3191 = vmatpush1.msra.mxu0 0.0
    %3192 = vmatprep.subr.mxu0 0.0
    %3193 = vmatpush1.msra.mxu0 0.0
    %3194 = vmatprep.subr.mxu0 0.0
    %3195 = vmatpush1.msra.mxu0 0.0
    %3196 = vmatprep.subr.mxu0 0.0
    %3197 = vmatpush1.msra.mxu0 0.0
    %3198 = vmatprep.subr.mxu0 0.0
    %3199 = vmatpush1.msra.mxu0 0.0
    %3200 = vmatprep.mubr.f32.mxu0 0.0
    %3201 = vmatmul.mubr.f32.gmra.mrb[0].mxu0 %v3134
    %v3202 = vpop.f32.mrb[0].mxu0
    %v3203 = vadd.f32 %v133, %v3202
    %v3204 = vpop.f32.mrb[0].mxu0
    %3205 = vdwg.mxu0
    %v3208 = vunpack.c.l.s4 1966171168
    %v3209 = vunpack.c.0.s8 %v3208
    %v3210 = vlaneseq
    %v3211 = vshrl.u32 %v3210, 7
    %v3212 = vsub.s32 %v3209, %v3211
    %v3213 = vrot.slane %v3203, %v3212
    %v3214 = vcombine.high %v3213, %v3213
    %v3216 = vunpack.c.l.s4 1966171168
    %v3217 = vunpack.c.0.s8 %v3216
    %v3218 = vlaneseq
    %v3219 = vshrl.u32 %v3218, 7
    %v3220 = vsub.s32 %v3217, %v3219
    %v3221 = vrot.slane %v3213, %v3220
    %v3223 = vunpack.c.l.s4 1966171168
    %v3224 = vunpack.c.0.s8 %v3223
    %v3225 = vlaneseq
    %v3226 = vshrl.u32 %v3225, 7
    %v3227 = vsub.s32 %v3224, %v3226
    %v3228 = vrot.slane %v3214, %v3227
    %v3229 = vlaneseq
    %v3230 = vshrl.u32 %v3229, 7
    %v3231 = vsub.s32 0, %v3230
    %v3232 = vrot.slane %v3221, %v3231
    %v3233 = vlaneseq
    %v3234 = vshrl.u32 %v3233, 7
    %v3235 = vsub.s32 0, %v3234
    %v3236 = vrot.slane %v3228, %v3235
    %3237 = vrot.lane.b32.xlu0 %v3232, 32
    %v3238 = vpop.permute.xlu0 %3237
    %3239 = vrot.lane.b32.xlu0 %v3236, 32
    %v3240 = vpop.permute.xlu0 %3239
    %v3243 = vadd.f32 %v308, %v3238
    %v3244 = vadd.f32 %v313, %v3240
    %v3245 = vtanh.pop %v3243
    %v3246 = vtanh.pop %v3244
    %v3247 = vmul.f32 %v3245, %v138
    %v3248 = vmul.f32 %v3246, %v138
    %v3249 = vsel %vm150, %v3247, 0.0
    %3250 = vadd.xlane.f32.xlu0 %v3249
    %v3251 = vpop.xlane.xlu0 %3250
    %v3252 = vsel %vm150, %v3248, 0.0
    %3253 = vadd.xlane.f32.xlu0 %v3252
    %v3254 = vpop.xlane.xlu0 %3253
    %v3255 = vadd.f32 %v3251, %v446
    %v3256 = vadd.f32 %v3254, %v453
    %3259 = vset.pattern.permute.xlu0 0
    %3260 = vperm.xlu0 %3259, %v3255
    %v3261 = vpop.permute.xlu0 %3260
    %3262 = vset.pattern.permute.xlu0 0
    %3263 = vperm.xlu0 %3262, %v3256
    %v3264 = vpop.permute.xlu0 %3263
    %v3265 = vlaneseq
    %v3266 = vshrl.u32 %v3265, 7
    %v3267 = vsub.s32 %v467, %v3266
    %v3268 = vrot.slane %v3261, %v3267
    %v3269 = vlaneseq
    %v3270 = vshrl.u32 %v3269, 7
    %v3271 = vsub.s32 %v467, %v3270
    %v3272 = vrot.slane %v3264, %v3271
    %v3273 = vsel %vm476, %v3272, %v3268
    %v3275 = vsel %vm479, %v3273, -inf
    %3276 = vmax.xlane.f32.xlu0 %v3275
    %v3277 = vpop.xlane.xlu0 %3276
    %v3279 = vlaneseq
    %v3280 = vshrl.u32 %v3279, 7
    %v3281 = vsub.s32 0, %v3280
    %v3282 = vrot.slane %v3277, %v3281
    %v3283 = vlaneseq
    %v3284 = vshrl.u32 %v3283, 7
    %v3285 = vsub.s32 1, %v3284
    %v3286 = vrot.slane %v3277, %v3285
    %v3289 = vsub.f32 %v3255, %v3282
    %v3290 = vsub.f32 %v3256, %v3286
    %v3291 = vmul.f32 %v3289, 1.442695
    %v3292 = vpow.pop %v3291
    %v3293 = vmul.f32 %v3290, 1.442695
    %v3294 = vpow.pop %v3293
    %3297 = vset.pattern.permute.xlu0 0
    %3298 = vperm.xlu0 %3297, %v3292
    %v3299 = vpop.permute.xlu0 %3298
    %3300 = vset.pattern.permute.xlu0 0
    %3301 = vperm.xlu0 %3300, %v3294
    %v3302 = vpop.permute.xlu0 %3301
    %v3303 = vlaneseq
    %v3304 = vshrl.u32 %v3303, 7
    %v3305 = vsub.s32 %v467, %v3304
    %v3306 = vrot.slane %v3299, %v3305
    %v3307 = vlaneseq
    %v3308 = vshrl.u32 %v3307, 7
    %v3309 = vsub.s32 %v467, %v3308
    %v3310 = vrot.slane %v3302, %v3309
    %v3311 = vsel %vm476, %v3310, %v3306
    %v3313 = vsel %vm479, %v3311, 0.0
    %3314 = vadd.xlane.f32.xlu0 %v3313
    %v3315 = vpop.xlane.xlu0 %3314
    %v3316 = vrcp.pop %v3315
    %v3318 = vlaneseq
    %v3319 = vshrl.u32 %v3318, 7
    %v3320 = vsub.s32 0, %v3319
    %v3321 = vrot.slane %v3316, %v3320
    %v3322 = vlaneseq
    %v3323 = vshrl.u32 %v3322, 7
    %v3324 = vsub.s32 1, %v3323
    %v3325 = vrot.slane %v3316, %v3324
    %v3328 = vmul.f32 %v3292, %v3321
    %v3329 = vmul.f32 %v3294, %v3325
    %3331 = vset.pattern.permute.xlu0 0
    %3332 = vperm.xlu0 %3331, %v3328
    %v3333 = vpop.permute.xlu0 %3332
    %v3334 = vlaneseq
    %v3335 = vshrl.u32 %v3334, 7
    %v3336 = vsub.s32 %v467, %v3335
    %v3337 = vrot.slane %v3333, %v3336
    %v3338 = vsel %vm543, %v3337, 0
    %3340 = vmatprep.subr.mxu0 0.0
    %3341 = vmatpush1.msra.mxu0 %v98
    %3342 = vmatprep.subr.mxu0 0.0
    %3343 = vmatpush1.msra.mxu0 0.0
    %3344 = vmatprep.subr.mxu0 0.0
    %3345 = vmatpush1.msra.mxu0 0.0
    %3346 = vmatprep.subr.mxu0 0.0
    %3347 = vmatpush1.msra.mxu0 0.0
    %3348 = vmatprep.subr.mxu0 0.0
    %3349 = vmatpush1.msra.mxu0 0.0
    %3350 = vmatprep.subr.mxu0 0.0
    %3351 = vmatpush1.msra.mxu0 0.0
    %3352 = vmatprep.subr.mxu0 0.0
    %3353 = vmatpush1.msra.mxu0 0.0
    %3354 = vmatprep.subr.mxu0 0.0
    %3355 = vmatpush1.msra.mxu0 0.0
    %3356 = vmatprep.subr.mxu0 0.0
    %3357 = vmatpush1.msra.mxu0 0.0
    %3358 = vmatprep.subr.mxu0 0.0
    %3359 = vmatpush1.msra.mxu0 0.0
    %3360 = vmatprep.subr.mxu0 0.0
    %3361 = vmatpush1.msra.mxu0 0.0
    %3362 = vmatprep.subr.mxu0 0.0
    %3363 = vmatpush1.msra.mxu0 0.0
    %3364 = vmatprep.subr.mxu0 0.0
    %3365 = vmatpush1.msra.mxu0 0.0
    %3366 = vmatprep.subr.mxu0 0.0
    %3367 = vmatpush1.msra.mxu0 0.0
    %3368 = vmatprep.subr.mxu0 0.0
    %3369 = vmatpush1.msra.mxu0 0.0
    %3370 = vmatprep.subr.mxu0 0.0
    %3371 = vmatpush1.msra.mxu0 0.0
    %3372 = vmatprep.subr.mxu0 0.0
    %3373 = vmatpush1.msra.mxu0 0.0
    %3374 = vmatprep.subr.mxu0 0.0
    %3375 = vmatpush1.msra.mxu0 0.0
    %3376 = vmatprep.subr.mxu0 0.0
    %3377 = vmatpush1.msra.mxu0 0.0
    %3378 = vmatprep.subr.mxu0 0.0
    %3379 = vmatpush1.msra.mxu0 0.0
    %3380 = vmatprep.subr.mxu0 0.0
    %3381 = vmatpush1.msra.mxu0 0.0
    %3382 = vmatprep.subr.mxu0 0.0
    %3383 = vmatpush1.msra.mxu0 0.0
    %3384 = vmatprep.subr.mxu0 0.0
    %3385 = vmatpush1.msra.mxu0 0.0
    %3386 = vmatprep.subr.mxu0 0.0
    %3387 = vmatpush1.msra.mxu0 0.0
    %3388 = vmatprep.subr.mxu0 0.0
    %3389 = vmatpush1.msra.mxu0 0.0
    %3390 = vmatprep.subr.mxu0 0.0
    %3391 = vmatpush1.msra.mxu0 0.0
    %3392 = vmatprep.subr.mxu0 0.0
    %3393 = vmatpush1.msra.mxu0 0.0
    %3394 = vmatprep.subr.mxu0 0.0
    %3395 = vmatpush1.msra.mxu0 0.0
    %3396 = vmatprep.subr.mxu0 0.0
    %3397 = vmatpush1.msra.mxu0 0.0
    %3398 = vmatprep.subr.mxu0 0.0
    %3399 = vmatpush1.msra.mxu0 0.0
    %3400 = vmatprep.subr.mxu0 0.0
    %3401 = vmatpush1.msra.mxu0 0.0
    %3402 = vmatprep.subr.mxu0 0.0
    %3403 = vmatpush1.msra.mxu0 0.0
    %3404 = vmatprep.mubr.f32.mxu0 0.0
    %3405 = vmatmul.mubr.f32.gmra.mrb[0].mxu0 %v3338
    %v3406 = vpop.f32.mrb[0].mxu0
    %v3407 = vadd.f32 0.0, %v3406
    %v3408 = vpop.f32.mrb[0].mxu0
    %3409 = vdwg.mxu0
    %3411 = vset.pattern.permute.xlu0 0
    %3412 = vperm.xlu0 %3411, %v3329
    %v3413 = vpop.permute.xlu0 %3412
    %v3414 = vlaneseq
    %v3415 = vshrl.u32 %v3414, 7
    %v3416 = vsub.s32 %v467, %v3415
    %v3417 = vrot.slane %v3413, %v3416
    %v3418 = vsel %vm543, %v3417, 0
    %3420 = vmatprep.subr.mxu0 0.0
    %3421 = vmatpush1.msra.mxu0 %v99
    %3422 = vmatprep.subr.mxu0 0.0
    %3423 = vmatpush1.msra.mxu0 0.0
    %3424 = vmatprep.subr.mxu0 0.0
    %3425 = vmatpush1.msra.mxu0 0.0
    %3426 = vmatprep.subr.mxu0 0.0
    %3427 = vmatpush1.msra.mxu0 0.0
    %3428 = vmatprep.subr.mxu0 0.0
    %3429 = vmatpush1.msra.mxu0 0.0
    %3430 = vmatprep.subr.mxu0 0.0
    %3431 = vmatpush1.msra.mxu0 0.0
    %3432 = vmatprep.subr.mxu0 0.0
    %3433 = vmatpush1.msra.mxu0 0.0
    %3434 = vmatprep.subr.mxu0 0.0
    %3435 = vmatpush1.msra.mxu0 0.0
    %3436 = vmatprep.subr.mxu0 0.0
    %3437 = vmatpush1.msra.mxu0 0.0
    %3438 = vmatprep.subr.mxu0 0.0
    %3439 = vmatpush1.msra.mxu0 0.0
    %3440 = vmatprep.subr.mxu0 0.0
    %3441 = vmatpush1.msra.mxu0 0.0
    %3442 = vmatprep.subr.mxu0 0.0
    %3443 = vmatpush1.msra.mxu0 0.0
    %3444 = vmatprep.subr.mxu0 0.0
    %3445 = vmatpush1.msra.mxu0 0.0
    %3446 = vmatprep.subr.mxu0 0.0
    %3447 = vmatpush1.msra.mxu0 0.0
    %3448 = vmatprep.subr.mxu0 0.0
    %3449 = vmatpush1.msra.mxu0 0.0
    %3450 = vmatprep.subr.mxu0 0.0
    %3451 = vmatpush1.msra.mxu0 0.0
    %3452 = vmatprep.subr.mxu0 0.0
    %3453 = vmatpush1.msra.mxu0 0.0
    %3454 = vmatprep.subr.mxu0 0.0
    %3455 = vmatpush1.msra.mxu0 0.0
    %3456 = vmatprep.subr.mxu0 0.0
    %3457 = vmatpush1.msra.mxu0 0.0
    %3458 = vmatprep.subr.mxu0 0.0
    %3459 = vmatpush1.msra.mxu0 0.0
    %3460 = vmatprep.subr.mxu0 0.0
    %3461 = vmatpush1.msra.mxu0 0.0
    %3462 = vmatprep.subr.mxu0 0.0
    %3463 = vmatpush1.msra.mxu0 0.0
    %3464 = vmatprep.subr.mxu0 0.0
    %3465 = vmatpush1.msra.mxu0 0.0
    %3466 = vmatprep.subr.mxu0 0.0
    %3467 = vmatpush1.msra.mxu0 0.0
    %3468 = vmatprep.subr.mxu0 0.0
    %3469 = vmatpush1.msra.mxu0 0.0
    %3470 = vmatprep.subr.mxu0 0.0
    %3471 = vmatpush1.msra.mxu0 0.0
    %3472 = vmatprep.subr.mxu0 0.0
    %3473 = vmatpush1.msra.mxu0 0.0
    %3474 = vmatprep.subr.mxu0 0.0
    %3475 = vmatpush1.msra.mxu0 0.0
    %3476 = vmatprep.subr.mxu0 0.0
    %3477 = vmatpush1.msra.mxu0 0.0
    %3478 = vmatprep.subr.mxu0 0.0
    %3479 = vmatpush1.msra.mxu0 0.0
    %3480 = vmatprep.subr.mxu0 0.0
    %3481 = vmatpush1.msra.mxu0 0.0
    %3482 = vmatprep.subr.mxu0 0.0
    %3483 = vmatpush1.msra.mxu0 0.0
    %3484 = vmatprep.mubr.f32.mxu0 0.0
    %3485 = vmatmul.mubr.f32.gmra.mrb[0].mxu0 %v3418
    %v3486 = vpop.f32.mrb[0].mxu0
    %v3487 = vadd.f32 0.0, %v3486
    %v3488 = vpop.f32.mrb[0].mxu0
    %3489 = vdwg.mxu0
    %v3492 = vrot.slane %v3487, 7
    %v3493 = vsel %vm476, %v3492, %v3407
    %v3494 = vsel %vm234, %v3493, 0
    %3496 = vmatprep.subr.mxu0 0.0
    %3497 = vmatpush1.msra.mxu0 %v113
    %3498 = vmatprep.subr.mxu0 0.0
    %3499 = vmatpush1.msra.mxu0 %v114
    %3500 = vmatprep.subr.mxu0 0.0
    %3501 = vmatpush1.msra.mxu0 %v115
    %3502 = vmatprep.subr.mxu0 0.0
    %3503 = vmatpush1.msra.mxu0 %v116
    %3504 = vmatprep.subr.mxu0 0.0
    %3505 = vmatpush1.msra.mxu0 %v117
    %3506 = vmatprep.subr.mxu0 0.0
    %3507 = vmatpush1.msra.mxu0 %v118
    %3508 = vmatprep.subr.mxu0 0.0
    %3509 = vmatpush1.msra.mxu0 %v119
    %3510 = vmatprep.subr.mxu0 0.0
    %3511 = vmatpush1.msra.mxu0 %v120
    %3512 = vmatprep.subr.mxu0 0.0
    %3513 = vmatpush1.msra.mxu0 0.0
    %3514 = vmatprep.subr.mxu0 0.0
    %3515 = vmatpush1.msra.mxu0 0.0
    %3516 = vmatprep.subr.mxu0 0.0
    %3517 = vmatpush1.msra.mxu0 0.0
    %3518 = vmatprep.subr.mxu0 0.0
    %3519 = vmatpush1.msra.mxu0 0.0
    %3520 = vmatprep.subr.mxu0 0.0
    %3521 = vmatpush1.msra.mxu0 0.0
    %3522 = vmatprep.subr.mxu0 0.0
    %3523 = vmatpush1.msra.mxu0 0.0
    %3524 = vmatprep.subr.mxu0 0.0
    %3525 = vmatpush1.msra.mxu0 0.0
    %3526 = vmatprep.subr.mxu0 0.0
    %3527 = vmatpush1.msra.mxu0 0.0
    %3528 = vmatprep.subr.mxu0 0.0
    %3529 = vmatpush1.msra.mxu0 0.0
    %3530 = vmatprep.subr.mxu0 0.0
    %3531 = vmatpush1.msra.mxu0 0.0
    %3532 = vmatprep.subr.mxu0 0.0
    %3533 = vmatpush1.msra.mxu0 0.0
    %3534 = vmatprep.subr.mxu0 0.0
    %3535 = vmatpush1.msra.mxu0 0.0
    %3536 = vmatprep.subr.mxu0 0.0
    %3537 = vmatpush1.msra.mxu0 0.0
    %3538 = vmatprep.subr.mxu0 0.0
    %3539 = vmatpush1.msra.mxu0 0.0
    %3540 = vmatprep.subr.mxu0 0.0
    %3541 = vmatpush1.msra.mxu0 0.0
    %3542 = vmatprep.subr.mxu0 0.0
    %3543 = vmatpush1.msra.mxu0 0.0
    %3544 = vmatprep.subr.mxu0 0.0
    %3545 = vmatpush1.msra.mxu0 0.0
    %3546 = vmatprep.subr.mxu0 0.0
    %3547 = vmatpush1.msra.mxu0 0.0
    %3548 = vmatprep.subr.mxu0 0.0
    %3549 = vmatpush1.msra.mxu0 0.0
    %3550 = vmatprep.subr.mxu0 0.0
    %3551 = vmatpush1.msra.mxu0 0.0
    %3552 = vmatprep.subr.mxu0 0.0
    %3553 = vmatpush1.msra.mxu0 0.0
    %3554 = vmatprep.subr.mxu0 0.0
    %3555 = vmatpush1.msra.mxu0 0.0
    %3556 = vmatprep.subr.mxu0 0.0
    %3557 = vmatpush1.msra.mxu0 0.0
    %3558 = vmatprep.subr.mxu0 0.0
    %3559 = vmatpush1.msra.mxu0 0.0
    %3560 = vmatprep.mubr.f32.mxu0 0.0
    %3561 = vmatmul.mubr.f32.gmra.mrb[0].mxu0 %v3494
    %v3562 = vpop.f32.mrb[0].mxu0
    %v3563 = vadd.f32 0.0, %v3562
    %v3564 = vpop.f32.mrb[0].mxu0
    %3565 = vdwg.mxu0
    %v3566 = vld [vmem:[#allocation2 + $0xc] sm:$0x3]
    %v3567 = vadd.f32 %v3566, %v3563
    %3568 = vst [vmem:[#allocation3 + $0xc] sm:$0x3] %v3567
    %v3569 = vadd.f32 %v3567, %v3203
    %v3570 = vxor.u32 %v3569, 2147483648
    %v3571 = vmul.f32 %v3570, 1.442695
    %v3572 = vpow.pop %v3571
    %v3573 = vadd.f32 %v3572, 1.0
    %v3574 = vrcp.pop %v3573
    %v3575 = vmul.f32 1.0, %v3574
    %3576 = vrot.lane.b32.xlu0 %v3203, 64
    %v3577 = vpop.permute.xlu0 %3576
    %v3579 = vmul.f32 %v3575, %v3577
    %3581 = vrot.lane.b32.xlu0 %v3579, 64
    %v3582 = vpop.permute.xlu0 %3581
    %v3584 = vadd.f32 %v3567, %v3582
    %v3585 = vtanh.pop %v3584
    %v3586 = vsub.f32 1.0, %v3575
    %3588 = vrot.lane.b32.xlu0 %v3585, 96
    %v3589 = vpop.permute.xlu0 %3588
    %v3591 = vmul.f32 %v3586, %v3589
    %v3592 = vmul.f32 %v3575, %v3128
    %v3593 = vadd.f32 %v3591, %v3592
    %3595 = vrot.lane.b32.xlu0 %v3593, 96
    %v3596 = vpop.permute.xlu0 %3595
    %3598 = vst.msk [vmem:[#allocation4 + $0xc] sm:$0x3] %vm807, %v3596
    %v3599 = vsel %vm150, %v3596, 0
    %3601 = vmatprep.subr.mxu0 0.0
    %3602 = vmatpush1.msra.mxu0 %v101
    %3603 = vmatprep.subr.mxu0 0.0
    %3604 = vmatpush1.msra.mxu0 %v102
    %3605 = vmatprep.subr.mxu0 0.0
    %3606 = vmatpush1.msra.mxu0 %v103
    %3607 = vmatprep.subr.mxu0 0.0
    %3608 = vmatpush1.msra.mxu0 %v104
    %3609 = vmatprep.subr.mxu0 0.0
    %3610 = vmatpush1.msra.mxu0 0.0
    %3611 = vmatprep.subr.mxu0 0.0
    %3612 = vmatpush1.msra.mxu0 0.0
    %3613 = vmatprep.subr.mxu0 0.0
    %3614 = vmatpush1.msra.mxu0 0.0
    %3615 = vmatprep.subr.mxu0 0.0
    %3616 = vmatpush1.msra.mxu0 0.0
    %3617 = vmatprep.subr.mxu0 0.0
    %3618 = vmatpush1.msra.mxu0 0.0
    %3619 = vmatprep.subr.mxu0 0.0
    %3620 = vmatpush1.msra.mxu0 0.0
    %3621 = vmatprep.subr.mxu0 0.0
    %3622 = vmatpush1.msra.mxu0 0.0
    %3623 = vmatprep.subr.mxu0 0.0
    %3624 = vmatpush1.msra.mxu0 0.0
    %3625 = vmatprep.subr.mxu0 0.0
    %3626 = vmatpush1.msra.mxu0 0.0
    %3627 = vmatprep.subr.mxu0 0.0
    %3628 = vmatpush1.msra.mxu0 0.0
    %3629 = vmatprep.subr.mxu0 0.0
    %3630 = vmatpush1.msra.mxu0 0.0
    %3631 = vmatprep.subr.mxu0 0.0
    %3632 = vmatpush1.msra.mxu0 0.0
    %3633 = vmatprep.subr.mxu0 0.0
    %3634 = vmatpush1.msra.mxu0 0.0
    %3635 = vmatprep.subr.mxu0 0.0
    %3636 = vmatpush1.msra.mxu0 0.0
    %3637 = vmatprep.subr.mxu0 0.0
    %3638 = vmatpush1.msra.mxu0 0.0
    %3639 = vmatprep.subr.mxu0 0.0
    %3640 = vmatpush1.msra.mxu0 0.0
    %3641 = vmatprep.subr.mxu0 0.0
    %3642 = vmatpush1.msra.mxu0 0.0
    %3643 = vmatprep.subr.mxu0 0.0
    %3644 = vmatpush1.msra.mxu0 0.0
    %3645 = vmatprep.subr.mxu0 0.0
    %3646 = vmatpush1.msra.mxu0 0.0
    %3647 = vmatprep.subr.mxu0 0.0
    %3648 = vmatpush1.msra.mxu0 0.0
    %3649 = vmatprep.subr.mxu0 0.0
    %3650 = vmatpush1.msra.mxu0 0.0
    %3651 = vmatprep.subr.mxu0 0.0
    %3652 = vmatpush1.msra.mxu0 0.0
    %3653 = vmatprep.subr.mxu0 0.0
    %3654 = vmatpush1.msra.mxu0 0.0
    %3655 = vmatprep.subr.mxu0 0.0
    %3656 = vmatpush1.msra.mxu0 0.0
    %3657 = vmatprep.subr.mxu0 0.0
    %3658 = vmatpush1.msra.mxu0 0.0
    %3659 = vmatprep.subr.mxu0 0.0
    %3660 = vmatpush1.msra.mxu0 0.0
    %3661 = vmatprep.subr.mxu0 0.0
    %3662 = vmatpush1.msra.mxu0 0.0
    %3663 = vmatprep.subr.mxu0 0.0
    %3664 = vmatpush1.msra.mxu0 0.0
    %3665 = vmatprep.mubr.f32.mxu0 0.0
    %3666 = vmatmul.mubr.f32.gmra.mrb[0].mxu0 %v3599
    %v3667 = vpop.f32.mrb[0].mxu0
    %v3668 = vadd.f32 %v133, %v3667
    %v3669 = vpop.f32.mrb[0].mxu0
    %3670 = vdwg.mxu0
    %v3673 = vunpack.c.l.s4 1966171168
    %v3674 = vunpack.c.0.s8 %v3673
    %v3675 = vlaneseq
    %v3676 = vshrl.u32 %v3675, 7
    %v3677 = vsub.s32 %v3674, %v3676
    %v3678 = vrot.slane %v3668, %v3677
    %v3679 = vcombine.high %v3678, %v3678
    %v3681 = vunpack.c.l.s4 1966171168
    %v3682 = vunpack.c.0.s8 %v3681
    %v3683 = vlaneseq
    %v3684 = vshrl.u32 %v3683, 7
    %v3685 = vsub.s32 %v3682, %v3684
    %v3686 = vrot.slane %v3678, %v3685
    %v3688 = vunpack.c.l.s4 1966171168
    %v3689 = vunpack.c.0.s8 %v3688
    %v3690 = vlaneseq
    %v3691 = vshrl.u32 %v3690, 7
    %v3692 = vsub.s32 %v3689, %v3691
    %v3693 = vrot.slane %v3679, %v3692
    %v3694 = vlaneseq
    %v3695 = vshrl.u32 %v3694, 7
    %v3696 = vsub.s32 0, %v3695
    %v3697 = vrot.slane %v3686, %v3696
    %v3698 = vlaneseq
    %v3699 = vshrl.u32 %v3698, 7
    %v3700 = vsub.s32 0, %v3699
    %v3701 = vrot.slane %v3693, %v3700
    %3702 = vrot.lane.b32.xlu0 %v3697, 32
    %v3703 = vpop.permute.xlu0 %3702
    %3704 = vrot.lane.b32.xlu0 %v3701, 32
    %v3705 = vpop.permute.xlu0 %3704
    %v3708 = vadd.f32 %v308, %v3703
    %v3709 = vadd.f32 %v313, %v3705
    %v3710 = vtanh.pop %v3708
    %v3711 = vtanh.pop %v3709
    %v3712 = vmul.f32 %v3710, %v138
    %v3713 = vmul.f32 %v3711, %v138
    %v3714 = vsel %vm150, %v3712, 0.0
    %3715 = vadd.xlane.f32.xlu0 %v3714
    %v3716 = vpop.xlane.xlu0 %3715
    %v3717 = vsel %vm150, %v3713, 0.0
    %3718 = vadd.xlane.f32.xlu0 %v3717
    %v3719 = vpop.xlane.xlu0 %3718
    %v3720 = vadd.f32 %v3716, %v446
    %v3721 = vadd.f32 %v3719, %v453
    %3724 = vset.pattern.permute.xlu0 0
    %3725 = vperm.xlu0 %3724, %v3720
    %v3726 = vpop.permute.xlu0 %3725
    %3727 = vset.pattern.permute.xlu0 0
    %3728 = vperm.xlu0 %3727, %v3721
    %v3729 = vpop.permute.xlu0 %3728
    %v3730 = vlaneseq
    %v3731 = vshrl.u32 %v3730, 7
    %v3732 = vsub.s32 %v467, %v3731
    %v3733 = vrot.slane %v3726, %v3732
    %v3734 = vlaneseq
    %v3735 = vshrl.u32 %v3734, 7
    %v3736 = vsub.s32 %v467, %v3735
    %v3737 = vrot.slane %v3729, %v3736
    %v3738 = vsel %vm476, %v3737, %v3733
    %v3740 = vsel %vm479, %v3738, -inf
    %3741 = vmax.xlane.f32.xlu0 %v3740
    %v3742 = vpop.xlane.xlu0 %3741
    %v3744 = vlaneseq
    %v3745 = vshrl.u32 %v3744, 7
    %v3746 = vsub.s32 0, %v3745
    %v3747 = vrot.slane %v3742, %v3746
    %v3748 = vlaneseq
    %v3749 = vshrl.u32 %v3748, 7
    %v3750 = vsub.s32 1, %v3749
    %v3751 = vrot.slane %v3742, %v3750
    %v3754 = vsub.f32 %v3720, %v3747
    %v3755 = vsub.f32 %v3721, %v3751
    %v3756 = vmul.f32 %v3754, 1.442695
    %v3757 = vpow.pop %v3756
    %v3758 = vmul.f32 %v3755, 1.442695
    %v3759 = vpow.pop %v3758
    %3762 = vset.pattern.permute.xlu0 0
    %3763 = vperm.xlu0 %3762, %v3757
    %v3764 = vpop.permute.xlu0 %3763
    %3765 = vset.pattern.permute.xlu0 0
    %3766 = vperm.xlu0 %3765, %v3759
    %v3767 = vpop.permute.xlu0 %3766
    %v3768 = vlaneseq
    %v3769 = vshrl.u32 %v3768, 7
    %v3770 = vsub.s32 %v467, %v3769
    %v3771 = vrot.slane %v3764, %v3770
    %v3772 = vlaneseq
    %v3773 = vshrl.u32 %v3772, 7
    %v3774 = vsub.s32 %v467, %v3773
    %v3775 = vrot.slane %v3767, %v3774
    %v3776 = vsel %vm476, %v3775, %v3771
    %v3778 = vsel %vm479, %v3776, 0.0
    %3779 = vadd.xlane.f32.xlu0 %v3778
    %v3780 = vpop.xlane.xlu0 %3779
    %v3781 = vrcp.pop %v3780
    %v3783 = vlaneseq
    %v3784 = vshrl.u32 %v3783, 7
    %v3785 = vsub.s32 0, %v3784
    %v3786 = vrot.slane %v3781, %v3785
    %v3787 = vlaneseq
    %v3788 = vshrl.u32 %v3787, 7
    %v3789 = vsub.s32 1, %v3788
    %v3790 = vrot.slane %v3781, %v3789
    %v3793 = vmul.f32 %v3757, %v3786
    %v3794 = vmul.f32 %v3759, %v3790
    %3796 = vset.pattern.permute.xlu0 0
    %3797 = vperm.xlu0 %3796, %v3793
    %v3798 = vpop.permute.xlu0 %3797
    %v3799 = vlaneseq
    %v3800 = vshrl.u32 %v3799, 7
    %v3801 = vsub.s32 %v467, %v3800
    %v3802 = vrot.slane %v3798, %v3801
    %v3803 = vsel %vm543, %v3802, 0
    %3805 = vmatprep.subr.mxu0 0.0
    %3806 = vmatpush1.msra.mxu0 %v98
    %3807 = vmatprep.subr.mxu0 0.0
    %3808 = vmatpush1.msra.mxu0 0.0
    %3809 = vmatprep.subr.mxu0 0.0
    %3810 = vmatpush1.msra.mxu0 0.0
    %3811 = vmatprep.subr.mxu0 0.0
    %3812 = vmatpush1.msra.mxu0 0.0
    %3813 = vmatprep.subr.mxu0 0.0
    %3814 = vmatpush1.msra.mxu0 0.0
    %3815 = vmatprep.subr.mxu0 0.0
    %3816 = vmatpush1.msra.mxu0 0.0
    %3817 = vmatprep.subr.mxu0 0.0
    %3818 = vmatpush1.msra.mxu0 0.0
    %3819 = vmatprep.subr.mxu0 0.0
    %3820 = vmatpush1.msra.mxu0 0.0
    %3821 = vmatprep.subr.mxu0 0.0
    %3822 = vmatpush1.msra.mxu0 0.0
    %3823 = vmatprep.subr.mxu0 0.0
    %3824 = vmatpush1.msra.mxu0 0.0
    %3825 = vmatprep.subr.mxu0 0.0
    %3826 = vmatpush1.msra.mxu0 0.0
    %3827 = vmatprep.subr.mxu0 0.0
    %3828 = vmatpush1.msra.mxu0 0.0
    %3829 = vmatprep.subr.mxu0 0.0
    %3830 = vmatpush1.msra.mxu0 0.0
    %3831 = vmatprep.subr.mxu0 0.0
    %3832 = vmatpush1.msra.mxu0 0.0
    %3833 = vmatprep.subr.mxu0 0.0
    %3834 = vmatpush1.msra.mxu0 0.0
    %3835 = vmatprep.subr.mxu0 0.0
    %3836 = vmatpush1.msra.mxu0 0.0
    %3837 = vmatprep.subr.mxu0 0.0
    %3838 = vmatpush1.msra.mxu0 0.0
    %3839 = vmatprep.subr.mxu0 0.0
    %3840 = vmatpush1.msra.mxu0 0.0
    %3841 = vmatprep.subr.mxu0 0.0
    %3842 = vmatpush1.msra.mxu0 0.0
    %3843 = vmatprep.subr.mxu0 0.0
    %3844 = vmatpush1.msra.mxu0 0.0
    %3845 = vmatprep.subr.mxu0 0.0
    %3846 = vmatpush1.msra.mxu0 0.0
    %3847 = vmatprep.subr.mxu0 0.0
    %3848 = vmatpush1.msra.mxu0 0.0
    %3849 = vmatprep.subr.mxu0 0.0
    %3850 = vmatpush1.msra.mxu0 0.0
    %3851 = vmatprep.subr.mxu0 0.0
    %3852 = vmatpush1.msra.mxu0 0.0
    %3853 = vmatprep.subr.mxu0 0.0
    %3854 = vmatpush1.msra.mxu0 0.0
    %3855 = vmatprep.subr.mxu0 0.0
    %3856 = vmatpush1.msra.mxu0 0.0
    %3857 = vmatprep.subr.mxu0 0.0
    %3858 = vmatpush1.msra.mxu0 0.0
    %3859 = vmatprep.subr.mxu0 0.0
    %3860 = vmatpush1.msra.mxu0 0.0
    %3861 = vmatprep.subr.mxu0 0.0
    %3862 = vmatpush1.msra.mxu0 0.0
    %3863 = vmatprep.subr.mxu0 0.0
    %3864 = vmatpush1.msra.mxu0 0.0
    %3865 = vmatprep.subr.mxu0 0.0
    %3866 = vmatpush1.msra.mxu0 0.0
    %3867 = vmatprep.subr.mxu0 0.0
    %3868 = vmatpush1.msra.mxu0 0.0
    %3869 = vmatprep.mubr.f32.mxu0 0.0
    %3870 = vmatmul.mubr.f32.gmra.mrb[0].mxu0 %v3803
    %v3871 = vpop.f32.mrb[0].mxu0
    %v3872 = vadd.f32 0.0, %v3871
    %v3873 = vpop.f32.mrb[0].mxu0
    %3874 = vdwg.mxu0
    %3876 = vset.pattern.permute.xlu0 0
    %3877 = vperm.xlu0 %3876, %v3794
    %v3878 = vpop.permute.xlu0 %3877
    %v3879 = vlaneseq
    %v3880 = vshrl.u32 %v3879, 7
    %v3881 = vsub.s32 %v467, %v3880
    %v3882 = vrot.slane %v3878, %v3881
    %v3883 = vsel %vm543, %v3882, 0
    %3885 = vmatprep.subr.mxu0 0.0
    %3886 = vmatpush1.msra.mxu0 %v99
    %3887 = vmatprep.subr.mxu0 0.0
    %3888 = vmatpush1.msra.mxu0 0.0
    %3889 = vmatprep.subr.mxu0 0.0
    %3890 = vmatpush1.msra.mxu0 0.0
    %3891 = vmatprep.subr.mxu0 0.0
    %3892 = vmatpush1.msra.mxu0 0.0
    %3893 = vmatprep.subr.mxu0 0.0
    %3894 = vmatpush1.msra.mxu0 0.0
    %3895 = vmatprep.subr.mxu0 0.0
    %3896 = vmatpush1.msra.mxu0 0.0
    %3897 = vmatprep.subr.mxu0 0.0
    %3898 = vmatpush1.msra.mxu0 0.0
    %3899 = vmatprep.subr.mxu0 0.0
    %3900 = vmatpush1.msra.mxu0 0.0
    %3901 = vmatprep.subr.mxu0 0.0
    %3902 = vmatpush1.msra.mxu0 0.0
    %3903 = vmatprep.subr.mxu0 0.0
    %3904 = vmatpush1.msra.mxu0 0.0
    %3905 = vmatprep.subr.mxu0 0.0
    %3906 = vmatpush1.msra.mxu0 0.0
    %3907 = vmatprep.subr.mxu0 0.0
    %3908 = vmatpush1.msra.mxu0 0.0
    %3909 = vmatprep.subr.mxu0 0.0
    %3910 = vmatpush1.msra.mxu0 0.0
    %3911 = vmatprep.subr.mxu0 0.0
    %3912 = vmatpush1.msra.mxu0 0.0
    %3913 = vmatprep.subr.mxu0 0.0
    %3914 = vmatpush1.msra.mxu0 0.0
    %3915 = vmatprep.subr.mxu0 0.0
    %3916 = vmatpush1.msra.mxu0 0.0
    %3917 = vmatprep.subr.mxu0 0.0
    %3918 = vmatpush1.msra.mxu0 0.0
    %3919 = vmatprep.subr.mxu0 0.0
    %3920 = vmatpush1.msra.mxu0 0.0
    %3921 = vmatprep.subr.mxu0 0.0
    %3922 = vmatpush1.msra.mxu0 0.0
    %3923 = vmatprep.subr.mxu0 0.0
    %3924 = vmatpush1.msra.mxu0 0.0
    %3925 = vmatprep.subr.mxu0 0.0
    %3926 = vmatpush1.msra.mxu0 0.0
    %3927 = vmatprep.subr.mxu0 0.0
    %3928 = vmatpush1.msra.mxu0 0.0
    %3929 = vmatprep.subr.mxu0 0.0
    %3930 = vmatpush1.msra.mxu0 0.0
    %3931 = vmatprep.subr.mxu0 0.0
    %3932 = vmatpush1.msra.mxu0 0.0
    %3933 = vmatprep.subr.mxu0 0.0
    %3934 = vmatpush1.msra.mxu0 0.0
    %3935 = vmatprep.subr.mxu0 0.0
    %3936 = vmatpush1.msra.mxu0 0.0
    %3937 = vmatprep.subr.mxu0 0.0
    %3938 = vmatpush1.msra.mxu0 0.0
    %3939 = vmatprep.subr.mxu0 0.0
    %3940 = vmatpush1.msra.mxu0 0.0
    %3941 = vmatprep.subr.mxu0 0.0
    %3942 = vmatpush1.msra.mxu0 0.0
    %3943 = vmatprep.subr.mxu0 0.0
    %3944 = vmatpush1.msra.mxu0 0.0
    %3945 = vmatprep.subr.mxu0 0.0
    %3946 = vmatpush1.msra.mxu0 0.0
    %3947 = vmatprep.subr.mxu0 0.0
    %3948 = vmatpush1.msra.mxu0 0.0
    %3949 = vmatprep.mubr.f32.mxu0 0.0
    %3950 = vmatmul.mubr.f32.gmra.mrb[0].mxu0 %v3883
    %v3951 = vpop.f32.mrb[0].mxu0
    %v3952 = vadd.f32 0.0, %v3951
    %v3953 = vpop.f32.mrb[0].mxu0
    %3954 = vdwg.mxu0
    %v3957 = vrot.slane %v3952, 7
    %v3958 = vsel %vm476, %v3957, %v3872
    %v3959 = vsel %vm234, %v3958, 0
    %3961 = vmatprep.subr.mxu0 0.0
    %3962 = vmatpush1.msra.mxu0 %v113
    %3963 = vmatprep.subr.mxu0 0.0
    %3964 = vmatpush1.msra.mxu0 %v114
    %3965 = vmatprep.subr.mxu0 0.0
    %3966 = vmatpush1.msra.mxu0 %v115
    %3967 = vmatprep.subr.mxu0 0.0
    %3968 = vmatpush1.msra.mxu0 %v116
    %3969 = vmatprep.subr.mxu0 0.0
    %3970 = vmatpush1.msra.mxu0 %v117
    %3971 = vmatprep.subr.mxu0 0.0
    %3972 = vmatpush1.msra.mxu0 %v118
    %3973 = vmatprep.subr.mxu0 0.0
    %3974 = vmatpush1.msra.mxu0 %v119
    %3975 = vmatprep.subr.mxu0 0.0
    %3976 = vmatpush1.msra.mxu0 %v120
    %3977 = vmatprep.subr.mxu0 0.0
    %3978 = vmatpush1.msra.mxu0 0.0
    %3979 = vmatprep.subr.mxu0 0.0
    %3980 = vmatpush1.msra.mxu0 0.0
    %3981 = vmatprep.subr.mxu0 0.0
    %3982 = vmatpush1.msra.mxu0 0.0
    %3983 = vmatprep.subr.mxu0 0.0
    %3984 = vmatpush1.msra.mxu0 0.0
    %3985 = vmatprep.subr.mxu0 0.0
    %3986 = vmatpush1.msra.mxu0 0.0
    %3987 = vmatprep.subr.mxu0 0.0
    %3988 = vmatpush1.msra.mxu0 0.0
    %3989 = vmatprep.subr.mxu0 0.0
    %3990 = vmatpush1.msra.mxu0 0.0
    %3991 = vmatprep.subr.mxu0 0.0
    %3992 = vmatpush1.msra.mxu0 0.0
    %3993 = vmatprep.subr.mxu0 0.0
    %3994 = vmatpush1.msra.mxu0 0.0
    %3995 = vmatprep.subr.mxu0 0.0
    %3996 = vmatpush1.msra.mxu0 0.0
    %3997 = vmatprep.subr.mxu0 0.0
    %3998 = vmatpush1.msra.mxu0 0.0
    %3999 = vmatprep.subr.mxu0 0.0
    %4000 = vmatpush1.msra.mxu0 0.0
    %4001 = vmatprep.subr.mxu0 0.0
    %4002 = vmatpush1.msra.mxu0 0.0
    %4003 = vmatprep.subr.mxu0 0.0
    %4004 = vmatpush1.msra.mxu0 0.0
    %4005 = vmatprep.subr.mxu0 0.0
    %4006 = vmatpush1.msra.mxu0 0.0
    %4007 = vmatprep.subr.mxu0 0.0
    %4008 = vmatpush1.msra.mxu0 0.0
    %4009 = vmatprep.subr.mxu0 0.0
    %4010 = vmatpush1.msra.mxu0 0.0
    %4011 = vmatprep.subr.mxu0 0.0
    %4012 = vmatpush1.msra.mxu0 0.0
    %4013 = vmatprep.subr.mxu0 0.0
    %4014 = vmatpush1.msra.mxu0 0.0
    %4015 = vmatprep.subr.mxu0 0.0
    %4016 = vmatpush1.msra.mxu0 0.0
    %4017 = vmatprep.subr.mxu0 0.0
    %4018 = vmatpush1.msra.mxu0 0.0
    %4019 = vmatprep.subr.mxu0 0.0
    %4020 = vmatpush1.msra.mxu0 0.0
    %4021 = vmatprep.subr.mxu0 0.0
    %4022 = vmatpush1.msra.mxu0 0.0
    %4023 = vmatprep.subr.mxu0 0.0
    %4024 = vmatpush1.msra.mxu0 0.0
    %4025 = vmatprep.mubr.f32.mxu0 0.0
    %4026 = vmatmul.mubr.f32.gmra.mrb[0].mxu0 %v3959
    %v4027 = vpop.f32.mrb[0].mxu0
    %v4028 = vadd.f32 0.0, %v4027
    %v4029 = vpop.f32.mrb[0].mxu0
    %4030 = vdwg.mxu0
    %v4031 = vld [vmem:[#allocation2 + $0xe] sm:$0x3]
    %v4032 = vadd.f32 %v4031, %v4028
    %4033 = vst [vmem:[#allocation3 + $0xe] sm:$0x3] %v4032
    %v4034 = vadd.f32 %v4032, %v3668
    %v4035 = vxor.u32 %v4034, 2147483648
    %v4036 = vmul.f32 %v4035, 1.442695
    %v4037 = vpow.pop %v4036
    %v4038 = vadd.f32 %v4037, 1.0
    %v4039 = vrcp.pop %v4038
    %v4040 = vmul.f32 1.0, %v4039
    %4041 = vrot.lane.b32.xlu0 %v3668, 64
    %v4042 = vpop.permute.xlu0 %4041
    %v4044 = vmul.f32 %v4040, %v4042
    %4046 = vrot.lane.b32.xlu0 %v4044, 64
    %v4047 = vpop.permute.xlu0 %4046
    %v4049 = vadd.f32 %v4032, %v4047
    %v4050 = vtanh.pop %v4049
    %v4051 = vsub.f32 1.0, %v4040
    %4053 = vrot.lane.b32.xlu0 %v4050, 96
    %v4054 = vpop.permute.xlu0 %4053
    %v4056 = vmul.f32 %v4051, %v4054
    %v4057 = vmul.f32 %v4040, %v3593
    %v4058 = vadd.f32 %v4056, %v4057
    %4060 = vrot.lane.b32.xlu0 %v4058, 96
    %v4061 = vpop.permute.xlu0 %4060
    %4063 = vst.msk [vmem:[#allocation4 + $0xe] sm:$0x3] %vm807, %v4061
    %v4064 = vld [vmem:[#allocation3] sm:$0xff]
    %v4065 = vld [vmem:[#allocation3 + $0x8] sm:$0xff]
    %v4066 = vld [vmem:[#allocation4] sm:$0xff]
    %v4067 = vld [vmem:[#allocation4 + $0x8] sm:$0xff]
    %v4069 = vsel %vm150, %v4066, 0
    %v4072 = vsel %vm150, %v4067, 0
    %4074 = vmatprep.subr.mxu0 0.0
    %4075 = vmatpush1.msra.mxu0 %v109
    %4076 = vmatprep.subr.mxu0 0.0
    %4077 = vmatpush1.msra.mxu0 %v110
    %4078 = vmatprep.subr.mxu0 0.0
    %4079 = vmatpush1.msra.mxu0 %v111
    %4080 = vmatprep.subr.mxu0 0.0
    %4081 = vmatpush1.msra.mxu0 %v112
    %4082 = vmatprep.subr.mxu0 0.0
    %4083 = vmatpush1.msra.mxu0 0.0
    %4084 = vmatprep.subr.mxu0 0.0
    %4085 = vmatpush1.msra.mxu0 0.0
    %4086 = vmatprep.subr.mxu0 0.0
    %4087 = vmatpush1.msra.mxu0 0.0
    %4088 = vmatprep.subr.mxu0 0.0
    %4089 = vmatpush1.msra.mxu0 0.0
    %4090 = vmatprep.subr.mxu0 0.0
    %4091 = vmatpush1.msra.mxu0 0.0
    %4092 = vmatprep.subr.mxu0 0.0
    %4093 = vmatpush1.msra.mxu0 0.0
    %4094 = vmatprep.subr.mxu0 0.0
    %4095 = vmatpush1.msra.mxu0 0.0
    %4096 = vmatprep.subr.mxu0 0.0
    %4097 = vmatpush1.msra.mxu0 0.0
    %4098 = vmatprep.subr.mxu0 0.0
    %4099 = vmatpush1.msra.mxu0 0.0
    %4100 = vmatprep.subr.mxu0 0.0
    %4101 = vmatpush1.msra.mxu0 0.0
    %4102 = vmatprep.subr.mxu0 0.0
    %4103 = vmatpush1.msra.mxu0 0.0
    %4104 = vmatprep.subr.mxu0 0.0
    %4105 = vmatpush1.msra.mxu0 0.0
    %4106 = vmatprep.subr.mxu0 0.0
    %4107 = vmatpush1.msra.mxu0 0.0
    %4108 = vmatprep.subr.mxu0 0.0
    %4109 = vmatpush1.msra.mxu0 0.0
    %4110 = vmatprep.subr.mxu0 0.0
    %4111 = vmatpush1.msra.mxu0 0.0
    %4112 = vmatprep.subr.mxu0 0.0
    %4113 = vmatpush1.msra.mxu0 0.0
    %4114 = vmatprep.subr.mxu0 0.0
    %4115 = vmatpush1.msra.mxu0 0.0
    %4116 = vmatprep.subr.mxu0 0.0
    %4117 = vmatpush1.msra.mxu0 0.0
    %4118 = vmatprep.subr.mxu0 0.0
    %4119 = vmatpush1.msra.mxu0 0.0
    %4120 = vmatprep.subr.mxu0 0.0
    %4121 = vmatpush1.msra.mxu0 0.0
    %4122 = vmatprep.subr.mxu0 0.0
    %4123 = vmatpush1.msra.mxu0 0.0
    %4124 = vmatprep.subr.mxu0 0.0
    %4125 = vmatpush1.msra.mxu0 0.0
    %4126 = vmatprep.subr.mxu0 0.0
    %4127 = vmatpush1.msra.mxu0 0.0
    %4128 = vmatprep.subr.mxu0 0.0
    %4129 = vmatpush1.msra.mxu0 0.0
    %4130 = vmatprep.subr.mxu0 0.0
    %4131 = vmatpush1.msra.mxu0 0.0
    %4132 = vmatprep.subr.mxu0 0.0
    %4133 = vmatpush1.msra.mxu0 0.0
    %4134 = vmatprep.subr.mxu0 0.0
    %4135 = vmatpush1.msra.mxu0 0.0
    %4136 = vmatprep.subr.mxu0 0.0
    %4137 = vmatpush1.msra.mxu0 0.0
    %4138 = vmatprep.mubr.f32.mxu0 0.0
    %4139 = vmatmul.mubr.f32.gmra.mrb[0].mxu0 %v4069
    %v4140 = vpop.f32.mrb[0].mxu0
    %v4141 = vadd.f32 0.0, %v4140
    %v4142 = vpop.f32.mrb[0].mxu0
    %4143 = vmatprep.mubr.f32.mxu0 0.0
    %4144 = vmatmul.mubr.f32.gmra.mrb[0].mxu0 %v4072
    %v4145 = vpop.f32.mrb[0].mxu0
    %v4146 = vadd.f32 0.0, %v4145
    %v4147 = vpop.f32.mrb[0].mxu0
    %4148 = vdwg.mxu0
    %4151 = vrot.lane.b32.xlu0 %v4141, 96
    %v4152 = vpop.permute.xlu0 %4151
    %4153 = vrot.lane.b32.xlu0 %v4146, 96
    %v4154 = vpop.permute.xlu0 %4153
    %v4157 = vadd.f32 %v4064, %v4152
    %v4158 = vadd.f32 %v4065, %v4154
    %4161 = vrot.lane.b32.xlu0 %v4157, 32
    %v4162 = vpop.permute.xlu0 %4161
    %4163 = vrot.lane.b32.xlu0 %v4158, 32
    %v4164 = vpop.permute.xlu0 %4163
    %v4165 = vsel %vm150, %v4162, 0
    %v4167 = vsel %vm150, %v4164, 0
    %4169 = vmatprep.subr.mxu0 0.0
    %4170 = vmatpush1.msra.mxu0 %v105
    %4171 = vmatprep.subr.mxu0 0.0
    %4172 = vmatpush1.msra.mxu0 %v106
    %4173 = vmatprep.subr.mxu0 0.0
    %4174 = vmatpush1.msra.mxu0 %v107
    %4175 = vmatprep.subr.mxu0 0.0
    %4176 = vmatpush1.msra.mxu0 %v108
    %4177 = vmatprep.subr.mxu0 0.0
    %4178 = vmatpush1.msra.mxu0 0.0
    %4179 = vmatprep.subr.mxu0 0.0
    %4180 = vmatpush1.msra.mxu0 0.0
    %4181 = vmatprep.subr.mxu0 0.0
    %4182 = vmatpush1.msra.mxu0 0.0
    %4183 = vmatprep.subr.mxu0 0.0
    %4184 = vmatpush1.msra.mxu0 0.0
    %4185 = vmatprep.subr.mxu0 0.0
    %4186 = vmatpush1.msra.mxu0 0.0
    %4187 = vmatprep.subr.mxu0 0.0
    %4188 = vmatpush1.msra.mxu0 0.0
    %4189 = vmatprep.subr.mxu0 0.0
    %4190 = vmatpush1.msra.mxu0 0.0
    %4191 = vmatprep.subr.mxu0 0.0
    %4192 = vmatpush1.msra.mxu0 0.0
    %4193 = vmatprep.subr.mxu0 0.0
    %4194 = vmatpush1.msra.mxu0 0.0
    %4195 = vmatprep.subr.mxu0 0.0
    %4196 = vmatpush1.msra.mxu0 0.0
    %4197 = vmatprep.subr.mxu0 0.0
    %4198 = vmatpush1.msra.mxu0 0.0
    %4199 = vmatprep.subr.mxu0 0.0
    %4200 = vmatpush1.msra.mxu0 0.0
    %4201 = vmatprep.subr.mxu0 0.0
    %4202 = vmatpush1.msra.mxu0 0.0
    %4203 = vmatprep.subr.mxu0 0.0
    %4204 = vmatpush1.msra.mxu0 0.0
    %4205 = vmatprep.subr.mxu0 0.0
    %4206 = vmatpush1.msra.mxu0 0.0
    %4207 = vmatprep.subr.mxu0 0.0
    %4208 = vmatpush1.msra.mxu0 0.0
    %4209 = vmatprep.subr.mxu0 0.0
    %4210 = vmatpush1.msra.mxu0 0.0
    %4211 = vmatprep.subr.mxu0 0.0
    %4212 = vmatpush1.msra.mxu0 0.0
    %4213 = vmatprep.subr.mxu0 0.0
    %4214 = vmatpush1.msra.mxu0 0.0
    %4215 = vmatprep.subr.mxu0 0.0
    %4216 = vmatpush1.msra.mxu0 0.0
    %4217 = vmatprep.subr.mxu0 0.0
    %4218 = vmatpush1.msra.mxu0 0.0
    %4219 = vmatprep.subr.mxu0 0.0
    %4220 = vmatpush1.msra.mxu0 0.0
    %4221 = vmatprep.subr.mxu0 0.0
    %4222 = vmatpush1.msra.mxu0 0.0
    %4223 = vmatprep.subr.mxu0 0.0
    %4224 = vmatpush1.msra.mxu0 0.0
    %4225 = vmatprep.subr.mxu0 0.0
    %4226 = vmatpush1.msra.mxu0 0.0
    %4227 = vmatprep.subr.mxu0 0.0
    %4228 = vmatpush1.msra.mxu0 0.0
    %4229 = vmatprep.subr.mxu0 0.0
    %4230 = vmatpush1.msra.mxu0 0.0
    %4231 = vmatprep.subr.mxu0 0.0
    %4232 = vmatpush1.msra.mxu0 0.0
    %4233 = vmatprep.mubr.f32.mxu0 0.0
    %4234 = vmatmul.mubr.f32.gmra.mrb[0].mxu0 %v4165
    %v4235 = vpop.f32.mrb[0].mxu0
    %v4236 = vadd.f32 0.0, %v4235
    %v4237 = vpop.f32.mrb[0].mxu0
    %4238 = vmatprep.mubr.f32.mxu0 0.0
    %4239 = vmatmul.mubr.f32.gmra.mrb[0].mxu0 %v4167
    %v4240 = vpop.f32.mrb[0].mxu0
    %v4241 = vadd.f32 0.0, %v4240
    %v4242 = vpop.f32.mrb[0].mxu0
    %4243 = vdwg.mxu0
    %4244 = vst [vmem:[#allocation14] sm:$0xff] %v4236
    %4245 = vst [vmem:[#allocation14 + $0x8] sm:$0xff] %v4241
    // Predicated region
    $region54: #{tpu_custom_call.1} parent=1 // pred_check
      _
    $region55: #{tpu_custom_call.1} parent=1 // pred_check_branch
      %4247 = sbr.rel (0) target = $region57
    $region56: #{tpu_custom_call.1} parent=1 // pred_region
      %s4249 = ssub.s32 256, 256
      %4250 = vsyncadd [#allocation7], %s4249
      %s4251 = sshll.u32 [#allocation14], 4
      %s4252 = int_to_ptr.vmem [resolvable:$true] %s4251
      %4257 = dma.vmem_to_hbm [thread:$0]  %s4252, 256, %s8, [#allocation7], 128, 128, 8
    $region57: #{tpu_custom_call.1} parent=1 // pred_fallthru
      _
    // Predicated region
    $region58: #{tpu_custom_call.1} parent=1 // pred_check
      _
    $region59: #{tpu_custom_call.1} parent=1 // pred_check_branch
      %4259 = sbr.rel (0) target = $region61
    $region60: #{tpu_custom_call.1} parent=1 // pred_region
      %4260 = dma.done [#allocation7], 256
    $region61: #{tpu_custom_call.1} parent=1 // pred_fallthru
      _
    %4261 = vsyncpa [#allocation6], 1
    %4262 = vsyncpa [#allocation9], 1
    %4263 = vsyncpa [#allocation12], 1
    %4264 = vsyncpa [#allocation7], 1

</llo_original>
